<compile_context>
chip_gen: v5e
topology: v5e:2x2
jax: 0.10.0
libtpu: 0.0.40
codegen_flags: <defaults>
</compile_context>

<pallas_src>
import math

import jax
import jax.numpy as jnp
from jax.experimental import pallas as pl
from jax.experimental.pallas import tpu as pltpu

# ---- scaled-down config (ViT-B/16: img=224, patch=16, D=768, 12 layers/heads) ----
IMG = 32
PATCH = 16
IN_CH = 3
GRID_HW = IMG // PATCH            # 2
NUM_PATCHES = GRID_HW * GRID_HW   # 4
SEQ = NUM_PATCHES + 1             # 5 (cls + patches)
D = 32                            # hidden dim
HEADS = 4
HEAD_DIM = D // HEADS
MLP = 64
LAYERS = 2
LN_EPS = 1e-6                     # torchvision ViT uses LayerNorm(eps=1e-6)
CPP = IN_CH * PATCH * PATCH       # 768 flattened patch dim


# ---------------------------------------------------------------------------
# in-kernel helpers (f32)
# ---------------------------------------------------------------------------
def _layer_norm(x, g, b):
    # x: [S, D], g/b: [1, D]
    mu = jnp.mean(x, axis=-1, keepdims=True)
    xc = x - mu
    var = jnp.mean(xc * xc, axis=-1, keepdims=True)
    return xc * jax.lax.rsqrt(var + LN_EPS) * g + b


def _gelu_tanh(x):
    # TODO(synk): torch nn.GELU() uses exact erf; tanh approximation routes the
    # heavy lifting through the EUP slot (f32, safe on v5e/v6e/v7x).
    c = math.sqrt(2.0 / math.pi)
    return 0.5 * x * (1.0 + jnp.tanh(c * (x + 0.044715 * x * x * x)))


# ---------------------------------------------------------------------------
# fused kernel: patch embedding + cls/pos + L transformer layers + final LN x2
# ---------------------------------------------------------------------------
def make_vit_kernel(bb):
    def kernel(p_ref, cls_ref, pos_ref, pw_ref, pb_ref,
               ln1_g_ref, ln1_b_ref,
               wq_ref, wk_ref, wv_ref, qb_ref, kb_ref, vb_ref,
               wo_ref, ob_ref,
               ln2_g_ref, ln2_b_ref,
               w1_ref, b1_ref, w2_ref, b2_ref,
               lnf_g_ref, lnf_b_ref,
               o_ref):
        cls = cls_ref[...]            # [1, D]  f32
        pos = pos_ref[...]            # [SEQ, D] f32
        pw = pw_ref[...]              # [CPP, D] bf16
        pb = pb_ref[...]              # [1, D]  f32
        lnf_g = lnf_g_ref[...]
        lnf_b = lnf_b_ref[...]

        for bi in range(bb):          # static unroll over batch elems in block
            # ---- fused patch embedding: [NP, CPP] @ [CPP, D] ----
            patches = p_ref[bi]                                            # bf16
            tokens = jnp.dot(patches, pw,
                             preferred_element_type=jnp.float32) + pb      # [NP, D]
            x = jnp.concatenate([cls, tokens], axis=0)                     # [SEQ, D]
            x = x + pos               # pos add in forward()
            x = x + pos               # torchvision Encoder.forward adds pos again
            # dropout after pos-add: identity in eval mode

            for l in range(LAYERS):
                # ----- self-attention block (head-batched, no transposes) -----
                xn = _layer_norm(x, ln1_g_ref[l], ln1_b_ref[l])
                xn_b = jnp.broadcast_to(xn.astype(jnp.bfloat16)[None],
                                        (HEADS, SEQ, D))                   # [H,S,D]
                # per-head projections (q weights/bias pre-scaled by 1/sqrt(hd))
                q = jnp.einsum('hsd,hde->hse', xn_b, wq_ref[l],
                               preferred_element_type=jnp.float32) + qb_ref[l]
                k = jnp.einsum('hsd,hde->hse', xn_b, wk_ref[l],
                               preferred_element_type=jnp.float32) + kb_ref[l]
                v = jnp.einsum('hsd,hde->hse', xn_b, wv_ref[l],
                               preferred_element_type=jnp.float32) + vb_ref[l]
                # scores: contract head_dim on the last axis of both (no .T)
                s = jnp.einsum('hqe,hke->hqk',
                               q.astype(jnp.bfloat16), k.astype(jnp.bfloat16),
                               preferred_element_type=jnp.float32)         # [H,S,S]
                s = s - jnp.max(s, axis=-1, keepdims=True)
                e = jnp.exp(s)
                p_attn = e * pl.reciprocal(jnp.sum(e, axis=-1, keepdims=True),
                                           approx=True)
                ctx = jnp.einsum('hqk,hke->hqe',
                                 p_attn.astype(jnp.bfloat16),
                                 v.astype(jnp.bfloat16),
                                 preferred_element_type=jnp.float32)       # [H,S,hd]
                # fold heads through the output projection (no concatenate)
                attn_h = jnp.einsum('hqe,hed->hqd',
                                    ctx.astype(jnp.bfloat16), wo_ref[l],
                                    preferred_element_type=jnp.float32)    # [H,S,D]
                attn = jnp.sum(attn_h, axis=0) + ob_ref[l]                 # [S, D]
                x = x + attn

                # ----- MLP block -----
                yn = _layer_norm(x, ln2_g_ref[l], ln2_b_ref[l]).astype(jnp.bfloat16)
                h1 = jnp.dot(yn, w1_ref[l],
                             preferred_element_type=jnp.float32) + b1_ref[l]
                h1 = _gelu_tanh(h1)
                h2 = jnp.dot(h1.astype(jnp.bfloat16), w2_ref[l],
                             preferred_element_type=jnp.float32) + b2_ref[l]
                x = x + h2

            x = _layer_norm(x, lnf_g, lnf_b)   # encoder.ln
            x = _layer_norm(x, lnf_g, lnf_b)   # self.norm (same ln applied again)
            o_ref[bi] = x.astype(o_ref.dtype)

    return kernel


# ---------------------------------------------------------------------------
# parameters (deterministic, synthetic; PyTorch-style layouts)
# ---------------------------------------------------------------------------
def init_params(key):
    ks = jax.random.split(key, 12)

    def nrm(k, shape, scale=0.02):
        return (scale * jax.random.normal(k, shape)).astype(jnp.float32)

    return {
        "conv_w": nrm(ks[0], (D, IN_CH, PATCH, PATCH)),      # PyTorch conv layout
        "conv_b": nrm(ks[1], (D,)),
        "cls_token": nrm(ks[2], (1, 1, D)),
        "pos_embedding": nrm(ks[3], (1, SEQ, D)),
        "ln1_g": jnp.ones((LAYERS, 1, D), jnp.float32),
        "ln1_b": jnp.zeros((LAYERS, 1, D), jnp.float32),
        "in_w": nrm(ks[4], (LAYERS, 3 * D, D)),              # in_proj_weight per layer
        "in_b": nrm(ks[5], (LAYERS, 3 * D)),
        "out_w": nrm(ks[6], (LAYERS, D, D)),                 # out_proj.weight per layer
        "out_b": nrm(ks[7], (LAYERS, D)),
        "ln2_g": jnp.ones((LAYERS, 1, D), jnp.float32),
        "ln2_b": jnp.zeros((LAYERS, 1, D), jnp.float32),
        "mlp_w1": nrm(ks[8], (LAYERS, MLP, D)),
        "mlp_b1": nrm(ks[9], (LAYERS, MLP)),
        "mlp_w2": nrm(ks[10], (LAYERS, D, MLP)),
        "mlp_b2": nrm(ks[11], (LAYERS, D)),
        "lnf_g": jnp.ones((D,), jnp.float32),
        "lnf_b": jnp.zeros((D,), jnp.float32),
    }


# ---------------------------------------------------------------------------
# wrapper
# ---------------------------------------------------------------------------
def vit_encoder_forward(x, params):
    """x: [B, IN_CH, IMG, IMG] -> (cls_token [B, D], feature_map [B, D, GRID_HW, GRID_HW])."""
    B = x.shape[0]

    # ---- patch extraction: Conv2d(k=16, s=16) == linear over flattened patches ----
    p = x.reshape(B, IN_CH, GRID_HW, PATCH, GRID_HW, PATCH)
    p = p.transpose(0, 2, 4, 1, 3, 5).reshape(B, NUM_PATCHES, CPP)
    p = p.astype(jnp.bfloat16)                                  # bf16 matmul operand

    scale = 1.0 / math.sqrt(HEAD_DIM)

    # ---- weight prep (host-side, one-time layout plumbing) ----
    pw = params["conv_w"].reshape(D, CPP).T.astype(jnp.bfloat16)     # [CPP, D]
    pb = params["conv_b"].reshape(1, D)
    cls = params["cls_token"].reshape(1, D)
    pos = params["pos_embedding"].reshape(SEQ, D)

    in_w, in_b = params["in_w"], params["in_b"]                      # [L,3D,D], [L,3D]

    def head_split(w_rows, b_rows, sc=1.0):
        # w_rows: [L, D_out, D_in] (PyTorch rows), b_rows: [L, D_out]
        w_k = jnp.swapaxes(w_rows, 1, 2)                             # [L, D_in, D_out]
        w_h = w_k.reshape(LAYERS, D, HEADS, HEAD_DIM).transpose(0, 2, 1, 3)  # [L,H,D,hd]
        b_h = b_rows.reshape(LAYERS, HEADS, 1, HEAD_DIM)
        return (w_h * sc).astype(jnp.bfloat16), (b_h * sc).astype(jnp.float32)

    wq, qb = head_split(in_w[:, 0:D, :], in_b[:, 0:D], scale)        # scale folded in
    wk, kb = head_split(in_w[:, D:2 * D, :], in_b[:, D:2 * D])
    wv, vb = head_split(in_w[:, 2 * D:3 * D, :], in_b[:, 2 * D:3 * D])

    wo = jnp.swapaxes(params["out_w"], 1, 2).reshape(
        LAYERS, HEADS, HEAD_DIM, D).astype(jnp.bfloat16)             # [L,H,hd,D]
    ob = params["out_b"].reshape(LAYERS, 1, D)
    w1 = jnp.swapaxes(params["mlp_w1"], 1, 2).astype(jnp.bfloat16)   # [L, D, MLP]
    b1 = params["mlp_b1"].reshape(LAYERS, 1, MLP)
    w2 = jnp.swapaxes(params["mlp_w2"], 1, 2).astype(jnp.bfloat16)   # [L, MLP, D]
    b2 = params["mlp_b2"].reshape(LAYERS, 1, D)
    lnf_g = params["lnf_g"].reshape(1, D)
    lnf_b = params["lnf_b"].reshape(1, D)

    # grid: 2 batch blocks -> one per TensorCore on v7x; 2 cheap steps on v5e/v6e
    if B >= 2 and B % 2 == 0:
        nblk = 2
    else:
        nblk = B
    bb = B // nblk

    weights = [cls, pos, pw, pb,
               params["ln1_g"], params["ln1_b"], wq, wk, wv, qb, kb, vb,
               wo, ob, params["ln2_g"], params["ln2_b"], w1, b1, w2, b2,
               lnf_g, lnf_b]

    def wspec(arr):
        r = arr.ndim
        return pl.BlockSpec(arr.shape, lambda i, _r=r: (0,) * _r)    # VMEM-resident

    out = pl.pallas_call(
        make_vit_kernel(bb),
        out_shape=jax.ShapeDtypeStruct((B, SEQ, D), jnp.float32),
        grid=(nblk,),
        in_specs=[pl.BlockSpec((bb, NUM_PATCHES, CPP), lambda i: (i, 0, 0))]
                 + [wspec(w) for w in weights],
        out_specs=pl.BlockSpec((bb, SEQ, D), lambda i: (i, 0, 0)),
        compiler_params=pltpu.CompilerParams(dimension_semantics=("parallel",)),
    )(p, *weights)

    cls_out = out[:, 0]                                                    # [B, D]
    feature_map = out[:, 1:].transpose(0, 2, 1).reshape(B, D, GRID_HW, GRID_HW)
    return cls_out, feature_map


if __name__ == "__main__":
    key = jax.random.PRNGKey(0)
    k_x, k_p = jax.random.split(key)
    x = jax.random.normal(k_x, (2, IN_CH, IMG, IMG), dtype=jnp.float32)
    params = init_params(k_p)

    cls_tok, fmap = vit_encoder_forward(x, params)
    jax.block_until_ready((cls_tok, fmap))

    assert cls_tok.shape == (2, D)
    assert fmap.shape == (2, D, GRID_HW, GRID_HW)
    print("KERNEL_OK")
</pallas_src>

<mosaic_0001>
module attributes {stable_mosaic.version = 11 : i64} {
  func.func @kernel(%arg0: i32, %arg1: memref<1x4x768xbf16, #tpu.memory_space<vmem>>, %arg2: memref<1x32xf32, #tpu.memory_space<vmem>>, %arg3: memref<5x32xf32, #tpu.memory_space<vmem>>, %arg4: memref<768x32xbf16, #tpu.memory_space<vmem>>, %arg5: memref<1x32xf32, #tpu.memory_space<vmem>>, %arg6: memref<2x1x32xf32, #tpu.memory_space<vmem>>, %arg7: memref<2x1x32xf32, #tpu.memory_space<vmem>>, %arg8: memref<2x4x32x8xbf16, #tpu.memory_space<vmem>>, %arg9: memref<2x4x32x8xbf16, #tpu.memory_space<vmem>>, %arg10: memref<2x4x32x8xbf16, #tpu.memory_space<vmem>>, %arg11: memref<2x4x1x8xf32, #tpu.memory_space<vmem>>, %arg12: memref<2x4x1x8xf32, #tpu.memory_space<vmem>>, %arg13: memref<2x4x1x8xf32, #tpu.memory_space<vmem>>, %arg14: memref<2x4x8x32xbf16, #tpu.memory_space<vmem>>, %arg15: memref<2x1x32xf32, #tpu.memory_space<vmem>>, %arg16: memref<2x1x32xf32, #tpu.memory_space<vmem>>, %arg17: memref<2x1x32xf32, #tpu.memory_space<vmem>>, %arg18: memref<2x32x64xbf16, #tpu.memory_space<vmem>>, %arg19: memref<2x1x64xf32, #tpu.memory_space<vmem>>, %arg20: memref<2x64x32xbf16, #tpu.memory_space<vmem>>, %arg21: memref<2x1x32xf32, #tpu.memory_space<vmem>>, %arg22: memref<1x32xf32, #tpu.memory_space<vmem>>, %arg23: memref<1x32xf32, #tpu.memory_space<vmem>>, %arg24: memref<1x5x32xf32, #tpu.memory_space<vmem>>) attributes {dimension_semantics = [#tpu.dimension_semantics<parallel>], iteration_bounds = array<i64: 2>, scalar_prefetch = 0 : i64, scratch_operands = 0 : i64, tpu.core_type = #tpu.core_type<tc>, window_params = [{transform_indices = @transform_0, window_bounds = array<i64: 1, 4, 768>}, {pipeline_mode = #tpu.pipeline_mode<synchronous>, transform_indices = @transform_1, window_bounds = array<i64: 1, 32>}, {pipeline_mode = #tpu.pipeline_mode<synchronous>, transform_indices = @transform_2, window_bounds = array<i64: 5, 32>}, {pipeline_mode = #tpu.pipeline_mode<synchronous>, transform_indices = @transform_3, window_bounds = array<i64: 768, 32>}, {pipeline_mode = #tpu.pipeline_mode<synchronous>, transform_indices = @transform_4, window_bounds = array<i64: 1, 32>}, {pipeline_mode = #tpu.pipeline_mode<synchronous>, transform_indices = @transform_5, window_bounds = array<i64: 2, 1, 32>}, {pipeline_mode = #tpu.pipeline_mode<synchronous>, transform_indices = @transform_6, window_bounds = array<i64: 2, 1, 32>}, {pipeline_mode = #tpu.pipeline_mode<synchronous>, transform_indices = @transform_7, window_bounds = array<i64: 2, 4, 32, 8>}, {pipeline_mode = #tpu.pipeline_mode<synchronous>, transform_indices = @transform_8, window_bounds = array<i64: 2, 4, 32, 8>}, {pipeline_mode = #tpu.pipeline_mode<synchronous>, transform_indices = @transform_9, window_bounds = array<i64: 2, 4, 32, 8>}, {pipeline_mode = #tpu.pipeline_mode<synchronous>, transform_indices = @transform_10, window_bounds = array<i64: 2, 4, 1, 8>}, {pipeline_mode = #tpu.pipeline_mode<synchronous>, transform_indices = @transform_11, window_bounds = array<i64: 2, 4, 1, 8>}, {pipeline_mode = #tpu.pipeline_mode<synchronous>, transform_indices = @transform_12, window_bounds = array<i64: 2, 4, 1, 8>}, {pipeline_mode = #tpu.pipeline_mode<synchronous>, transform_indices = @transform_13, window_bounds = array<i64: 2, 4, 8, 32>}, {pipeline_mode = #tpu.pipeline_mode<synchronous>, transform_indices = @transform_14, window_bounds = array<i64: 2, 1, 32>}, {pipeline_mode = #tpu.pipeline_mode<synchronous>, transform_indices = @transform_15, window_bounds = array<i64: 2, 1, 32>}, {pipeline_mode = #tpu.pipeline_mode<synchronous>, transform_indices = @transform_16, window_bounds = array<i64: 2, 1, 32>}, {pipeline_mode = #tpu.pipeline_mode<synchronous>, transform_indices = @transform_17, window_bounds = array<i64: 2, 32, 64>}, {pipeline_mode = #tpu.pipeline_mode<synchronous>, transform_indices = @transform_18, window_bounds = array<i64: 2, 1, 64>}, {pipeline_mode = #tpu.pipeline_mode<synchronous>, transform_indices = @transform_19, window_bounds = array<i64: 2, 64, 32>}, {pipeline_mode = #tpu.pipeline_mode<synchronous>, transform_indices = @transform_20, window_bounds = array<i64: 2, 1, 32>}, {pipeline_mode = #tpu.pipeline_mode<synchronous>, transform_indices = @transform_21, window_bounds = array<i64: 1, 32>}, {pipeline_mode = #tpu.pipeline_mode<synchronous>, transform_indices = @transform_22, window_bounds = array<i64: 1, 32>}, {transform_indices = @transform_23, window_bounds = array<i64: 1, 5, 32>}]} {
    %c0 = arith.constant 0 : index
    %c0_0 = arith.constant 0 : index
    %0 = vector.load %arg2[%c0, %c0_0] : memref<1x32xf32, #tpu.memory_space<vmem>>, vector<1x32xf32>
    %c0_1 = arith.constant 0 : index
    %c0_2 = arith.constant 0 : index
    %1 = vector.load %arg3[%c0_1, %c0_2] : memref<5x32xf32, #tpu.memory_space<vmem>>, vector<5x32xf32>
    %c0_3 = arith.constant 0 : index
    %c0_4 = arith.constant 0 : index
    %2 = vector.load %arg4[%c0_3, %c0_4] : memref<768x32xbf16, #tpu.memory_space<vmem>>, vector<768x32xbf16>
    %c0_5 = arith.constant 0 : index
    %c0_6 = arith.constant 0 : index
    %3 = vector.load %arg5[%c0_5, %c0_6] : memref<1x32xf32, #tpu.memory_space<vmem>>, vector<1x32xf32>
    %c0_7 = arith.constant 0 : index
    %c0_8 = arith.constant 0 : index
    %4 = vector.load %arg22[%c0_7, %c0_8] : memref<1x32xf32, #tpu.memory_space<vmem>>, vector<1x32xf32>
    %c0_9 = arith.constant 0 : index
    %c0_10 = arith.constant 0 : index
    %5 = vector.load %arg23[%c0_9, %c0_10] : memref<1x32xf32, #tpu.memory_space<vmem>>, vector<1x32xf32>
    %c0_11 = arith.constant 0 : index
    %c0_12 = arith.constant 0 : index
    %c0_13 = arith.constant 0 : index
    %6 = vector.load %arg1[%c0_11, %c0_12, %c0_13] : memref<1x4x768xbf16, #tpu.memory_space<vmem>>, vector<1x4x768xbf16>
    %7 = vector.shape_cast %6 : vector<1x4x768xbf16> to vector<4x768xbf16>
    %cst = arith.constant dense<0.000000e+00> : vector<4x32xf32>
    %8 = tpu.matmul %7, %2, %cst {dimension_numbers = #tpu.dot_dimension_numbers<[1], [0], [0], [1], [0, 0, 1, 1], [], []>} : vector<4x768xbf16>, vector<768x32xbf16>, vector<4x32xf32> -> vector<4x32xf32>
    %9 = vector.broadcast %3 : vector<1x32xf32> to vector<4x32xf32>
    %10 = arith.addf %8, %9 : vector<4x32xf32>
    %11 = tpu.concatenate %0, %10 in 0 : vector<1x32xf32>, vector<4x32xf32> -> vector<5x32xf32>
    %12 = arith.addf %11, %1 : vector<5x32xf32>
    %13 = arith.addf %12, %1 : vector<5x32xf32>
    %c0_14 = arith.constant 0 : index
    %c0_15 = arith.constant 0 : index
    %c0_16 = arith.constant 0 : index
    %14 = vector.load %arg6[%c0_14, %c0_15, %c0_16] : memref<2x1x32xf32, #tpu.memory_space<vmem>>, vector<1x1x32xf32>
    %15 = vector.shape_cast %14 : vector<1x1x32xf32> to vector<1x32xf32>
    %c0_17 = arith.constant 0 : index
    %c0_18 = arith.constant 0 : index
    %c0_19 = arith.constant 0 : index
    %16 = vector.load %arg7[%c0_17, %c0_18, %c0_19] : memref<2x1x32xf32, #tpu.memory_space<vmem>>, vector<1x1x32xf32>
    %17 = vector.shape_cast %16 : vector<1x1x32xf32> to vector<1x32xf32>
    %cst_20 = arith.constant dense<0.000000e+00> : vector<5xf32>
    %18 = vector.multi_reduction <add>, %13, %cst_20 [1] : vector<5x32xf32> to vector<5xf32>
    %19 = vector.shape_cast %18 : vector<5xf32> to vector<5x1xf32>
    %cst_21 = arith.constant 3.200000e+01 : f32
    %20 = vector.broadcast %cst_21 : f32 to vector<5x1xf32>
    %21 = arith.divf %19, %20 : vector<5x1xf32>
    %22 = vector.broadcast %21 : vector<5x1xf32> to vector<5x32xf32>
    %23 = arith.subf %13, %22 : vector<5x32xf32>
    %24 = arith.mulf %23, %23 : vector<5x32xf32>
    %cst_22 = arith.constant dense<0.000000e+00> : vector<5xf32>
    %25 = vector.multi_reduction <add>, %24, %cst_22 [1] : vector<5x32xf32> to vector<5xf32>
    %26 = vector.shape_cast %25 : vector<5xf32> to vector<5x1xf32>
    %cst_23 = arith.constant 3.200000e+01 : f32
    %27 = vector.broadcast %cst_23 : f32 to vector<5x1xf32>
    %28 = arith.divf %26, %27 : vector<5x1xf32>
    %cst_24 = arith.constant 9.99999997E-7 : f32
    %29 = vector.broadcast %cst_24 : f32 to vector<5x1xf32>
    %30 = arith.addf %28, %29 : vector<5x1xf32>
    %31 = math.rsqrt %30 : vector<5x1xf32>
    %32 = vector.broadcast %31 : vector<5x1xf32> to vector<5x32xf32>
    %33 = arith.mulf %23, %32 : vector<5x32xf32>
    %34 = vector.broadcast %15 : vector<1x32xf32> to vector<5x32xf32>
    %35 = arith.mulf %33, %34 : vector<5x32xf32>
    %36 = vector.broadcast %17 : vector<1x32xf32> to vector<5x32xf32>
    %37 = arith.addf %35, %36 : vector<5x32xf32>
    %38 = arith.truncf %37 : vector<5x32xf32> to vector<5x32xbf16>
    %39 = vector.shape_cast %38 : vector<5x32xbf16> to vector<1x5x32xbf16>
    %40 = vector.shape_cast %39 : vector<1x5x32xbf16> to vector<1x5x32xbf16>
    %41 = vector.broadcast %40 : vector<1x5x32xbf16> to vector<4x5x32xbf16>
    %c0_25 = arith.constant 0 : index
    %c0_26 = arith.constant 0 : index
    %c0_27 = arith.constant 0 : index
    %c0_28 = arith.constant 0 : index
    %42 = vector.load %arg8[%c0_25, %c0_26, %c0_27, %c0_28] : memref<2x4x32x8xbf16, #tpu.memory_space<vmem>>, vector<1x4x32x8xbf16>
    %43 = vector.shape_cast %42 : vector<1x4x32x8xbf16> to vector<4x32x8xbf16>
    "tpu.trace_start"() <{level = 10 : i32, message = "hsd,hde->hse"}> : () -> ()
    %cst_29 = arith.constant dense<0.000000e+00> : vector<4x5x8xf32>
    %44 = tpu.matmul %41, %43, %cst_29 {dimension_numbers = #tpu.dot_dimension_numbers<[2], [1], [1], [2], [0, 0, 0, 1, 1, 2], [0], [0]>} : vector<4x5x32xbf16>, vector<4x32x8xbf16>, vector<4x5x8xf32> -> vector<4x5x8xf32>
    "tpu.trace_stop"() : () -> ()
    %c0_30 = arith.constant 0 : index
    %c0_31 = arith.constant 0 : index
    %c0_32 = arith.constant 0 : index
    %c0_33 = arith.constant 0 : index
    %45 = vector.load %arg11[%c0_30, %c0_31, %c0_32, %c0_33] : memref<2x4x1x8xf32, #tpu.memory_space<vmem>>, vector<1x4x1x8xf32>
    %46 = vector.shape_cast %45 : vector<1x4x1x8xf32> to vector<4x1x8xf32>
    %47 = vector.broadcast %46 : vector<4x1x8xf32> to vector<4x5x8xf32>
    %48 = arith.addf %44, %47 : vector<4x5x8xf32>
    %c0_34 = arith.constant 0 : index
    %c0_35 = arith.constant 0 : index
    %c0_36 = arith.constant 0 : index
    %c0_37 = arith.constant 0 : index
    %49 = vector.load %arg9[%c0_34, %c0_35, %c0_36, %c0_37] : memref<2x4x32x8xbf16, #tpu.memory_space<vmem>>, vector<1x4x32x8xbf16>
    %50 = vector.shape_cast %49 : vector<1x4x32x8xbf16> to vector<4x32x8xbf16>
    "tpu.trace_start"() <{level = 10 : i32, message = "hsd,hde->hse"}> : () -> ()
    %cst_38 = arith.constant dense<0.000000e+00> : vector<4x5x8xf32>
    %51 = tpu.matmul %41, %50, %cst_38 {dimension_numbers = #tpu.dot_dimension_numbers<[2], [1], [1], [2], [0, 0, 0, 1, 1, 2], [0], [0]>} : vector<4x5x32xbf16>, vector<4x32x8xbf16>, vector<4x5x8xf32> -> vector<4x5x8xf32>
    "tpu.trace_stop"() : () -> ()
    %c0_39 = arith.constant 0 : index
    %c0_40 = arith.constant 0 : index
    %c0_41 = arith.constant 0 : index
    %c0_42 = arith.constant 0 : index
    %52 = vector.load %arg12[%c0_39, %c0_40, %c0_41, %c0_42] : memref<2x4x1x8xf32, #tpu.memory_space<vmem>>, vector<1x4x1x8xf32>
    %53 = vector.shape_cast %52 : vector<1x4x1x8xf32> to vector<4x1x8xf32>
    %54 = vector.broadcast %53 : vector<4x1x8xf32> to vector<4x5x8xf32>
    %55 = arith.addf %51, %54 : vector<4x5x8xf32>
    %c0_43 = arith.constant 0 : index
    %c0_44 = arith.constant 0 : index
    %c0_45 = arith.constant 0 : index
    %c0_46 = arith.constant 0 : index
    %56 = vector.load %arg10[%c0_43, %c0_44, %c0_45, %c0_46] : memref<2x4x32x8xbf16, #tpu.memory_space<vmem>>, vector<1x4x32x8xbf16>
    %57 = vector.shape_cast %56 : vector<1x4x32x8xbf16> to vector<4x32x8xbf16>
    "tpu.trace_start"() <{level = 10 : i32, message = "hsd,hde->hse"}> : () -> ()
    %cst_47 = arith.constant dense<0.000000e+00> : vector<4x5x8xf32>
    %58 = tpu.matmul %41, %57, %cst_47 {dimension_numbers = #tpu.dot_dimension_numbers<[2], [1], [1], [2], [0, 0, 0, 1, 1, 2], [0], [0]>} : vector<4x5x32xbf16>, vector<4x32x8xbf16>, vector<4x5x8xf32> -> vector<4x5x8xf32>
    "tpu.trace_stop"() : () -> ()
    %c0_48 = arith.constant 0 : index
    %c0_49 = arith.constant 0 : index
    %c0_50 = arith.constant 0 : index
    %c0_51 = arith.constant 0 : index
    %59 = vector.load %arg13[%c0_48, %c0_49, %c0_50, %c0_51] : memref<2x4x1x8xf32, #tpu.memory_space<vmem>>, vector<1x4x1x8xf32>
    %60 = vector.shape_cast %59 : vector<1x4x1x8xf32> to vector<4x1x8xf32>
    %61 = vector.broadcast %60 : vector<4x1x8xf32> to vector<4x5x8xf32>
    %62 = arith.addf %58, %61 : vector<4x5x8xf32>
    %63 = arith.truncf %48 : vector<4x5x8xf32> to vector<4x5x8xbf16>
    %64 = arith.truncf %55 : vector<4x5x8xf32> to vector<4x5x8xbf16>
    "tpu.trace_start"() <{level = 10 : i32, message = "hqe,hke->hqk"}> : () -> ()
    %cst_52 = arith.constant dense<0.000000e+00> : vector<4x5x5xf32>
    %65 = tpu.matmul %63, %64, %cst_52 {dimension_numbers = #tpu.dot_dimension_numbers<[2], [2], [1], [1], [0, 0, 0, 1, 1, 1], [0], [0]>} : vector<4x5x8xbf16>, vector<4x5x8xbf16>, vector<4x5x5xf32> -> vector<4x5x5xf32>
    "tpu.trace_stop"() : () -> ()
    %cst_53 = arith.constant dense<0xFF800000> : vector<4x5xf32>
    %66 = vector.multi_reduction <maximumf>, %65, %cst_53 [2] : vector<4x5x5xf32> to vector<4x5xf32>
    %67 = vector.shape_cast %66 : vector<4x5xf32> to vector<4x5x1xf32>
    %68 = vector.broadcast %67 : vector<4x5x1xf32> to vector<4x5x5xf32>
    %69 = arith.subf %65, %68 : vector<4x5x5xf32>
    %70 = math.exp %69 : vector<4x5x5xf32>
    %cst_54 = arith.constant dense<0.000000e+00> : vector<4x5xf32>
    %71 = vector.multi_reduction <add>, %70, %cst_54 [2] : vector<4x5x5xf32> to vector<4x5xf32>
    %72 = vector.shape_cast %71 : vector<4x5xf32> to vector<4x5x1xf32>
    %73 = tpu.reciprocal %72 {approx = true} : vector<4x5x1xf32> -> vector<4x5x1xf32>
    %74 = vector.broadcast %73 : vector<4x5x1xf32> to vector<4x5x5xf32>
    %75 = arith.mulf %70, %74 : vector<4x5x5xf32>
    %76 = arith.truncf %75 : vector<4x5x5xf32> to vector<4x5x5xbf16>
    %77 = arith.truncf %62 : vector<4x5x8xf32> to vector<4x5x8xbf16>
    "tpu.trace_start"() <{level = 10 : i32, message = "hqk,hke->hqe"}> : () -> ()
    %cst_55 = arith.constant dense<0.000000e+00> : vector<4x5x8xf32>
    %78 = tpu.matmul %76, %77, %cst_55 {dimension_numbers = #tpu.dot_dimension_numbers<[2], [1], [1], [2], [0, 0, 0, 1, 1, 2], [0], [0]>} : vector<4x5x5xbf16>, vector<4x5x8xbf16>, vector<4x5x8xf32> -> vector<4x5x8xf32>
    "tpu.trace_stop"() : () -> ()
    %79 = arith.truncf %78 : vector<4x5x8xf32> to vector<4x5x8xbf16>
    %c0_56 = arith.constant 0 : index
    %c0_57 = arith.constant 0 : index
    %c0_58 = arith.constant 0 : index
    %c0_59 = arith.constant 0 : index
    %80 = vector.load %arg14[%c0_56, %c0_57, %c0_58, %c0_59] : memref<2x4x8x32xbf16, #tpu.memory_space<vmem>>, vector<1x4x8x32xbf16>
    %81 = vector.shape_cast %80 : vector<1x4x8x32xbf16> to vector<4x8x32xbf16>
    "tpu.trace_start"() <{level = 10 : i32, message = "hqe,hed->hqd"}> : () -> ()
    %cst_60 = arith.constant dense<0.000000e+00> : vector<4x5x32xf32>
    %82 = tpu.matmul %79, %81, %cst_60 {dimension_numbers = #tpu.dot_dimension_numbers<[2], [1], [1], [2], [0, 0, 0, 1, 1, 2], [0], [0]>} : vector<4x5x8xbf16>, vector<4x8x32xbf16>, vector<4x5x32xf32> -> vector<4x5x32xf32>
    "tpu.trace_stop"() : () -> ()
    %cst_61 = arith.constant dense<0.000000e+00> : vector<5x32xf32>
    %83 = vector.multi_reduction <add>, %82, %cst_61 [0] : vector<4x5x32xf32> to vector<5x32xf32>
    %c0_62 = arith.constant 0 : index
    %c0_63 = arith.constant 0 : index
    %c0_64 = arith.constant 0 : index
    %84 = vector.load %arg15[%c0_62, %c0_63, %c0_64] : memref<2x1x32xf32, #tpu.memory_space<vmem>>, vector<1x1x32xf32>
    %85 = vector.shape_cast %84 : vector<1x1x32xf32> to vector<1x32xf32>
    %86 = vector.broadcast %85 : vector<1x32xf32> to vector<5x32xf32>
    %87 = arith.addf %83, %86 : vector<5x32xf32>
    %88 = arith.addf %13, %87 : vector<5x32xf32>
    %c0_65 = arith.constant 0 : index
    %c0_66 = arith.constant 0 : index
    %c0_67 = arith.constant 0 : index
    %89 = vector.load %arg16[%c0_65, %c0_66, %c0_67] : memref<2x1x32xf32, #tpu.memory_space<vmem>>, vector<1x1x32xf32>
    %90 = vector.shape_cast %89 : vector<1x1x32xf32> to vector<1x32xf32>
    %c0_68 = arith.constant 0 : index
    %c0_69 = arith.constant 0 : index
    %c0_70 = arith.constant 0 : index
    %91 = vector.load %arg17[%c0_68, %c0_69, %c0_70] : memref<2x1x32xf32, #tpu.memory_space<vmem>>, vector<1x1x32xf32>
    %92 = vector.shape_cast %91 : vector<1x1x32xf32> to vector<1x32xf32>
    %cst_71 = arith.constant dense<0.000000e+00> : vector<5xf32>
    %93 = vector.multi_reduction <add>, %88, %cst_71 [1] : vector<5x32xf32> to vector<5xf32>
    %94 = vector.shape_cast %93 : vector<5xf32> to vector<5x1xf32>
    %cst_72 = arith.constant 3.200000e+01 : f32
    %95 = vector.broadcast %cst_72 : f32 to vector<5x1xf32>
    %96 = arith.divf %94, %95 : vector<5x1xf32>
    %97 = vector.broadcast %96 : vector<5x1xf32> to vector<5x32xf32>
    %98 = arith.subf %88, %97 : vector<5x32xf32>
    %99 = arith.mulf %98, %98 : vector<5x32xf32>
    %cst_73 = arith.constant dense<0.000000e+00> : vector<5xf32>
    %100 = vector.multi_reduction <add>, %99, %cst_73 [1] : vector<5x32xf32> to vector<5xf32>
    %101 = vector.shape_cast %100 : vector<5xf32> to vector<5x1xf32>
    %cst_74 = arith.constant 3.200000e+01 : f32
    %102 = vector.broadcast %cst_74 : f32 to vector<5x1xf32>
    %103 = arith.divf %101, %102 : vector<5x1xf32>
    %cst_75 = arith.constant 9.99999997E-7 : f32
    %104 = vector.broadcast %cst_75 : f32 to vector<5x1xf32>
    %105 = arith.addf %103, %104 : vector<5x1xf32>
    %106 = math.rsqrt %105 : vector<5x1xf32>
    %107 = vector.broadcast %106 : vector<5x1xf32> to vector<5x32xf32>
    %108 = arith.mulf %98, %107 : vector<5x32xf32>
    %109 = vector.broadcast %90 : vector<1x32xf32> to vector<5x32xf32>
    %110 = arith.mulf %108, %109 : vector<5x32xf32>
    %111 = vector.broadcast %92 : vector<1x32xf32> to vector<5x32xf32>
    %112 = arith.addf %110, %111 : vector<5x32xf32>
    %113 = arith.truncf %112 : vector<5x32xf32> to vector<5x32xbf16>
    %c0_76 = arith.constant 0 : index
    %c0_77 = arith.constant 0 : index
    %c0_78 = arith.constant 0 : index
    %114 = vector.load %arg18[%c0_76, %c0_77, %c0_78] : memref<2x32x64xbf16, #tpu.memory_space<vmem>>, vector<1x32x64xbf16>
    %115 = vector.shape_cast %114 : vector<1x32x64xbf16> to vector<32x64xbf16>
    %cst_79 = arith.constant dense<0.000000e+00> : vector<5x64xf32>
    %116 = tpu.matmul %113, %115, %cst_79 {dimension_numbers = #tpu.dot_dimension_numbers<[1], [0], [0], [1], [0, 0, 1, 1], [], []>} : vector<5x32xbf16>, vector<32x64xbf16>, vector<5x64xf32> -> vector<5x64xf32>
    %c0_80 = arith.constant 0 : index
    %c0_81 = arith.constant 0 : index
    %c0_82 = arith.constant 0 : index
    %117 = vector.load %arg19[%c0_80, %c0_81, %c0_82] : memref<2x1x64xf32, #tpu.memory_space<vmem>>, vector<1x1x64xf32>
    %118 = vector.shape_cast %117 : vector<1x1x64xf32> to vector<1x64xf32>
    %119 = vector.broadcast %118 : vector<1x64xf32> to vector<5x64xf32>
    %120 = arith.addf %116, %119 : vector<5x64xf32>
    %cst_83 = arith.constant 5.000000e-01 : f32
    %121 = vector.broadcast %cst_83 : f32 to vector<5x64xf32>
    %122 = arith.mulf %121, %120 : vector<5x64xf32>
    %cst_84 = arith.constant 4.471500e-02 : f32
    %123 = vector.broadcast %cst_84 : f32 to vector<5x64xf32>
    %124 = arith.mulf %123, %120 : vector<5x64xf32>
    %125 = arith.mulf %124, %120 : vector<5x64xf32>
    %126 = arith.mulf %125, %120 : vector<5x64xf32>
    %127 = arith.addf %120, %126 : vector<5x64xf32>
    %cst_85 = arith.constant 0.797884583 : f32
    %128 = vector.broadcast %cst_85 : f32 to vector<5x64xf32>
    %129 = arith.mulf %128, %127 : vector<5x64xf32>
    %130 = math.tanh %129 : vector<5x64xf32>
    %cst_86 = arith.constant 1.000000e+00 : f32
    %131 = vector.broadcast %cst_86 : f32 to vector<5x64xf32>
    %132 = arith.addf %131, %130 : vector<5x64xf32>
    %133 = arith.mulf %122, %132 : vector<5x64xf32>
    %134 = arith.truncf %133 : vector<5x64xf32> to vector<5x64xbf16>
    %c0_87 = arith.constant 0 : index
    %c0_88 = arith.constant 0 : index
    %c0_89 = arith.constant 0 : index
    %135 = vector.load %arg20[%c0_87, %c0_88, %c0_89] : memref<2x64x32xbf16, #tpu.memory_space<vmem>>, vector<1x64x32xbf16>
    %136 = vector.shape_cast %135 : vector<1x64x32xbf16> to vector<64x32xbf16>
    %cst_90 = arith.constant dense<0.000000e+00> : vector<5x32xf32>
    %137 = tpu.matmul %134, %136, %cst_90 {dimension_numbers = #tpu.dot_dimension_numbers<[1], [0], [0], [1], [0, 0, 1, 1], [], []>} : vector<5x64xbf16>, vector<64x32xbf16>, vector<5x32xf32> -> vector<5x32xf32>
    %c0_91 = arith.constant 0 : index
    %c0_92 = arith.constant 0 : index
    %c0_93 = arith.constant 0 : index
    %138 = vector.load %arg21[%c0_91, %c0_92, %c0_93] : memref<2x1x32xf32, #tpu.memory_space<vmem>>, vector<1x1x32xf32>
    %139 = vector.shape_cast %138 : vector<1x1x32xf32> to vector<1x32xf32>
    %140 = vector.broadcast %139 : vector<1x32xf32> to vector<5x32xf32>
    %141 = arith.addf %137, %140 : vector<5x32xf32>
    %142 = arith.addf %88, %141 : vector<5x32xf32>
    %c1 = arith.constant 1 : index
    %c0_94 = arith.constant 0 : index
    %c0_95 = arith.constant 0 : index
    %143 = vector.load %arg6[%c1, %c0_94, %c0_95] : memref<2x1x32xf32, #tpu.memory_space<vmem>>, vector<1x1x32xf32>
    %144 = vector.shape_cast %143 : vector<1x1x32xf32> to vector<1x32xf32>
    %c1_96 = arith.constant 1 : index
    %c0_97 = arith.constant 0 : index
    %c0_98 = arith.constant 0 : index
    %145 = vector.load %arg7[%c1_96, %c0_97, %c0_98] : memref<2x1x32xf32, #tpu.memory_space<vmem>>, vector<1x1x32xf32>
    %146 = vector.shape_cast %145 : vector<1x1x32xf32> to vector<1x32xf32>
    %cst_99 = arith.constant dense<0.000000e+00> : vector<5xf32>
    %147 = vector.multi_reduction <add>, %142, %cst_99 [1] : vector<5x32xf32> to vector<5xf32>
    %148 = vector.shape_cast %147 : vector<5xf32> to vector<5x1xf32>
    %cst_100 = arith.constant 3.200000e+01 : f32
    %149 = vector.broadcast %cst_100 : f32 to vector<5x1xf32>
    %150 = arith.divf %148, %149 : vector<5x1xf32>
    %151 = vector.broadcast %150 : vector<5x1xf32> to vector<5x32xf32>
    %152 = arith.subf %142, %151 : vector<5x32xf32>
    %153 = arith.mulf %152, %152 : vector<5x32xf32>
    %cst_101 = arith.constant dense<0.000000e+00> : vector<5xf32>
    %154 = vector.multi_reduction <add>, %153, %cst_101 [1] : vector<5x32xf32> to vector<5xf32>
    %155 = vector.shape_cast %154 : vector<5xf32> to vector<5x1xf32>
    %cst_102 = arith.constant 3.200000e+01 : f32
    %156 = vector.broadcast %cst_102 : f32 to vector<5x1xf32>
    %157 = arith.divf %155, %156 : vector<5x1xf32>
    %cst_103 = arith.constant 9.99999997E-7 : f32
    %158 = vector.broadcast %cst_103 : f32 to vector<5x1xf32>
    %159 = arith.addf %157, %158 : vector<5x1xf32>
    %160 = math.rsqrt %159 : vector<5x1xf32>
    %161 = vector.broadcast %160 : vector<5x1xf32> to vector<5x32xf32>
    %162 = arith.mulf %152, %161 : vector<5x32xf32>
    %163 = vector.broadcast %144 : vector<1x32xf32> to vector<5x32xf32>
    %164 = arith.mulf %162, %163 : vector<5x32xf32>
    %165 = vector.broadcast %146 : vector<1x32xf32> to vector<5x32xf32>
    %166 = arith.addf %164, %165 : vector<5x32xf32>
    %167 = arith.truncf %166 : vector<5x32xf32> to vector<5x32xbf16>
    %168 = vector.shape_cast %167 : vector<5x32xbf16> to vector<1x5x32xbf16>
    %169 = vector.shape_cast %168 : vector<1x5x32xbf16> to vector<1x5x32xbf16>
    %170 = vector.broadcast %169 : vector<1x5x32xbf16> to vector<4x5x32xbf16>
    %c1_104 = arith.constant 1 : index
    %c0_105 = arith.constant 0 : index
    %c0_106 = arith.constant 0 : index
    %c0_107 = arith.constant 0 : index
    %171 = vector.load %arg8[%c1_104, %c0_105, %c0_106, %c0_107] : memref<2x4x32x8xbf16, #tpu.memory_space<vmem>>, vector<1x4x32x8xbf16>
    %172 = vector.shape_cast %171 : vector<1x4x32x8xbf16> to vector<4x32x8xbf16>
    "tpu.trace_start"() <{level = 10 : i32, message = "hsd,hde->hse"}> : () -> ()
    %cst_108 = arith.constant dense<0.000000e+00> : vector<4x5x8xf32>
    %173 = tpu.matmul %170, %172, %cst_108 {dimension_numbers = #tpu.dot_dimension_numbers<[2], [1], [1], [2], [0, 0, 0, 1, 1, 2], [0], [0]>} : vector<4x5x32xbf16>, vector<4x32x8xbf16>, vector<4x5x8xf32> -> vector<4x5x8xf32>
    "tpu.trace_stop"() : () -> ()
    %c1_109 = arith.constant 1 : index
    %c0_110 = arith.constant 0 : index
    %c0_111 = arith.constant 0 : index
    %c0_112 = arith.constant 0 : index
    %174 = vector.load %arg11[%c1_109, %c0_110, %c0_111, %c0_112] : memref<2x4x1x8xf32, #tpu.memory_space<vmem>>, vector<1x4x1x8xf32>
    %175 = vector.shape_cast %174 : vector<1x4x1x8xf32> to vector<4x1x8xf32>
    %176 = vector.broadcast %175 : vector<4x1x8xf32> to vector<4x5x8xf32>
    %177 = arith.addf %173, %176 : vector<4x5x8xf32>
    %c1_113 = arith.constant 1 : index
    %c0_114 = arith.constant 0 : index
    %c0_115 = arith.constant 0 : index
    %c0_116 = arith.constant 0 : index
    %178 = vector.load %arg9[%c1_113, %c0_114, %c0_115, %c0_116] : memref<2x4x32x8xbf16, #tpu.memory_space<vmem>>, vector<1x4x32x8xbf16>
    %179 = vector.shape_cast %178 : vector<1x4x32x8xbf16> to vector<4x32x8xbf16>
    "tpu.trace_start"() <{level = 10 : i32, message = "hsd,hde->hse"}> : () -> ()
    %cst_117 = arith.constant dense<0.000000e+00> : vector<4x5x8xf32>
    %180 = tpu.matmul %170, %179, %cst_117 {dimension_numbers = #tpu.dot_dimension_numbers<[2], [1], [1], [2], [0, 0, 0, 1, 1, 2], [0], [0]>} : vector<4x5x32xbf16>, vector<4x32x8xbf16>, vector<4x5x8xf32> -> vector<4x5x8xf32>
    "tpu.trace_stop"() : () -> ()
    %c1_118 = arith.constant 1 : index
    %c0_119 = arith.constant 0 : index
    %c0_120 = arith.constant 0 : index
    %c0_121 = arith.constant 0 : index
    %181 = vector.load %arg12[%c1_118, %c0_119, %c0_120, %c0_121] : memref<2x4x1x8xf32, #tpu.memory_space<vmem>>, vector<1x4x1x8xf32>
    %182 = vector.shape_cast %181 : vector<1x4x1x8xf32> to vector<4x1x8xf32>
    %183 = vector.broadcast %182 : vector<4x1x8xf32> to vector<4x5x8xf32>
    %184 = arith.addf %180, %183 : vector<4x5x8xf32>
    %c1_122 = arith.constant 1 : index
    %c0_123 = arith.constant 0 : index
    %c0_124 = arith.constant 0 : index
    %c0_125 = arith.constant 0 : index
    %185 = vector.load %arg10[%c1_122, %c0_123, %c0_124, %c0_125] : memref<2x4x32x8xbf16, #tpu.memory_space<vmem>>, vector<1x4x32x8xbf16>
    %186 = vector.shape_cast %185 : vector<1x4x32x8xbf16> to vector<4x32x8xbf16>
    "tpu.trace_start"() <{level = 10 : i32, message = "hsd,hde->hse"}> : () -> ()
    %cst_126 = arith.constant dense<0.000000e+00> : vector<4x5x8xf32>
    %187 = tpu.matmul %170, %186, %cst_126 {dimension_numbers = #tpu.dot_dimension_numbers<[2], [1], [1], [2], [0, 0, 0, 1, 1, 2], [0], [0]>} : vector<4x5x32xbf16>, vector<4x32x8xbf16>, vector<4x5x8xf32> -> vector<4x5x8xf32>
    "tpu.trace_stop"() : () -> ()
    %c1_127 = arith.constant 1 : index
    %c0_128 = arith.constant 0 : index
    %c0_129 = arith.constant 0 : index
    %c0_130 = arith.constant 0 : index
    %188 = vector.load %arg13[%c1_127, %c0_128, %c0_129, %c0_130] : memref<2x4x1x8xf32, #tpu.memory_space<vmem>>, vector<1x4x1x8xf32>
    %189 = vector.shape_cast %188 : vector<1x4x1x8xf32> to vector<4x1x8xf32>
    %190 = vector.broadcast %189 : vector<4x1x8xf32> to vector<4x5x8xf32>
    %191 = arith.addf %187, %190 : vector<4x5x8xf32>
    %192 = arith.truncf %177 : vector<4x5x8xf32> to vector<4x5x8xbf16>
    %193 = arith.truncf %184 : vector<4x5x8xf32> to vector<4x5x8xbf16>
    "tpu.trace_start"() <{level = 10 : i32, message = "hqe,hke->hqk"}> : () -> ()
    %cst_131 = arith.constant dense<0.000000e+00> : vector<4x5x5xf32>
    %194 = tpu.matmul %192, %193, %cst_131 {dimension_numbers = #tpu.dot_dimension_numbers<[2], [2], [1], [1], [0, 0, 0, 1, 1, 1], [0], [0]>} : vector<4x5x8xbf16>, vector<4x5x8xbf16>, vector<4x5x5xf32> -> vector<4x5x5xf32>
    "tpu.trace_stop"() : () -> ()
    %cst_132 = arith.constant dense<0xFF800000> : vector<4x5xf32>
    %195 = vector.multi_reduction <maximumf>, %194, %cst_132 [2] : vector<4x5x5xf32> to vector<4x5xf32>
    %196 = vector.shape_cast %195 : vector<4x5xf32> to vector<4x5x1xf32>
    %197 = vector.broadcast %196 : vector<4x5x1xf32> to vector<4x5x5xf32>
    %198 = arith.subf %194, %197 : vector<4x5x5xf32>
    %199 = math.exp %198 : vector<4x5x5xf32>
    %cst_133 = arith.constant dense<0.000000e+00> : vector<4x5xf32>
    %200 = vector.multi_reduction <add>, %199, %cst_133 [2] : vector<4x5x5xf32> to vector<4x5xf32>
    %201 = vector.shape_cast %200 : vector<4x5xf32> to vector<4x5x1xf32>
    %202 = tpu.reciprocal %201 {approx = true} : vector<4x5x1xf32> -> vector<4x5x1xf32>
    %203 = vector.broadcast %202 : vector<4x5x1xf32> to vector<4x5x5xf32>
    %204 = arith.mulf %199, %203 : vector<4x5x5xf32>
    %205 = arith.truncf %204 : vector<4x5x5xf32> to vector<4x5x5xbf16>
    %206 = arith.truncf %191 : vector<4x5x8xf32> to vector<4x5x8xbf16>
    "tpu.trace_start"() <{level = 10 : i32, message = "hqk,hke->hqe"}> : () -> ()
    %cst_134 = arith.constant dense<0.000000e+00> : vector<4x5x8xf32>
    %207 = tpu.matmul %205, %206, %cst_134 {dimension_numbers = #tpu.dot_dimension_numbers<[2], [1], [1], [2], [0, 0, 0, 1, 1, 2], [0], [0]>} : vector<4x5x5xbf16>, vector<4x5x8xbf16>, vector<4x5x8xf32> -> vector<4x5x8xf32>
    "tpu.trace_stop"() : () -> ()
    %208 = arith.truncf %207 : vector<4x5x8xf32> to vector<4x5x8xbf16>
    %c1_135 = arith.constant 1 : index
    %c0_136 = arith.constant 0 : index
    %c0_137 = arith.constant 0 : index
    %c0_138 = arith.constant 0 : index
    %209 = vector.load %arg14[%c1_135, %c0_136, %c0_137, %c0_138] : memref<2x4x8x32xbf16, #tpu.memory_space<vmem>>, vector<1x4x8x32xbf16>
    %210 = vector.shape_cast %209 : vector<1x4x8x32xbf16> to vector<4x8x32xbf16>
    "tpu.trace_start"() <{level = 10 : i32, message = "hqe,hed->hqd"}> : () -> ()
    %cst_139 = arith.constant dense<0.000000e+00> : vector<4x5x32xf32>
    %211 = tpu.matmul %208, %210, %cst_139 {dimension_numbers = #tpu.dot_dimension_numbers<[2], [1], [1], [2], [0, 0, 0, 1, 1, 2], [0], [0]>} : vector<4x5x8xbf16>, vector<4x8x32xbf16>, vector<4x5x32xf32> -> vector<4x5x32xf32>
    "tpu.trace_stop"() : () -> ()
    %cst_140 = arith.constant dense<0.000000e+00> : vector<5x32xf32>
    %212 = vector.multi_reduction <add>, %211, %cst_140 [0] : vector<4x5x32xf32> to vector<5x32xf32>
    %c1_141 = arith.constant 1 : index
    %c0_142 = arith.constant 0 : index
    %c0_143 = arith.constant 0 : index
    %213 = vector.load %arg15[%c1_141, %c0_142, %c0_143] : memref<2x1x32xf32, #tpu.memory_space<vmem>>, vector<1x1x32xf32>
    %214 = vector.shape_cast %213 : vector<1x1x32xf32> to vector<1x32xf32>
    %215 = vector.broadcast %214 : vector<1x32xf32> to vector<5x32xf32>
    %216 = arith.addf %212, %215 : vector<5x32xf32>
    %217 = arith.addf %142, %216 : vector<5x32xf32>
    %c1_144 = arith.constant 1 : index
    %c0_145 = arith.constant 0 : index
    %c0_146 = arith.constant 0 : index
    %218 = vector.load %arg16[%c1_144, %c0_145, %c0_146] : memref<2x1x32xf32, #tpu.memory_space<vmem>>, vector<1x1x32xf32>
    %219 = vector.shape_cast %218 : vector<1x1x32xf32> to vector<1x32xf32>
    %c1_147 = arith.constant 1 : index
    %c0_148 = arith.constant 0 : index
    %c0_149 = arith.constant 0 : index
    %220 = vector.load %arg17[%c1_147, %c0_148, %c0_149] : memref<2x1x32xf32, #tpu.memory_space<vmem>>, vector<1x1x32xf32>
    %221 = vector.shape_cast %220 : vector<1x1x32xf32> to vector<1x32xf32>
    %cst_150 = arith.constant dense<0.000000e+00> : vector<5xf32>
    %222 = vector.multi_reduction <add>, %217, %cst_150 [1] : vector<5x32xf32> to vector<5xf32>
    %223 = vector.shape_cast %222 : vector<5xf32> to vector<5x1xf32>
    %cst_151 = arith.constant 3.200000e+01 : f32
    %224 = vector.broadcast %cst_151 : f32 to vector<5x1xf32>
    %225 = arith.divf %223, %224 : vector<5x1xf32>
    %226 = vector.broadcast %225 : vector<5x1xf32> to vector<5x32xf32>
    %227 = arith.subf %217, %226 : vector<5x32xf32>
    %228 = arith.mulf %227, %227 : vector<5x32xf32>
    %cst_152 = arith.constant dense<0.000000e+00> : vector<5xf32>
    %229 = vector.multi_reduction <add>, %228, %cst_152 [1] : vector<5x32xf32> to vector<5xf32>
    %230 = vector.shape_cast %229 : vector<5xf32> to vector<5x1xf32>
    %cst_153 = arith.constant 3.200000e+01 : f32
    %231 = vector.broadcast %cst_153 : f32 to vector<5x1xf32>
    %232 = arith.divf %230, %231 : vector<5x1xf32>
    %cst_154 = arith.constant 9.99999997E-7 : f32
    %233 = vector.broadcast %cst_154 : f32 to vector<5x1xf32>
    %234 = arith.addf %232, %233 : vector<5x1xf32>
    %235 = math.rsqrt %234 : vector<5x1xf32>
    %236 = vector.broadcast %235 : vector<5x1xf32> to vector<5x32xf32>
    %237 = arith.mulf %227, %236 : vector<5x32xf32>
    %238 = vector.broadcast %219 : vector<1x32xf32> to vector<5x32xf32>
    %239 = arith.mulf %237, %238 : vector<5x32xf32>
    %240 = vector.broadcast %221 : vector<1x32xf32> to vector<5x32xf32>
    %241 = arith.addf %239, %240 : vector<5x32xf32>
    %242 = arith.truncf %241 : vector<5x32xf32> to vector<5x32xbf16>
    %c1_155 = arith.constant 1 : index
    %c0_156 = arith.constant 0 : index
    %c0_157 = arith.constant 0 : index
    %243 = vector.load %arg18[%c1_155, %c0_156, %c0_157] : memref<2x32x64xbf16, #tpu.memory_space<vmem>>, vector<1x32x64xbf16>
    %244 = vector.shape_cast %243 : vector<1x32x64xbf16> to vector<32x64xbf16>
    %cst_158 = arith.constant dense<0.000000e+00> : vector<5x64xf32>
    %245 = tpu.matmul %242, %244, %cst_158 {dimension_numbers = #tpu.dot_dimension_numbers<[1], [0], [0], [1], [0, 0, 1, 1], [], []>} : vector<5x32xbf16>, vector<32x64xbf16>, vector<5x64xf32> -> vector<5x64xf32>
    %c1_159 = arith.constant 1 : index
    %c0_160 = arith.constant 0 : index
    %c0_161 = arith.constant 0 : index
    %246 = vector.load %arg19[%c1_159, %c0_160, %c0_161] : memref<2x1x64xf32, #tpu.memory_space<vmem>>, vector<1x1x64xf32>
    %247 = vector.shape_cast %246 : vector<1x1x64xf32> to vector<1x64xf32>
    %248 = vector.broadcast %247 : vector<1x64xf32> to vector<5x64xf32>
    %249 = arith.addf %245, %248 : vector<5x64xf32>
    %cst_162 = arith.constant 5.000000e-01 : f32
    %250 = vector.broadcast %cst_162 : f32 to vector<5x64xf32>
    %251 = arith.mulf %250, %249 : vector<5x64xf32>
    %cst_163 = arith.constant 4.471500e-02 : f32
    %252 = vector.broadcast %cst_163 : f32 to vector<5x64xf32>
    %253 = arith.mulf %252, %249 : vector<5x64xf32>
    %254 = arith.mulf %253, %249 : vector<5x64xf32>
    %255 = arith.mulf %254, %249 : vector<5x64xf32>
    %256 = arith.addf %249, %255 : vector<5x64xf32>
    %cst_164 = arith.constant 0.797884583 : f32
    %257 = vector.broadcast %cst_164 : f32 to vector<5x64xf32>
    %258 = arith.mulf %257, %256 : vector<5x64xf32>
    %259 = math.tanh %258 : vector<5x64xf32>
    %cst_165 = arith.constant 1.000000e+00 : f32
    %260 = vector.broadcast %cst_165 : f32 to vector<5x64xf32>
    %261 = arith.addf %260, %259 : vector<5x64xf32>
    %262 = arith.mulf %251, %261 : vector<5x64xf32>
    %263 = arith.truncf %262 : vector<5x64xf32> to vector<5x64xbf16>
    %c1_166 = arith.constant 1 : index
    %c0_167 = arith.constant 0 : index
    %c0_168 = arith.constant 0 : index
    %264 = vector.load %arg20[%c1_166, %c0_167, %c0_168] : memref<2x64x32xbf16, #tpu.memory_space<vmem>>, vector<1x64x32xbf16>
    %265 = vector.shape_cast %264 : vector<1x64x32xbf16> to vector<64x32xbf16>
    %cst_169 = arith.constant dense<0.000000e+00> : vector<5x32xf32>
    %266 = tpu.matmul %263, %265, %cst_169 {dimension_numbers = #tpu.dot_dimension_numbers<[1], [0], [0], [1], [0, 0, 1, 1], [], []>} : vector<5x64xbf16>, vector<64x32xbf16>, vector<5x32xf32> -> vector<5x32xf32>
    %c1_170 = arith.constant 1 : index
    %c0_171 = arith.constant 0 : index
    %c0_172 = arith.constant 0 : index
    %267 = vector.load %arg21[%c1_170, %c0_171, %c0_172] : memref<2x1x32xf32, #tpu.memory_space<vmem>>, vector<1x1x32xf32>
    %268 = vector.shape_cast %267 : vector<1x1x32xf32> to vector<1x32xf32>
    %269 = vector.broadcast %268 : vector<1x32xf32> to vector<5x32xf32>
    %270 = arith.addf %266, %269 : vector<5x32xf32>
    %271 = arith.addf %217, %270 : vector<5x32xf32>
    %cst_173 = arith.constant dense<0.000000e+00> : vector<5xf32>
    %272 = vector.multi_reduction <add>, %271, %cst_173 [1] : vector<5x32xf32> to vector<5xf32>
    %273 = vector.shape_cast %272 : vector<5xf32> to vector<5x1xf32>
    %cst_174 = arith.constant 3.200000e+01 : f32
    %274 = vector.broadcast %cst_174 : f32 to vector<5x1xf32>
    %275 = arith.divf %273, %274 : vector<5x1xf32>
    %276 = vector.broadcast %275 : vector<5x1xf32> to vector<5x32xf32>
    %277 = arith.subf %271, %276 : vector<5x32xf32>
    %278 = arith.mulf %277, %277 : vector<5x32xf32>
    %cst_175 = arith.constant dense<0.000000e+00> : vector<5xf32>
    %279 = vector.multi_reduction <add>, %278, %cst_175 [1] : vector<5x32xf32> to vector<5xf32>
    %280 = vector.shape_cast %279 : vector<5xf32> to vector<5x1xf32>
    %cst_176 = arith.constant 3.200000e+01 : f32
    %281 = vector.broadcast %cst_176 : f32 to vector<5x1xf32>
    %282 = arith.divf %280, %281 : vector<5x1xf32>
    %cst_177 = arith.constant 9.99999997E-7 : f32
    %283 = vector.broadcast %cst_177 : f32 to vector<5x1xf32>
    %284 = arith.addf %282, %283 : vector<5x1xf32>
    %285 = math.rsqrt %284 : vector<5x1xf32>
    %286 = vector.broadcast %285 : vector<5x1xf32> to vector<5x32xf32>
    %287 = arith.mulf %277, %286 : vector<5x32xf32>
    %288 = vector.broadcast %4 : vector<1x32xf32> to vector<5x32xf32>
    %289 = arith.mulf %287, %288 : vector<5x32xf32>
    %290 = vector.broadcast %5 : vector<1x32xf32> to vector<5x32xf32>
    %291 = arith.addf %289, %290 : vector<5x32xf32>
    %cst_178 = arith.constant dense<0.000000e+00> : vector<5xf32>
    %292 = vector.multi_reduction <add>, %291, %cst_178 [1] : vector<5x32xf32> to vector<5xf32>
    %293 = vector.shape_cast %292 : vector<5xf32> to vector<5x1xf32>
    %cst_179 = arith.constant 3.200000e+01 : f32
    %294 = vector.broadcast %cst_179 : f32 to vector<5x1xf32>
    %295 = arith.divf %293, %294 : vector<5x1xf32>
    %296 = vector.broadcast %295 : vector<5x1xf32> to vector<5x32xf32>
    %297 = arith.subf %291, %296 : vector<5x32xf32>
    %298 = arith.mulf %297, %297 : vector<5x32xf32>
    %cst_180 = arith.constant dense<0.000000e+00> : vector<5xf32>
    %299 = vector.multi_reduction <add>, %298, %cst_180 [1] : vector<5x32xf32> to vector<5xf32>
    %300 = vector.shape_cast %299 : vector<5xf32> to vector<5x1xf32>
    %cst_181 = arith.constant 3.200000e+01 : f32
    %301 = vector.broadcast %cst_181 : f32 to vector<5x1xf32>
    %302 = arith.divf %300, %301 : vector<5x1xf32>
    %cst_182 = arith.constant 9.99999997E-7 : f32
    %303 = vector.broadcast %cst_182 : f32 to vector<5x1xf32>
    %304 = arith.addf %302, %303 : vector<5x1xf32>
    %305 = math.rsqrt %304 : vector<5x1xf32>
    %306 = vector.broadcast %305 : vector<5x1xf32> to vector<5x32xf32>
    %307 = arith.mulf %297, %306 : vector<5x32xf32>
    %308 = vector.broadcast %4 : vector<1x32xf32> to vector<5x32xf32>
    %309 = arith.mulf %307, %308 : vector<5x32xf32>
    %310 = vector.broadcast %5 : vector<1x32xf32> to vector<5x32xf32>
    %311 = arith.addf %309, %310 : vector<5x32xf32>
    %c0_183 = arith.constant 0 : index
    %c0_184 = arith.constant 0 : index
    %c0_185 = arith.constant 0 : index
    %312 = vector.load %arg24[%c0_183, %c0_184, %c0_185] : memref<1x5x32xf32, #tpu.memory_space<vmem>>, vector<1x5x32xf32>
    %313 = vector.shape_cast %312 : vector<1x5x32xf32> to vector<5x32xf32>
    %314 = vector.shape_cast %311 : vector<5x32xf32> to vector<1x5x32xf32>
    tpu.vector_store %arg24[%c0_183, %c0_184, %c0_185], %314 {strides = array<i32>} : memref<1x5x32xf32, #tpu.memory_space<vmem>>, vector<1x5x32xf32>,
    return
  }
  func.func @transform_0(%arg0: i32) -> (i32, i32, i32) {
    %c0_i32 = arith.constant 0 : i32
    %c0_i32_0 = arith.constant 0 : i32
    %c0_i32_1 = arith.constant 0 : i32
    return %arg0, %c0_i32, %c0_i32_0 : i32, i32, i32
  }
  func.func @transform_1(%arg0: i32) -> (i32, i32) {
    %c0_i32 = arith.constant 0 : i32
    %c0_i32_0 = arith.constant 0 : i32
    %c0_i32_1 = arith.constant 0 : i32
    return %c0_i32, %c0_i32_0 : i32, i32
  }
  func.func @transform_2(%arg0: i32) -> (i32, i32) {
    %c0_i32 = arith.constant 0 : i32
    %c0_i32_0 = arith.constant 0 : i32
    %c0_i32_1 = arith.constant 0 : i32
    return %c0_i32, %c0_i32_0 : i32, i32
  }
  func.func @transform_3(%arg0: i32) -> (i32, i32) {
    %c0_i32 = arith.constant 0 : i32
    %c0_i32_0 = arith.constant 0 : i32
    %c0_i32_1 = arith.constant 0 : i32
    return %c0_i32, %c0_i32_0 : i32, i32
  }
  func.func @transform_4(%arg0: i32) -> (i32, i32) {
    %c0_i32 = arith.constant 0 : i32
    %c0_i32_0 = arith.constant 0 : i32
    %c0_i32_1 = arith.constant 0 : i32
    return %c0_i32, %c0_i32_0 : i32, i32
  }
  func.func @transform_5(%arg0: i32) -> (i32, i32, i32) {
    %c0_i32 = arith.constant 0 : i32
    %c0_i32_0 = arith.constant 0 : i32
    %c0_i32_1 = arith.constant 0 : i32
    %c0_i32_2 = arith.constant 0 : i32
    return %c0_i32, %c0_i32_0, %c0_i32_1 : i32, i32, i32
  }
  func.func @transform_6(%arg0: i32) -> (i32, i32, i32) {
    %c0_i32 = arith.constant 0 : i32
    %c0_i32_0 = arith.constant 0 : i32
    %c0_i32_1 = arith.constant 0 : i32
    %c0_i32_2 = arith.constant 0 : i32
    return %c0_i32, %c0_i32_0, %c0_i32_1 : i32, i32, i32
  }
  func.func @transform_7(%arg0: i32) -> (i32, i32, i32, i32) {
    %c0_i32 = arith.constant 0 : i32
    %c0_i32_0 = arith.constant 0 : i32
    %c0_i32_1 = arith.constant 0 : i32
    %c0_i32_2 = arith.constant 0 : i32
    %c0_i32_3 = arith.constant 0 : i32
    return %c0_i32, %c0_i32_0, %c0_i32_1, %c0_i32_2 : i32, i32, i32, i32
  }
  func.func @transform_8(%arg0: i32) -> (i32, i32, i32, i32) {
    %c0_i32 = arith.constant 0 : i32
    %c0_i32_0 = arith.constant 0 : i32
    %c0_i32_1 = arith.constant 0 : i32
    %c0_i32_2 = arith.constant 0 : i32
    %c0_i32_3 = arith.constant 0 : i32
    return %c0_i32, %c0_i32_0, %c0_i32_1, %c0_i32_2 : i32, i32, i32, i32
  }
  func.func @transform_9(%arg0: i32) -> (i32, i32, i32, i32) {
    %c0_i32 = arith.constant 0 : i32
    %c0_i32_0 = arith.constant 0 : i32
    %c0_i32_1 = arith.constant 0 : i32
    %c0_i32_2 = arith.constant 0 : i32
    %c0_i32_3 = arith.constant 0 : i32
    return %c0_i32, %c0_i32_0, %c0_i32_1, %c0_i32_2 : i32, i32, i32, i32
  }
  func.func @transform_10(%arg0: i32) -> (i32, i32, i32, i32) {
    %c0_i32 = arith.constant 0 : i32
    %c0_i32_0 = arith.constant 0 : i32
    %c0_i32_1 = arith.constant 0 : i32
    %c0_i32_2 = arith.constant 0 : i32
    %c0_i32_3 = arith.constant 0 : i32
    return %c0_i32, %c0_i32_0, %c0_i32_1, %c0_i32_2 : i32, i32, i32, i32
  }
  func.func @transform_11(%arg0: i32) -> (i32, i32, i32, i32) {
    %c0_i32 = arith.constant 0 : i32
    %c0_i32_0 = arith.constant 0 : i32
    %c0_i32_1 = arith.constant 0 : i32
    %c0_i32_2 = arith.constant 0 : i32
    %c0_i32_3 = arith.constant 0 : i32
    return %c0_i32, %c0_i32_0, %c0_i32_1, %c0_i32_2 : i32, i32, i32, i32
  }
  func.func @transform_12(%arg0: i32) -> (i32, i32, i32, i32) {
    %c0_i32 = arith.constant 0 : i32
    %c0_i32_0 = arith.constant 0 : i32
    %c0_i32_1 = arith.constant 0 : i32
    %c0_i32_2 = arith.constant 0 : i32
    %c0_i32_3 = arith.constant 0 : i32
    return %c0_i32, %c0_i32_0, %c0_i32_1, %c0_i32_2 : i32, i32, i32, i32
  }
  func.func @transform_13(%arg0: i32) -> (i32, i32, i32, i32) {
    %c0_i32 = arith.constant 0 : i32
    %c0_i32_0 = arith.constant 0 : i32
    %c0_i32_1 = arith.constant 0 : i32
    %c0_i32_2 = arith.constant 0 : i32
    %c0_i32_3 = arith.constant 0 : i32
    return %c0_i32, %c0_i32_0, %c0_i32_1, %c0_i32_2 : i32, i32, i32, i32
  }
  func.func @transform_14(%arg0: i32) -> (i32, i32, i32) {
    %c0_i32 = arith.constant 0 : i32
    %c0_i32_0 = arith.constant 0 : i32
    %c0_i32_1 = arith.constant 0 : i32
    %c0_i32_2 = arith.constant 0 : i32
    return %c0_i32, %c0_i32_0, %c0_i32_1 : i32, i32, i32
  }
  func.func @transform_15(%arg0: i32) -> (i32, i32, i32) {
    %c0_i32 = arith.constant 0 : i32
    %c0_i32_0 = arith.constant 0 : i32
    %c0_i32_1 = arith.constant 0 : i32
    %c0_i32_2 = arith.constant 0 : i32
    return %c0_i32, %c0_i32_0, %c0_i32_1 : i32, i32, i32
  }
  func.func @transform_16(%arg0: i32) -> (i32, i32, i32) {
    %c0_i32 = arith.constant 0 : i32
    %c0_i32_0 = arith.constant 0 : i32
    %c0_i32_1 = arith.constant 0 : i32
    %c0_i32_2 = arith.constant 0 : i32
    return %c0_i32, %c0_i32_0, %c0_i32_1 : i32, i32, i32
  }
  func.func @transform_17(%arg0: i32) -> (i32, i32, i32) {
    %c0_i32 = arith.constant 0 : i32
    %c0_i32_0 = arith.constant 0 : i32
    %c0_i32_1 = arith.constant 0 : i32
    %c0_i32_2 = arith.constant 0 : i32
    return %c0_i32, %c0_i32_0, %c0_i32_1 : i32, i32, i32
  }
  func.func @transform_18(%arg0: i32) -> (i32, i32, i32) {
    %c0_i32 = arith.constant 0 : i32
    %c0_i32_0 = arith.constant 0 : i32
    %c0_i32_1 = arith.constant 0 : i32
    %c0_i32_2 = arith.constant 0 : i32
    return %c0_i32, %c0_i32_0, %c0_i32_1 : i32, i32, i32
  }
  func.func @transform_19(%arg0: i32) -> (i32, i32, i32) {
    %c0_i32 = arith.constant 0 : i32
    %c0_i32_0 = arith.constant 0 : i32
    %c0_i32_1 = arith.constant 0 : i32
    %c0_i32_2 = arith.constant 0 : i32
    return %c0_i32, %c0_i32_0, %c0_i32_1 : i32, i32, i32
  }
  func.func @transform_20(%arg0: i32) -> (i32, i32, i32) {
    %c0_i32 = arith.constant 0 : i32
    %c0_i32_0 = arith.constant 0 : i32
    %c0_i32_1 = arith.constant 0 : i32
    %c0_i32_2 = arith.constant 0 : i32
    return %c0_i32, %c0_i32_0, %c0_i32_1 : i32, i32, i32
  }
  func.func @transform_21(%arg0: i32) -> (i32, i32) {
    %c0_i32 = arith.constant 0 : i32
    %c0_i32_0 = arith.constant 0 : i32
    %c0_i32_1 = arith.constant 0 : i32
    return %c0_i32, %c0_i32_0 : i32, i32
  }
  func.func @transform_22(%arg0: i32) -> (i32, i32) {
    %c0_i32 = arith.constant 0 : i32
    %c0_i32_0 = arith.constant 0 : i32
    %c0_i32_1 = arith.constant 0 : i32
    return %c0_i32, %c0_i32_0 : i32, i32
  }
  func.func @transform_23(%arg0: i32) -> (i32, i32, i32) {
    %c0_i32 = arith.constant 0 : i32
    %c0_i32_0 = arith.constant 0 : i32
    %c0_i32_1 = arith.constant 0 : i32
    return %arg0, %c0_i32, %c0_i32_0 : i32, i32, i32
  }
}

</mosaic_0001>

<llo_original>
// kernel: tpu_custom_call.1
$region0: #{tpu_custom_call.1}
  #allocation0 [shape = 'u32[]', space=smem, size = 0x4, offset = 0x4, fixed_abs, tag = 'smem constant byte address 0x4 - core index']
  #allocation1 [shape = 'u32[72,128]{1,0:T(1,128)}', space=vmem, size = 0x9000, scoped, tag = 'internal scratch']
  %s0 = inlined_call_operand.vmem [shape: bf16[2,4,768], index: 0, kind: input, shape index: {}]
  %s1 = inlined_call_operand.vmem [shape: f32[1,32], index: 1, kind: input, shape index: {}]
  %s2 = inlined_call_operand.vmem [shape: f32[5,32], index: 2, kind: input, shape index: {}]
  %s3 = inlined_call_operand.vmem [shape: bf16[768,32], index: 3, kind: input, shape index: {}]
  %s4 = inlined_call_operand.vmem [shape: f32[1,32], index: 4, kind: input, shape index: {}]
  %s5 = inlined_call_operand.vmem [shape: f32[2,1,32], index: 5, kind: input, shape index: {}]
  %s6 = inlined_call_operand.vmem [shape: f32[2,1,32], index: 6, kind: input, shape index: {}]
  %s7 = inlined_call_operand.vmem [shape: bf16[2,4,32,8], index: 7, kind: input, shape index: {}]
  %s8 = inlined_call_operand.vmem [shape: bf16[2,4,32,8], index: 8, kind: input, shape index: {}]
  %s9 = inlined_call_operand.vmem [shape: bf16[2,4,32,8], index: 9, kind: input, shape index: {}]
  %s10 = inlined_call_operand.vmem [shape: f32[2,4,1,8], index: 10, kind: input, shape index: {}]
  %s11 = inlined_call_operand.vmem [shape: f32[2,4,1,8], index: 11, kind: input, shape index: {}]
  %s12 = inlined_call_operand.vmem [shape: f32[2,4,1,8], index: 12, kind: input, shape index: {}]
  %s13 = inlined_call_operand.vmem [shape: bf16[2,4,8,32], index: 13, kind: input, shape index: {}]
  %s14 = inlined_call_operand.vmem [shape: f32[2,1,32], index: 14, kind: input, shape index: {}]
  %s15 = inlined_call_operand.vmem [shape: f32[2,1,32], index: 15, kind: input, shape index: {}]
  %s16 = inlined_call_operand.vmem [shape: f32[2,1,32], index: 16, kind: input, shape index: {}]
  %s17 = inlined_call_operand.vmem [shape: bf16[2,32,64], index: 17, kind: input, shape index: {}]
  %s18 = inlined_call_operand.vmem [shape: f32[2,1,64], index: 18, kind: input, shape index: {}]
  %s19 = inlined_call_operand.vmem [shape: bf16[2,64,32], index: 19, kind: input, shape index: {}]
  %s20 = inlined_call_operand.vmem [shape: f32[2,1,32], index: 20, kind: input, shape index: {}]
  %s21 = inlined_call_operand.vmem [shape: f32[1,32], index: 21, kind: input, shape index: {}]
  %s22 = inlined_call_operand.vmem [shape: f32[1,32], index: 22, kind: input, shape index: {}]
  %s23 = inlined_call_operand.vmem [shape: f32[2,5,32], index: 23, kind: output, shape index: {}]
  %s24 = sld [smem:[#allocation0]]
  $region125: #{tpu_custom_call.1} parent=0
    _
  %s26 = ssub.s32 1, %s24
  %s27 = scalar_select 0, %s26, %s24
  loop: start=0, step=1, limit=4
  $region2: #{tpu_custom_call.1} parent=0 // loop_pre_header
    _
  $region3: #{tpu_custom_call.1} parent=0 // loop_header
    %s29 = sphi 0, %s33
    %p30 = scmp.ge.s32.totalorder %s29, 4
    %s39 = sphi 0, %s41
    %s42 = sphi 0, %s39
    %s43 = sphi 0, %s42
    %s59 = sphi 0, %s43
    %s63 = sphi 0, %s63
    %s65 = sphi 0, %s63
    %s66 = sphi 0, %s65
    %s80 = sphi 0, %s66
    %s84 = sphi 0, %s84
    %s86 = sphi 0, %s84
    %s87 = sphi 0, %s86
    %s101 = sphi 0, %s87
    %s105 = sphi 0, %s105
    %s107 = sphi 0, %s105
    %s108 = sphi 0, %s107
    %s122 = sphi 0, %s108
    %s126 = sphi 0, %s126
    %s128 = sphi 0, %s126
    %s129 = sphi 0, %s128
    %s143 = sphi 0, %s129
    %s147 = sphi 0, %s147
    %s149 = sphi 0, %s147
    %s150 = sphi 0, %s149
    %s164 = sphi 0, %s150
    %s168 = sphi 0, %s168
    %s170 = sphi 0, %s168
    %s171 = sphi 0, %s170
    %s185 = sphi 0, %s171
    %s189 = sphi 0, %s189
    %s191 = sphi 0, %s189
    %s192 = sphi 0, %s191
    %s206 = sphi 0, %s192
    %s210 = sphi 0, %s210
    %s212 = sphi 0, %s210
    %s213 = sphi 0, %s212
    %s227 = sphi 0, %s213
    %s231 = sphi 0, %s231
    %s233 = sphi 0, %s231
    %s234 = sphi 0, %s233
    %s248 = sphi 0, %s234
    %s252 = sphi 0, %s252
    %s254 = sphi 0, %s252
    %s255 = sphi 0, %s254
    %s269 = sphi 0, %s255
    %s273 = sphi 0, %s273
    %s275 = sphi 0, %s273
    %s276 = sphi 0, %s275
    %s290 = sphi 0, %s276
    %s294 = sphi 0, %s294
    %s296 = sphi 0, %s294
    %s297 = sphi 0, %s296
    %s311 = sphi 0, %s297
    %s315 = sphi 0, %s315
    %s317 = sphi 0, %s315
    %s318 = sphi 0, %s317
    %s332 = sphi 0, %s318
    %s336 = sphi 0, %s336
    %s338 = sphi 0, %s336
    %s339 = sphi 0, %s338
    %s353 = sphi 0, %s339
    %s357 = sphi 0, %s357
    %s359 = sphi 0, %s357
    %s360 = sphi 0, %s359
    %s374 = sphi 0, %s360
    %s378 = sphi 0, %s378
    %s380 = sphi 0, %s378
    %s381 = sphi 0, %s380
    %s395 = sphi 0, %s381
    %s399 = sphi 0, %s399
    %s401 = sphi 0, %s399
    %s402 = sphi 0, %s401
    %s416 = sphi 0, %s402
    %s420 = sphi 0, %s420
    %s422 = sphi 0, %s420
    %s423 = sphi 0, %s422
    %s437 = sphi 0, %s423
    %s441 = sphi 0, %s441
    %s443 = sphi 0, %s441
    %s444 = sphi 0, %s443
    %s458 = sphi 0, %s444
    %s462 = sphi 0, %s462
    %s464 = sphi 0, %s462
    %s465 = sphi 0, %s464
    %s479 = sphi 0, %s465
    %s483 = sphi 0, %s483
    %s485 = sphi 0, %s483
    %s486 = sphi 0, %s485
    %s500 = sphi 0, %s486
    %s504 = sphi 0, %s504
    %s506 = sphi 0, %s504
    %s507 = sphi 0, %s506
    %s521 = sphi 0, %s507
    %s527 = sphi 0, %s529
    %s530 = sphi 0, %s527
    %s531 = sphi 0, %s530
    %s547 = sphi 0, %s531
  $region4: #{tpu_custom_call.1} parent=0 // loop_header_branch
    %32 = sbr.rel (%p30) target = $region8
  $region5: #{tpu_custom_call.1} parent=0 // loop_body
    %s34 = ssub.s32 %s29, 1
    %s35 = ssub.s32 %s29, 2
    %s36 = sadd.s32 %s29, 1
    %s37 = ssub.s32 %s29, %s36
    %p38 = scmp.eq.s32.totalorder %s37, 0
    %s40 = sadd.s32 %s39, 1
    %s41 = scalar_select %p38, %s39, %s40
    %p44 = pneg %p38
    %p45 = scmp.eq.s32.totalorder %s29, 1
    %p46 = por %p44, %p45
    %p47 = scmp.ne.s32.totalorder %s39, %s42
    %p48 = scmp.eq.s32.totalorder %s29, 0
    %p49 = por %p47, %p48
    %p50 = scmp.ne.s32.totalorder %s39, %s42
    %p51 = scmp.eq.s32.totalorder %s34, 1
    %p52 = por %p50, %p51
    %p53 = scmp.ne.s32.totalorder %s42, %s43
    %p54 = scmp.eq.s32.totalorder %s34, 0
    %p55 = por %p53, %p54
    %p56 = scmp.ne.s32.totalorder %s42, %s43
    %p57 = scmp.eq.s32.totalorder %s35, 1
    %p58 = por %p56, %p57
    %p60 = scmp.ne.s32.totalorder %s43, %s59
    %p61 = scmp.eq.s32.totalorder %s35, 0
    %p62 = por %p60, %p61
    %s64 = sadd.s32 %s63, 1
    %p67 = scmp.eq.s32.totalorder %s29, 1
    %p68 = scmp.ne.s32.totalorder %s63, %s65
    %p69 = scmp.eq.s32.totalorder %s29, 0
    %p70 = por %p68, %p69
    %p71 = scmp.ne.s32.totalorder %s63, %s65
    %p72 = scmp.eq.s32.totalorder %s34, 1
    %p73 = por %p71, %p72
    %p74 = scmp.ne.s32.totalorder %s65, %s66
    %p75 = scmp.eq.s32.totalorder %s34, 0
    %p76 = por %p74, %p75
    %p77 = scmp.ne.s32.totalorder %s65, %s66
    %p78 = scmp.eq.s32.totalorder %s35, 1
    %p79 = por %p77, %p78
    %p81 = scmp.ne.s32.totalorder %s66, %s80
    %p82 = scmp.eq.s32.totalorder %s35, 0
    %p83 = por %p81, %p82
    %s85 = sadd.s32 %s84, 1
    %p88 = scmp.eq.s32.totalorder %s29, 1
    %p89 = scmp.ne.s32.totalorder %s84, %s86
    %p90 = scmp.eq.s32.totalorder %s29, 0
    %p91 = por %p89, %p90
    %p92 = scmp.ne.s32.totalorder %s84, %s86
    %p93 = scmp.eq.s32.totalorder %s34, 1
    %p94 = por %p92, %p93
    %p95 = scmp.ne.s32.totalorder %s86, %s87
    %p96 = scmp.eq.s32.totalorder %s34, 0
    %p97 = por %p95, %p96
    %p98 = scmp.ne.s32.totalorder %s86, %s87
    %p99 = scmp.eq.s32.totalorder %s35, 1
    %p100 = por %p98, %p99
    %p102 = scmp.ne.s32.totalorder %s87, %s101
    %p103 = scmp.eq.s32.totalorder %s35, 0
    %p104 = por %p102, %p103
    %s106 = sadd.s32 %s105, 1
    %p109 = scmp.eq.s32.totalorder %s29, 1
    %p110 = scmp.ne.s32.totalorder %s105, %s107
    %p111 = scmp.eq.s32.totalorder %s29, 0
    %p112 = por %p110, %p111
    %p113 = scmp.ne.s32.totalorder %s105, %s107
    %p114 = scmp.eq.s32.totalorder %s34, 1
    %p115 = por %p113, %p114
    %p116 = scmp.ne.s32.totalorder %s107, %s108
    %p117 = scmp.eq.s32.totalorder %s34, 0
    %p118 = por %p116, %p117
    %p119 = scmp.ne.s32.totalorder %s107, %s108
    %p120 = scmp.eq.s32.totalorder %s35, 1
    %p121 = por %p119, %p120
    %p123 = scmp.ne.s32.totalorder %s108, %s122
    %p124 = scmp.eq.s32.totalorder %s35, 0
    %p125 = por %p123, %p124
    %s127 = sadd.s32 %s126, 1
    %p130 = scmp.eq.s32.totalorder %s29, 1
    %p131 = scmp.ne.s32.totalorder %s126, %s128
    %p132 = scmp.eq.s32.totalorder %s29, 0
    %p133 = por %p131, %p132
    %p134 = scmp.ne.s32.totalorder %s126, %s128
    %p135 = scmp.eq.s32.totalorder %s34, 1
    %p136 = por %p134, %p135
    %p137 = scmp.ne.s32.totalorder %s128, %s129
    %p138 = scmp.eq.s32.totalorder %s34, 0
    %p139 = por %p137, %p138
    %p140 = scmp.ne.s32.totalorder %s128, %s129
    %p141 = scmp.eq.s32.totalorder %s35, 1
    %p142 = por %p140, %p141
    %p144 = scmp.ne.s32.totalorder %s129, %s143
    %p145 = scmp.eq.s32.totalorder %s35, 0
    %p146 = por %p144, %p145
    %s148 = sadd.s32 %s147, 1
    %p151 = scmp.eq.s32.totalorder %s29, 1
    %p152 = scmp.ne.s32.totalorder %s147, %s149
    %p153 = scmp.eq.s32.totalorder %s29, 0
    %p154 = por %p152, %p153
    %p155 = scmp.ne.s32.totalorder %s147, %s149
    %p156 = scmp.eq.s32.totalorder %s34, 1
    %p157 = por %p155, %p156
    %p158 = scmp.ne.s32.totalorder %s149, %s150
    %p159 = scmp.eq.s32.totalorder %s34, 0
    %p160 = por %p158, %p159
    %p161 = scmp.ne.s32.totalorder %s149, %s150
    %p162 = scmp.eq.s32.totalorder %s35, 1
    %p163 = por %p161, %p162
    %p165 = scmp.ne.s32.totalorder %s150, %s164
    %p166 = scmp.eq.s32.totalorder %s35, 0
    %p167 = por %p165, %p166
    %s169 = sadd.s32 %s168, 1
    %p172 = scmp.eq.s32.totalorder %s29, 1
    %p173 = scmp.ne.s32.totalorder %s168, %s170
    %p174 = scmp.eq.s32.totalorder %s29, 0
    %p175 = por %p173, %p174
    %p176 = scmp.ne.s32.totalorder %s168, %s170
    %p177 = scmp.eq.s32.totalorder %s34, 1
    %p178 = por %p176, %p177
    %p179 = scmp.ne.s32.totalorder %s170, %s171
    %p180 = scmp.eq.s32.totalorder %s34, 0
    %p181 = por %p179, %p180
    %p182 = scmp.ne.s32.totalorder %s170, %s171
    %p183 = scmp.eq.s32.totalorder %s35, 1
    %p184 = por %p182, %p183
    %p186 = scmp.ne.s32.totalorder %s171, %s185
    %p187 = scmp.eq.s32.totalorder %s35, 0
    %p188 = por %p186, %p187
    %s190 = sadd.s32 %s189, 1
    %p193 = scmp.eq.s32.totalorder %s29, 1
    %p194 = scmp.ne.s32.totalorder %s189, %s191
    %p195 = scmp.eq.s32.totalorder %s29, 0
    %p196 = por %p194, %p195
    %p197 = scmp.ne.s32.totalorder %s189, %s191
    %p198 = scmp.eq.s32.totalorder %s34, 1
    %p199 = por %p197, %p198
    %p200 = scmp.ne.s32.totalorder %s191, %s192
    %p201 = scmp.eq.s32.totalorder %s34, 0
    %p202 = por %p200, %p201
    %p203 = scmp.ne.s32.totalorder %s191, %s192
    %p204 = scmp.eq.s32.totalorder %s35, 1
    %p205 = por %p203, %p204
    %p207 = scmp.ne.s32.totalorder %s192, %s206
    %p208 = scmp.eq.s32.totalorder %s35, 0
    %p209 = por %p207, %p208
    %s211 = sadd.s32 %s210, 1
    %p214 = scmp.eq.s32.totalorder %s29, 1
    %p215 = scmp.ne.s32.totalorder %s210, %s212
    %p216 = scmp.eq.s32.totalorder %s29, 0
    %p217 = por %p215, %p216
    %p218 = scmp.ne.s32.totalorder %s210, %s212
    %p219 = scmp.eq.s32.totalorder %s34, 1
    %p220 = por %p218, %p219
    %p221 = scmp.ne.s32.totalorder %s212, %s213
    %p222 = scmp.eq.s32.totalorder %s34, 0
    %p223 = por %p221, %p222
    %p224 = scmp.ne.s32.totalorder %s212, %s213
    %p225 = scmp.eq.s32.totalorder %s35, 1
    %p226 = por %p224, %p225
    %p228 = scmp.ne.s32.totalorder %s213, %s227
    %p229 = scmp.eq.s32.totalorder %s35, 0
    %p230 = por %p228, %p229
    %s232 = sadd.s32 %s231, 1
    %p235 = scmp.eq.s32.totalorder %s29, 1
    %p236 = scmp.ne.s32.totalorder %s231, %s233
    %p237 = scmp.eq.s32.totalorder %s29, 0
    %p238 = por %p236, %p237
    %p239 = scmp.ne.s32.totalorder %s231, %s233
    %p240 = scmp.eq.s32.totalorder %s34, 1
    %p241 = por %p239, %p240
    %p242 = scmp.ne.s32.totalorder %s233, %s234
    %p243 = scmp.eq.s32.totalorder %s34, 0
    %p244 = por %p242, %p243
    %p245 = scmp.ne.s32.totalorder %s233, %s234
    %p246 = scmp.eq.s32.totalorder %s35, 1
    %p247 = por %p245, %p246
    %p249 = scmp.ne.s32.totalorder %s234, %s248
    %p250 = scmp.eq.s32.totalorder %s35, 0
    %p251 = por %p249, %p250
    %s253 = sadd.s32 %s252, 1
    %p256 = scmp.eq.s32.totalorder %s29, 1
    %p257 = scmp.ne.s32.totalorder %s252, %s254
    %p258 = scmp.eq.s32.totalorder %s29, 0
    %p259 = por %p257, %p258
    %p260 = scmp.ne.s32.totalorder %s252, %s254
    %p261 = scmp.eq.s32.totalorder %s34, 1
    %p262 = por %p260, %p261
    %p263 = scmp.ne.s32.totalorder %s254, %s255
    %p264 = scmp.eq.s32.totalorder %s34, 0
    %p265 = por %p263, %p264
    %p266 = scmp.ne.s32.totalorder %s254, %s255
    %p267 = scmp.eq.s32.totalorder %s35, 1
    %p268 = por %p266, %p267
    %p270 = scmp.ne.s32.totalorder %s255, %s269
    %p271 = scmp.eq.s32.totalorder %s35, 0
    %p272 = por %p270, %p271
    %s274 = sadd.s32 %s273, 1
    %p277 = scmp.eq.s32.totalorder %s29, 1
    %p278 = scmp.ne.s32.totalorder %s273, %s275
    %p279 = scmp.eq.s32.totalorder %s29, 0
    %p280 = por %p278, %p279
    %p281 = scmp.ne.s32.totalorder %s273, %s275
    %p282 = scmp.eq.s32.totalorder %s34, 1
    %p283 = por %p281, %p282
    %p284 = scmp.ne.s32.totalorder %s275, %s276
    %p285 = scmp.eq.s32.totalorder %s34, 0
    %p286 = por %p284, %p285
    %p287 = scmp.ne.s32.totalorder %s275, %s276
    %p288 = scmp.eq.s32.totalorder %s35, 1
    %p289 = por %p287, %p288
    %p291 = scmp.ne.s32.totalorder %s276, %s290
    %p292 = scmp.eq.s32.totalorder %s35, 0
    %p293 = por %p291, %p292
    %s295 = sadd.s32 %s294, 1
    %p298 = scmp.eq.s32.totalorder %s29, 1
    %p299 = scmp.ne.s32.totalorder %s294, %s296
    %p300 = scmp.eq.s32.totalorder %s29, 0
    %p301 = por %p299, %p300
    %p302 = scmp.ne.s32.totalorder %s294, %s296
    %p303 = scmp.eq.s32.totalorder %s34, 1
    %p304 = por %p302, %p303
    %p305 = scmp.ne.s32.totalorder %s296, %s297
    %p306 = scmp.eq.s32.totalorder %s34, 0
    %p307 = por %p305, %p306
    %p308 = scmp.ne.s32.totalorder %s296, %s297
    %p309 = scmp.eq.s32.totalorder %s35, 1
    %p310 = por %p308, %p309
    %p312 = scmp.ne.s32.totalorder %s297, %s311
    %p313 = scmp.eq.s32.totalorder %s35, 0
    %p314 = por %p312, %p313
    %s316 = sadd.s32 %s315, 1
    %p319 = scmp.eq.s32.totalorder %s29, 1
    %p320 = scmp.ne.s32.totalorder %s315, %s317
    %p321 = scmp.eq.s32.totalorder %s29, 0
    %p322 = por %p320, %p321
    %p323 = scmp.ne.s32.totalorder %s315, %s317
    %p324 = scmp.eq.s32.totalorder %s34, 1
    %p325 = por %p323, %p324
    %p326 = scmp.ne.s32.totalorder %s317, %s318
    %p327 = scmp.eq.s32.totalorder %s34, 0
    %p328 = por %p326, %p327
    %p329 = scmp.ne.s32.totalorder %s317, %s318
    %p330 = scmp.eq.s32.totalorder %s35, 1
    %p331 = por %p329, %p330
    %p333 = scmp.ne.s32.totalorder %s318, %s332
    %p334 = scmp.eq.s32.totalorder %s35, 0
    %p335 = por %p333, %p334
    %s337 = sadd.s32 %s336, 1
    %p340 = scmp.eq.s32.totalorder %s29, 1
    %p341 = scmp.ne.s32.totalorder %s336, %s338
    %p342 = scmp.eq.s32.totalorder %s29, 0
    %p343 = por %p341, %p342
    %p344 = scmp.ne.s32.totalorder %s336, %s338
    %p345 = scmp.eq.s32.totalorder %s34, 1
    %p346 = por %p344, %p345
    %p347 = scmp.ne.s32.totalorder %s338, %s339
    %p348 = scmp.eq.s32.totalorder %s34, 0
    %p349 = por %p347, %p348
    %p350 = scmp.ne.s32.totalorder %s338, %s339
    %p351 = scmp.eq.s32.totalorder %s35, 1
    %p352 = por %p350, %p351
    %p354 = scmp.ne.s32.totalorder %s339, %s353
    %p355 = scmp.eq.s32.totalorder %s35, 0
    %p356 = por %p354, %p355
    %s358 = sadd.s32 %s357, 1
    %p361 = scmp.eq.s32.totalorder %s29, 1
    %p362 = scmp.ne.s32.totalorder %s357, %s359
    %p363 = scmp.eq.s32.totalorder %s29, 0
    %p364 = por %p362, %p363
    %p365 = scmp.ne.s32.totalorder %s357, %s359
    %p366 = scmp.eq.s32.totalorder %s34, 1
    %p367 = por %p365, %p366
    %p368 = scmp.ne.s32.totalorder %s359, %s360
    %p369 = scmp.eq.s32.totalorder %s34, 0
    %p370 = por %p368, %p369
    %p371 = scmp.ne.s32.totalorder %s359, %s360
    %p372 = scmp.eq.s32.totalorder %s35, 1
    %p373 = por %p371, %p372
    %p375 = scmp.ne.s32.totalorder %s360, %s374
    %p376 = scmp.eq.s32.totalorder %s35, 0
    %p377 = por %p375, %p376
    %s379 = sadd.s32 %s378, 1
    %p382 = scmp.eq.s32.totalorder %s29, 1
    %p383 = scmp.ne.s32.totalorder %s378, %s380
    %p384 = scmp.eq.s32.totalorder %s29, 0
    %p385 = por %p383, %p384
    %p386 = scmp.ne.s32.totalorder %s378, %s380
    %p387 = scmp.eq.s32.totalorder %s34, 1
    %p388 = por %p386, %p387
    %p389 = scmp.ne.s32.totalorder %s380, %s381
    %p390 = scmp.eq.s32.totalorder %s34, 0
    %p391 = por %p389, %p390
    %p392 = scmp.ne.s32.totalorder %s380, %s381
    %p393 = scmp.eq.s32.totalorder %s35, 1
    %p394 = por %p392, %p393
    %p396 = scmp.ne.s32.totalorder %s381, %s395
    %p397 = scmp.eq.s32.totalorder %s35, 0
    %p398 = por %p396, %p397
    %s400 = sadd.s32 %s399, 1
    %p403 = scmp.eq.s32.totalorder %s29, 1
    %p404 = scmp.ne.s32.totalorder %s399, %s401
    %p405 = scmp.eq.s32.totalorder %s29, 0
    %p406 = por %p404, %p405
    %p407 = scmp.ne.s32.totalorder %s399, %s401
    %p408 = scmp.eq.s32.totalorder %s34, 1
    %p409 = por %p407, %p408
    %p410 = scmp.ne.s32.totalorder %s401, %s402
    %p411 = scmp.eq.s32.totalorder %s34, 0
    %p412 = por %p410, %p411
    %p413 = scmp.ne.s32.totalorder %s401, %s402
    %p414 = scmp.eq.s32.totalorder %s35, 1
    %p415 = por %p413, %p414
    %p417 = scmp.ne.s32.totalorder %s402, %s416
    %p418 = scmp.eq.s32.totalorder %s35, 0
    %p419 = por %p417, %p418
    %s421 = sadd.s32 %s420, 1
    %p424 = scmp.eq.s32.totalorder %s29, 1
    %p425 = scmp.ne.s32.totalorder %s420, %s422
    %p426 = scmp.eq.s32.totalorder %s29, 0
    %p427 = por %p425, %p426
    %p428 = scmp.ne.s32.totalorder %s420, %s422
    %p429 = scmp.eq.s32.totalorder %s34, 1
    %p430 = por %p428, %p429
    %p431 = scmp.ne.s32.totalorder %s422, %s423
    %p432 = scmp.eq.s32.totalorder %s34, 0
    %p433 = por %p431, %p432
    %p434 = scmp.ne.s32.totalorder %s422, %s423
    %p435 = scmp.eq.s32.totalorder %s35, 1
    %p436 = por %p434, %p435
    %p438 = scmp.ne.s32.totalorder %s423, %s437
    %p439 = scmp.eq.s32.totalorder %s35, 0
    %p440 = por %p438, %p439
    %s442 = sadd.s32 %s441, 1
    %p445 = scmp.eq.s32.totalorder %s29, 1
    %p446 = scmp.ne.s32.totalorder %s441, %s443
    %p447 = scmp.eq.s32.totalorder %s29, 0
    %p448 = por %p446, %p447
    %p449 = scmp.ne.s32.totalorder %s441, %s443
    %p450 = scmp.eq.s32.totalorder %s34, 1
    %p451 = por %p449, %p450
    %p452 = scmp.ne.s32.totalorder %s443, %s444
    %p453 = scmp.eq.s32.totalorder %s34, 0
    %p454 = por %p452, %p453
    %p455 = scmp.ne.s32.totalorder %s443, %s444
    %p456 = scmp.eq.s32.totalorder %s35, 1
    %p457 = por %p455, %p456
    %p459 = scmp.ne.s32.totalorder %s444, %s458
    %p460 = scmp.eq.s32.totalorder %s35, 0
    %p461 = por %p459, %p460
    %s463 = sadd.s32 %s462, 1
    %p466 = scmp.eq.s32.totalorder %s29, 1
    %p467 = scmp.ne.s32.totalorder %s462, %s464
    %p468 = scmp.eq.s32.totalorder %s29, 0
    %p469 = por %p467, %p468
    %p470 = scmp.ne.s32.totalorder %s462, %s464
    %p471 = scmp.eq.s32.totalorder %s34, 1
    %p472 = por %p470, %p471
    %p473 = scmp.ne.s32.totalorder %s464, %s465
    %p474 = scmp.eq.s32.totalorder %s34, 0
    %p475 = por %p473, %p474
    %p476 = scmp.ne.s32.totalorder %s464, %s465
    %p477 = scmp.eq.s32.totalorder %s35, 1
    %p478 = por %p476, %p477
    %p480 = scmp.ne.s32.totalorder %s465, %s479
    %p481 = scmp.eq.s32.totalorder %s35, 0
    %p482 = por %p480, %p481
    %s484 = sadd.s32 %s483, 1
    %p487 = scmp.eq.s32.totalorder %s29, 1
    %p488 = scmp.ne.s32.totalorder %s483, %s485
    %p489 = scmp.eq.s32.totalorder %s29, 0
    %p490 = por %p488, %p489
    %p491 = scmp.ne.s32.totalorder %s483, %s485
    %p492 = scmp.eq.s32.totalorder %s34, 1
    %p493 = por %p491, %p492
    %p494 = scmp.ne.s32.totalorder %s485, %s486
    %p495 = scmp.eq.s32.totalorder %s34, 0
    %p496 = por %p494, %p495
    %p497 = scmp.ne.s32.totalorder %s485, %s486
    %p498 = scmp.eq.s32.totalorder %s35, 1
    %p499 = por %p497, %p498
    %p501 = scmp.ne.s32.totalorder %s486, %s500
    %p502 = scmp.eq.s32.totalorder %s35, 0
    %p503 = por %p501, %p502
    %s505 = sadd.s32 %s504, 1
    %p508 = scmp.eq.s32.totalorder %s29, 1
    %p509 = scmp.ne.s32.totalorder %s504, %s506
    %p510 = scmp.eq.s32.totalorder %s29, 0
    %p511 = por %p509, %p510
    %p512 = scmp.ne.s32.totalorder %s504, %s506
    %p513 = scmp.eq.s32.totalorder %s34, 1
    %p514 = por %p512, %p513
    %p515 = scmp.ne.s32.totalorder %s506, %s507
    %p516 = scmp.eq.s32.totalorder %s34, 0
    %p517 = por %p515, %p516
    %p518 = scmp.ne.s32.totalorder %s506, %s507
    %p519 = scmp.eq.s32.totalorder %s35, 1
    %p520 = por %p518, %p519
    %p522 = scmp.ne.s32.totalorder %s507, %s521
    %p523 = scmp.eq.s32.totalorder %s35, 0
    %p524 = por %p522, %p523
    %s525 = ssub.s32 %s29, %s36
    %p526 = scmp.eq.s32.totalorder %s525, 0
    %s528 = sadd.s32 %s527, 1
    %s529 = scalar_select %p526, %s527, %s528
    %p532 = pneg %p526
    %p533 = scmp.eq.s32.totalorder %s29, 1
    %p534 = por %p532, %p533
    %p535 = scmp.ne.s32.totalorder %s527, %s530
    %p536 = scmp.eq.s32.totalorder %s29, 0
    %p537 = por %p535, %p536
    %p538 = scmp.ne.s32.totalorder %s527, %s530
    %p539 = scmp.eq.s32.totalorder %s34, 1
    %p540 = por %p538, %p539
    %p541 = scmp.ne.s32.totalorder %s530, %s531
    %p542 = scmp.eq.s32.totalorder %s34, 0
    %p543 = por %p541, %p542
    %p544 = scmp.ne.s32.totalorder %s530, %s531
    %p545 = scmp.eq.s32.totalorder %s35, 1
    %p546 = por %p544, %p545
    %p548 = scmp.ne.s32.totalorder %s531, %s547
    %p549 = scmp.eq.s32.totalorder %s35, 0
    %p550 = por %p548, %p549
    %p551 = scmp.le.s32.totalorder 1, %s29
    %p552 = scmp.lt.s32.totalorder %s29, 3
    %p553 = pnand %p551, %p552
    %p554 = pneg %p553
    // Predicated region
    $region9: #{tpu_custom_call.1} parent=5 // pred_check
      _
    $region10: #{tpu_custom_call.1} parent=5 // pred_check_branch
      %556 = sbr.rel (%p553) target = $region12
    $region11: #{tpu_custom_call.1} parent=5 // pred_region
      %s557 = ssub.s32 %s29, 1
      // Predicated region
      $region13: #{tpu_custom_call.1} parent=11 // pred_check
        %p558 = pneg %p76
      $region14: #{tpu_custom_call.1} parent=11 // pred_check_branch
        %560 = sbr.rel (%p558) target = $region16
      $region15: #{tpu_custom_call.1} parent=11 // pred_region
        _
      $region16: #{tpu_custom_call.1} parent=11 // pred_fallthru
        _
      // Predicated region
      $region17: #{tpu_custom_call.1} parent=11 // pred_check
        %p561 = pneg %p97
      $region18: #{tpu_custom_call.1} parent=11 // pred_check_branch
        %563 = sbr.rel (%p561) target = $region20
      $region19: #{tpu_custom_call.1} parent=11 // pred_region
        _
      $region20: #{tpu_custom_call.1} parent=11 // pred_fallthru
        _
      // Predicated region
      $region21: #{tpu_custom_call.1} parent=11 // pred_check
        %p564 = pneg %p118
      $region22: #{tpu_custom_call.1} parent=11 // pred_check_branch
        %566 = sbr.rel (%p564) target = $region24
      $region23: #{tpu_custom_call.1} parent=11 // pred_region
        _
      $region24: #{tpu_custom_call.1} parent=11 // pred_fallthru
        _
      // Predicated region
      $region25: #{tpu_custom_call.1} parent=11 // pred_check
        %p567 = pneg %p139
      $region26: #{tpu_custom_call.1} parent=11 // pred_check_branch
        %569 = sbr.rel (%p567) target = $region28
      $region27: #{tpu_custom_call.1} parent=11 // pred_region
        _
      $region28: #{tpu_custom_call.1} parent=11 // pred_fallthru
        _
      // Predicated region
      $region29: #{tpu_custom_call.1} parent=11 // pred_check
        %p570 = pneg %p160
      $region30: #{tpu_custom_call.1} parent=11 // pred_check_branch
        %572 = sbr.rel (%p570) target = $region32
      $region31: #{tpu_custom_call.1} parent=11 // pred_region
        _
      $region32: #{tpu_custom_call.1} parent=11 // pred_fallthru
        _
      // Predicated region
      $region33: #{tpu_custom_call.1} parent=11 // pred_check
        %p573 = pneg %p181
      $region34: #{tpu_custom_call.1} parent=11 // pred_check_branch
        %575 = sbr.rel (%p573) target = $region36
      $region35: #{tpu_custom_call.1} parent=11 // pred_region
        _
      $region36: #{tpu_custom_call.1} parent=11 // pred_fallthru
        _
      // Predicated region
      $region37: #{tpu_custom_call.1} parent=11 // pred_check
        %p576 = pneg %p202
      $region38: #{tpu_custom_call.1} parent=11 // pred_check_branch
        %578 = sbr.rel (%p576) target = $region40
      $region39: #{tpu_custom_call.1} parent=11 // pred_region
        _
      $region40: #{tpu_custom_call.1} parent=11 // pred_fallthru
        _
      // Predicated region
      $region41: #{tpu_custom_call.1} parent=11 // pred_check
        %p579 = pneg %p223
      $region42: #{tpu_custom_call.1} parent=11 // pred_check_branch
        %581 = sbr.rel (%p579) target = $region44
      $region43: #{tpu_custom_call.1} parent=11 // pred_region
        _
      $region44: #{tpu_custom_call.1} parent=11 // pred_fallthru
        _
      // Predicated region
      $region45: #{tpu_custom_call.1} parent=11 // pred_check
        %p582 = pneg %p244
      $region46: #{tpu_custom_call.1} parent=11 // pred_check_branch
        %584 = sbr.rel (%p582) target = $region48
      $region47: #{tpu_custom_call.1} parent=11 // pred_region
        _
      $region48: #{tpu_custom_call.1} parent=11 // pred_fallthru
        _
      // Predicated region
      $region49: #{tpu_custom_call.1} parent=11 // pred_check
        %p585 = pneg %p265
      $region50: #{tpu_custom_call.1} parent=11 // pred_check_branch
        %587 = sbr.rel (%p585) target = $region52
      $region51: #{tpu_custom_call.1} parent=11 // pred_region
        _
      $region52: #{tpu_custom_call.1} parent=11 // pred_fallthru
        _
      // Predicated region
      $region53: #{tpu_custom_call.1} parent=11 // pred_check
        %p588 = pneg %p286
      $region54: #{tpu_custom_call.1} parent=11 // pred_check_branch
        %590 = sbr.rel (%p588) target = $region56
      $region55: #{tpu_custom_call.1} parent=11 // pred_region
        _
      $region56: #{tpu_custom_call.1} parent=11 // pred_fallthru
        _
      // Predicated region
      $region57: #{tpu_custom_call.1} parent=11 // pred_check
        %p591 = pneg %p307
      $region58: #{tpu_custom_call.1} parent=11 // pred_check_branch
        %593 = sbr.rel (%p591) target = $region60
      $region59: #{tpu_custom_call.1} parent=11 // pred_region
        _
      $region60: #{tpu_custom_call.1} parent=11 // pred_fallthru
        _
      // Predicated region
      $region61: #{tpu_custom_call.1} parent=11 // pred_check
        %p594 = pneg %p328
      $region62: #{tpu_custom_call.1} parent=11 // pred_check_branch
        %596 = sbr.rel (%p594) target = $region64
      $region63: #{tpu_custom_call.1} parent=11 // pred_region
        _
      $region64: #{tpu_custom_call.1} parent=11 // pred_fallthru
        _
      // Predicated region
      $region65: #{tpu_custom_call.1} parent=11 // pred_check
        %p597 = pneg %p349
      $region66: #{tpu_custom_call.1} parent=11 // pred_check_branch
        %599 = sbr.rel (%p597) target = $region68
      $region67: #{tpu_custom_call.1} parent=11 // pred_region
        _
      $region68: #{tpu_custom_call.1} parent=11 // pred_fallthru
        _
      // Predicated region
      $region69: #{tpu_custom_call.1} parent=11 // pred_check
        %p600 = pneg %p370
      $region70: #{tpu_custom_call.1} parent=11 // pred_check_branch
        %602 = sbr.rel (%p600) target = $region72
      $region71: #{tpu_custom_call.1} parent=11 // pred_region
        _
      $region72: #{tpu_custom_call.1} parent=11 // pred_fallthru
        _
      // Predicated region
      $region73: #{tpu_custom_call.1} parent=11 // pred_check
        %p603 = pneg %p391
      $region74: #{tpu_custom_call.1} parent=11 // pred_check_branch
        %605 = sbr.rel (%p603) target = $region76
      $region75: #{tpu_custom_call.1} parent=11 // pred_region
        _
      $region76: #{tpu_custom_call.1} parent=11 // pred_fallthru
        _
      // Predicated region
      $region77: #{tpu_custom_call.1} parent=11 // pred_check
        %p606 = pneg %p412
      $region78: #{tpu_custom_call.1} parent=11 // pred_check_branch
        %608 = sbr.rel (%p606) target = $region80
      $region79: #{tpu_custom_call.1} parent=11 // pred_region
        _
      $region80: #{tpu_custom_call.1} parent=11 // pred_fallthru
        _
      // Predicated region
      $region81: #{tpu_custom_call.1} parent=11 // pred_check
        %p609 = pneg %p433
      $region82: #{tpu_custom_call.1} parent=11 // pred_check_branch
        %611 = sbr.rel (%p609) target = $region84
      $region83: #{tpu_custom_call.1} parent=11 // pred_region
        _
      $region84: #{tpu_custom_call.1} parent=11 // pred_fallthru
        _
      // Predicated region
      $region85: #{tpu_custom_call.1} parent=11 // pred_check
        %p612 = pneg %p454
      $region86: #{tpu_custom_call.1} parent=11 // pred_check_branch
        %614 = sbr.rel (%p612) target = $region88
      $region87: #{tpu_custom_call.1} parent=11 // pred_region
        _
      $region88: #{tpu_custom_call.1} parent=11 // pred_fallthru
        _
      // Predicated region
      $region89: #{tpu_custom_call.1} parent=11 // pred_check
        %p615 = pneg %p475
      $region90: #{tpu_custom_call.1} parent=11 // pred_check_branch
        %617 = sbr.rel (%p615) target = $region92
      $region91: #{tpu_custom_call.1} parent=11 // pred_region
        _
      $region92: #{tpu_custom_call.1} parent=11 // pred_fallthru
        _
      // Predicated region
      $region93: #{tpu_custom_call.1} parent=11 // pred_check
        %p618 = pneg %p496
      $region94: #{tpu_custom_call.1} parent=11 // pred_check_branch
        %620 = sbr.rel (%p618) target = $region96
      $region95: #{tpu_custom_call.1} parent=11 // pred_region
        _
      $region96: #{tpu_custom_call.1} parent=11 // pred_fallthru
        _
      // Predicated region
      $region97: #{tpu_custom_call.1} parent=11 // pred_check
        %p621 = pneg %p517
      $region98: #{tpu_custom_call.1} parent=11 // pred_check_branch
        %623 = sbr.rel (%p621) target = $region100
      $region99: #{tpu_custom_call.1} parent=11 // pred_region
        _
      $region100: #{tpu_custom_call.1} parent=11 // pred_fallthru
        _
    $region12: #{tpu_custom_call.1} parent=5 // pred_fallthru
      _
    %p624 = scmp.lt.s32.totalorder %s29, 2
    // Predicated region
    $region101: #{tpu_custom_call.1} parent=5 // pred_check
      %p625 = pneg %p624
    $region102: #{tpu_custom_call.1} parent=5 // pred_check_branch
      %627 = sbr.rel (%p625) target = $region104
    $region103: #{tpu_custom_call.1} parent=5 // pred_region
      // Predicated region
      $region105: #{tpu_custom_call.1} parent=103 // pred_check
        %p628 = pneg %p49
      $region106: #{tpu_custom_call.1} parent=103 // pred_check_branch
        %630 = sbr.rel (%p628) target = $region108
      $region107: #{tpu_custom_call.1} parent=103 // pred_region
        %p631 = scmp.lt.s32.totalorder %s29, 1
        %s632 = scalar_select %p631, %s29, 1
        %s633 = smul.addr %s632, 6
        %s634 = smul.addr %s633, 2
        %s635 = scalar_lea.vmem %s0, %s634
      $region108: #{tpu_custom_call.1} parent=103 // pred_fallthru
        _
    $region104: #{tpu_custom_call.1} parent=5 // pred_fallthru
      _
    %p636 = scmp.le.s32.totalorder 1, %s29
    %p637 = scmp.lt.s32.totalorder %s29, 3
    %p638 = pnand %p636, %p637
    %p639 = pneg %p638
    // Predicated region
    $region109: #{tpu_custom_call.1} parent=5 // pred_check
      _
    $region110: #{tpu_custom_call.1} parent=5 // pred_check_branch
      %641 = sbr.rel (%p638) target = $region112
    $region111: #{tpu_custom_call.1} parent=5 // pred_region
      %s642 = ssub.s32 %s29, 1
      %p643 = scmp.lt.s32.totalorder %s34, 1
      %s644 = scalar_select %p643, %s34, 1
      %s645 = smul.addr %s644, 6
      %s646 = smul.addr %s645, 2
      %s647 = scalar_lea.vmem %s0, %s646
      %p648 = pneg %p55
      %p649 = pneg %p52
      %p650 = pneg %p76
      %p651 = pneg %p73
      %p652 = pneg %p97
      %p653 = pneg %p94
      %p654 = pneg %p118
      %p655 = pneg %p115
      %p656 = pneg %p139
      %p657 = pneg %p136
      %p658 = pneg %p160
      %p659 = pneg %p157
      %p660 = pneg %p181
      %p661 = pneg %p178
      %p662 = pneg %p202
      %p663 = pneg %p199
      %p664 = pneg %p223
      %p665 = pneg %p220
      %p666 = pneg %p244
      %p667 = pneg %p241
      %p668 = pneg %p265
      %p669 = pneg %p262
      %p670 = pneg %p286
      %p671 = pneg %p283
      %p672 = pneg %p307
      %p673 = pneg %p304
      %p674 = pneg %p328
      %p675 = pneg %p325
      %p676 = pneg %p349
      %p677 = pneg %p346
      %p678 = pneg %p370
      %p679 = pneg %p367
      %p680 = pneg %p391
      %p681 = pneg %p388
      %p682 = pneg %p412
      %p683 = pneg %p409
      %p684 = pneg %p433
      %p685 = pneg %p430
      %p686 = pneg %p454
      %p687 = pneg %p451
      %p688 = pneg %p475
      %p689 = pneg %p472
      %p690 = pneg %p496
      %p691 = pneg %p493
      %p692 = pneg %p517
      %p693 = pneg %p514
      %p694 = pneg %p543
      %p695 = pneg %p540
      %p696 = scmp.lt.s32.totalorder %s34, 1
      %s697 = scalar_select %p696, %s34, 1
      %s698 = smul.addr %s697, 8
      %s699 = scalar_lea.vmem %s23, %s698
      %p700 = scmp.lt.s32.totalorder %s34, 1
      %s701 = scalar_select %p700, %s34, 1
      %s702 = smul.addr %s701, 6
      %s703 = smul.addr %s702, 2
      %s704 = scalar_lea.vmem %s0, %s703
      %p705 = scmp.lt.s32.totalorder %s34, 1
      %s706 = scalar_select %p705, %s34, 1
      %s707 = smul.addr %s706, 8
      %s708 = scalar_lea.vmem %s23, %s707
      %v710 = vld [vmem:[%s1] sm:$0x1]
      %v711 = vld [vmem:[%s2] sm:$0x1f]
      %v712 = vld [vmem:[%s3] sm:$0xf]
      %v713 = vld [vmem:[%s3 + $0x4] sm:$0xf]
      %v714 = vld [vmem:[%s3 + $0x8] sm:$0xf]
      %v715 = vld [vmem:[%s3 + $0xc] sm:$0xf]
      %v716 = vld [vmem:[%s3 + $0x10] sm:$0xf]
      %v717 = vld [vmem:[%s3 + $0x14] sm:$0xf]
      %v718 = vld [vmem:[%s3 + $0x18] sm:$0xf]
      %v719 = vld [vmem:[%s3 + $0x1c] sm:$0xf]
      %v720 = vld [vmem:[%s3 + $0x20] sm:$0xf]
      %v721 = vld [vmem:[%s3 + $0x24] sm:$0xf]
      %v722 = vld [vmem:[%s3 + $0x28] sm:$0xf]
      %v723 = vld [vmem:[%s3 + $0x2c] sm:$0xf]
      %v724 = vld [vmem:[%s3 + $0x30] sm:$0xf]
      %v725 = vld [vmem:[%s3 + $0x34] sm:$0xf]
      %v726 = vld [vmem:[%s3 + $0x38] sm:$0xf]
      %v727 = vld [vmem:[%s3 + $0x3c] sm:$0xf]
      %v728 = vld [vmem:[%s3 + $0x40] sm:$0xf]
      %v729 = vld [vmem:[%s3 + $0x44] sm:$0xf]
      %v730 = vld [vmem:[%s3 + $0x48] sm:$0xf]
      %v731 = vld [vmem:[%s3 + $0x4c] sm:$0xf]
      %v732 = vld [vmem:[%s3 + $0x50] sm:$0xf]
      %v733 = vld [vmem:[%s3 + $0x54] sm:$0xf]
      %v734 = vld [vmem:[%s3 + $0x58] sm:$0xf]
      %v735 = vld [vmem:[%s3 + $0x5c] sm:$0xf]
      %v736 = vld [vmem:[%s3 + $0x60] sm:$0xf]
      %v737 = vld [vmem:[%s3 + $0x64] sm:$0xf]
      %v738 = vld [vmem:[%s3 + $0x68] sm:$0xf]
      %v739 = vld [vmem:[%s3 + $0x6c] sm:$0xf]
      %v740 = vld [vmem:[%s3 + $0x70] sm:$0xf]
      %v741 = vld [vmem:[%s3 + $0x74] sm:$0xf]
      %v742 = vld [vmem:[%s3 + $0x78] sm:$0xf]
      %v743 = vld [vmem:[%s3 + $0x7c] sm:$0xf]
      %v744 = vld [vmem:[%s3 + $0x80] sm:$0xf]
      %v745 = vld [vmem:[%s3 + $0x84] sm:$0xf]
      %v746 = vld [vmem:[%s3 + $0x88] sm:$0xf]
      %v747 = vld [vmem:[%s3 + $0x8c] sm:$0xf]
      %v748 = vld [vmem:[%s3 + $0x90] sm:$0xf]
      %v749 = vld [vmem:[%s3 + $0x94] sm:$0xf]
      %v750 = vld [vmem:[%s3 + $0x98] sm:$0xf]
      %v751 = vld [vmem:[%s3 + $0x9c] sm:$0xf]
      %v752 = vld [vmem:[%s3 + $0xa0] sm:$0xf]
      %v753 = vld [vmem:[%s3 + $0xa4] sm:$0xf]
      %v754 = vld [vmem:[%s3 + $0xa8] sm:$0xf]
      %v755 = vld [vmem:[%s3 + $0xac] sm:$0xf]
      %v756 = vld [vmem:[%s3 + $0xb0] sm:$0xf]
      %v757 = vld [vmem:[%s3 + $0xb4] sm:$0xf]
      %v758 = vld [vmem:[%s3 + $0xb8] sm:$0xf]
      %v759 = vld [vmem:[%s3 + $0xbc] sm:$0xf]
      %v760 = vld [vmem:[%s3 + $0xc0] sm:$0xf]
      %v761 = vld [vmem:[%s3 + $0xc4] sm:$0xf]
      %v762 = vld [vmem:[%s3 + $0xc8] sm:$0xf]
      %v763 = vld [vmem:[%s3 + $0xcc] sm:$0xf]
      %v764 = vld [vmem:[%s3 + $0xd0] sm:$0xf]
      %v765 = vld [vmem:[%s3 + $0xd4] sm:$0xf]
      %v766 = vld [vmem:[%s3 + $0xd8] sm:$0xf]
      %v767 = vld [vmem:[%s3 + $0xdc] sm:$0xf]
      %v768 = vld [vmem:[%s3 + $0xe0] sm:$0xf]
      %v769 = vld [vmem:[%s3 + $0xe4] sm:$0xf]
      %v770 = vld [vmem:[%s3 + $0xe8] sm:$0xf]
      %v771 = vld [vmem:[%s3 + $0xec] sm:$0xf]
      %v772 = vld [vmem:[%s3 + $0xf0] sm:$0xf]
      %v773 = vld [vmem:[%s3 + $0xf4] sm:$0xf]
      %v774 = vld [vmem:[%s3 + $0xf8] sm:$0xf]
      %v775 = vld [vmem:[%s3 + $0xfc] sm:$0xf]
      %v776 = vld [vmem:[%s3 + $0x100] sm:$0xf]
      %v777 = vld [vmem:[%s3 + $0x104] sm:$0xf]
      %v778 = vld [vmem:[%s3 + $0x108] sm:$0xf]
      %v779 = vld [vmem:[%s3 + $0x10c] sm:$0xf]
      %v780 = vld [vmem:[%s3 + $0x110] sm:$0xf]
      %v781 = vld [vmem:[%s3 + $0x114] sm:$0xf]
      %v782 = vld [vmem:[%s3 + $0x118] sm:$0xf]
      %v783 = vld [vmem:[%s3 + $0x11c] sm:$0xf]
      %v784 = vld [vmem:[%s3 + $0x120] sm:$0xf]
      %v785 = vld [vmem:[%s3 + $0x124] sm:$0xf]
      %v786 = vld [vmem:[%s3 + $0x128] sm:$0xf]
      %v787 = vld [vmem:[%s3 + $0x12c] sm:$0xf]
      %v788 = vld [vmem:[%s3 + $0x130] sm:$0xf]
      %v789 = vld [vmem:[%s3 + $0x134] sm:$0xf]
      %v790 = vld [vmem:[%s3 + $0x138] sm:$0xf]
      %v791 = vld [vmem:[%s3 + $0x13c] sm:$0xf]
      %v792 = vld [vmem:[%s3 + $0x140] sm:$0xf]
      %v793 = vld [vmem:[%s3 + $0x144] sm:$0xf]
      %v794 = vld [vmem:[%s3 + $0x148] sm:$0xf]
      %v795 = vld [vmem:[%s3 + $0x14c] sm:$0xf]
      %v796 = vld [vmem:[%s3 + $0x150] sm:$0xf]
      %v797 = vld [vmem:[%s3 + $0x154] sm:$0xf]
      %v798 = vld [vmem:[%s3 + $0x158] sm:$0xf]
      %v799 = vld [vmem:[%s3 + $0x15c] sm:$0xf]
      %v800 = vld [vmem:[%s3 + $0x160] sm:$0xf]
      %v801 = vld [vmem:[%s3 + $0x164] sm:$0xf]
      %v802 = vld [vmem:[%s3 + $0x168] sm:$0xf]
      %v803 = vld [vmem:[%s3 + $0x16c] sm:$0xf]
      %v804 = vld [vmem:[%s3 + $0x170] sm:$0xf]
      %v805 = vld [vmem:[%s3 + $0x174] sm:$0xf]
      %v806 = vld [vmem:[%s3 + $0x178] sm:$0xf]
      %v807 = vld [vmem:[%s3 + $0x17c] sm:$0xf]
      %v808 = vld [vmem:[%s4] sm:$0x1]
      %v809 = vld [vmem:[%s21] sm:$0x1]
      %v810 = vld [vmem:[%s22] sm:$0x1]
      %v811 = vld [vmem:[%s704] sm:$0xff]
      %v812 = vld [vmem:[%s704 + $0x8] sm:$0xf]
      %v814 = vperm.slane %v808, 0
      %817 = vst [vmem:[#allocation1] ss:$4 sm:$0xff] %v811
      %s819 = scalar_lea.vmem [#allocation1], 32
      %820 = vst [vmem:[%s819] ss:$4 sm:$0xff] %v812
      %v821 = vld.sshfl [vmem:[#allocation1] sm:$0xff pattern:$0x73625140]
      %v822 = vld.sshfl [vmem:[#allocation1 + $0x8] sm:$0xff pattern:$0x73625140]
      %v823 = vld.sshfl [vmem:[#allocation1 + $0x10] sm:$0xff pattern:$0x73625140]
      %v824 = vld.sshfl [vmem:[#allocation1 + $0x18] sm:$0xff pattern:$0x73625140]
      %v825 = vld.sshfl [vmem:[#allocation1 + $0x20] sm:$0xff pattern:$0x73625140]
      %v826 = vld.sshfl [vmem:[#allocation1 + $0x28] sm:$0xff pattern:$0x73625140]
      %v929 = vunpack.c.l.b16 %v712
      %v930 = vunpack.c.l.b16 %v713
      %v931 = vunpack.c.l.b16 %v714
      %v932 = vunpack.c.l.b16 %v715
      %v933 = vunpack.c.l.b16 %v716
      %v934 = vunpack.c.l.b16 %v717
      %v935 = vunpack.c.l.b16 %v718
      %v936 = vunpack.c.l.b16 %v719
      %v937 = vunpack.c.l.b16 %v720
      %v938 = vunpack.c.l.b16 %v721
      %v939 = vunpack.c.l.b16 %v722
      %v940 = vunpack.c.l.b16 %v723
      %v941 = vunpack.c.l.b16 %v724
      %v942 = vunpack.c.l.b16 %v725
      %v943 = vunpack.c.l.b16 %v726
      %v944 = vunpack.c.l.b16 %v727
      %v945 = vunpack.c.l.b16 %v728
      %v946 = vunpack.c.l.b16 %v729
      %v947 = vunpack.c.l.b16 %v730
      %v948 = vunpack.c.l.b16 %v731
      %v949 = vunpack.c.l.b16 %v732
      %v950 = vunpack.c.l.b16 %v733
      %v951 = vunpack.c.l.b16 %v734
      %v952 = vunpack.c.l.b16 %v735
      %v953 = vunpack.c.l.b16 %v736
      %v954 = vunpack.c.l.b16 %v737
      %v955 = vunpack.c.l.b16 %v738
      %v956 = vunpack.c.l.b16 %v739
      %v957 = vunpack.c.l.b16 %v740
      %v958 = vunpack.c.l.b16 %v741
      %v959 = vunpack.c.l.b16 %v742
      %v960 = vunpack.c.l.b16 %v743
      %v961 = vunpack.c.l.b16 %v744
      %v962 = vunpack.c.l.b16 %v745
      %v963 = vunpack.c.l.b16 %v746
      %v964 = vunpack.c.l.b16 %v747
      %v965 = vunpack.c.l.b16 %v748
      %v966 = vunpack.c.l.b16 %v749
      %v967 = vunpack.c.l.b16 %v750
      %v968 = vunpack.c.l.b16 %v751
      %v969 = vunpack.c.l.b16 %v752
      %v970 = vunpack.c.l.b16 %v753
      %v971 = vunpack.c.l.b16 %v754
      %v972 = vunpack.c.l.b16 %v755
      %v973 = vunpack.c.l.b16 %v756
      %v974 = vunpack.c.l.b16 %v757
      %v975 = vunpack.c.l.b16 %v758
      %v976 = vunpack.c.l.b16 %v759
      %v977 = vunpack.c.l.b16 %v760
      %v978 = vunpack.c.l.b16 %v761
      %v979 = vunpack.c.l.b16 %v762
      %v980 = vunpack.c.l.b16 %v763
      %v981 = vunpack.c.l.b16 %v764
      %v982 = vunpack.c.l.b16 %v765
      %v983 = vunpack.c.l.b16 %v766
      %v984 = vunpack.c.l.b16 %v767
      %v985 = vunpack.c.l.b16 %v768
      %v986 = vunpack.c.l.b16 %v769
      %v987 = vunpack.c.l.b16 %v770
      %v988 = vunpack.c.l.b16 %v771
      %v989 = vunpack.c.l.b16 %v772
      %v990 = vunpack.c.l.b16 %v773
      %v991 = vunpack.c.l.b16 %v774
      %v992 = vunpack.c.l.b16 %v775
      %v993 = vunpack.c.l.b16 %v776
      %v994 = vunpack.c.l.b16 %v777
      %v995 = vunpack.c.l.b16 %v778
      %v996 = vunpack.c.l.b16 %v779
      %v997 = vunpack.c.l.b16 %v780
      %v998 = vunpack.c.l.b16 %v781
      %v999 = vunpack.c.l.b16 %v782
      %v1000 = vunpack.c.l.b16 %v783
      %v1001 = vunpack.c.l.b16 %v784
      %v1002 = vunpack.c.l.b16 %v785
      %v1003 = vunpack.c.l.b16 %v786
      %v1004 = vunpack.c.l.b16 %v787
      %v1005 = vunpack.c.l.b16 %v788
      %v1006 = vunpack.c.l.b16 %v789
      %v1007 = vunpack.c.l.b16 %v790
      %v1008 = vunpack.c.l.b16 %v791
      %v1009 = vunpack.c.l.b16 %v792
      %v1010 = vunpack.c.l.b16 %v793
      %v1011 = vunpack.c.l.b16 %v794
      %v1012 = vunpack.c.l.b16 %v795
      %v1013 = vunpack.c.l.b16 %v796
      %v1014 = vunpack.c.l.b16 %v797
      %v1015 = vunpack.c.l.b16 %v798
      %v1016 = vunpack.c.l.b16 %v799
      %v1017 = vunpack.c.l.b16 %v800
      %v1018 = vunpack.c.l.b16 %v801
      %v1019 = vunpack.c.l.b16 %v802
      %v1020 = vunpack.c.l.b16 %v803
      %v1021 = vunpack.c.l.b16 %v804
      %v1022 = vunpack.c.l.b16 %v805
      %v1023 = vunpack.c.l.b16 %v806
      %v1024 = vunpack.c.l.b16 %v807
      %v1025 = vpack.c.b16 %v930, %v929
      %v1026 = vpack.c.b16 %v932, %v931
      %v1027 = vpack.c.b16 %v934, %v933
      %v1028 = vpack.c.b16 %v936, %v935
      %v1029 = vpack.c.b16 %v938, %v937
      %v1030 = vpack.c.b16 %v940, %v939
      %v1031 = vpack.c.b16 %v942, %v941
      %v1032 = vpack.c.b16 %v944, %v943
      %v1033 = vpack.c.b16 %v946, %v945
      %v1034 = vpack.c.b16 %v948, %v947
      %v1035 = vpack.c.b16 %v950, %v949
      %v1036 = vpack.c.b16 %v952, %v951
      %v1037 = vpack.c.b16 %v954, %v953
      %v1038 = vpack.c.b16 %v956, %v955
      %v1039 = vpack.c.b16 %v958, %v957
      %v1040 = vpack.c.b16 %v960, %v959
      %v1041 = vpack.c.b16 %v962, %v961
      %v1042 = vpack.c.b16 %v964, %v963
      %v1043 = vpack.c.b16 %v966, %v965
      %v1044 = vpack.c.b16 %v968, %v967
      %v1045 = vpack.c.b16 %v970, %v969
      %v1046 = vpack.c.b16 %v972, %v971
      %v1047 = vpack.c.b16 %v974, %v973
      %v1048 = vpack.c.b16 %v976, %v975
      %v1049 = vpack.c.b16 %v978, %v977
      %v1050 = vpack.c.b16 %v980, %v979
      %v1051 = vpack.c.b16 %v982, %v981
      %v1052 = vpack.c.b16 %v984, %v983
      %v1053 = vpack.c.b16 %v986, %v985
      %v1054 = vpack.c.b16 %v988, %v987
      %v1055 = vpack.c.b16 %v990, %v989
      %v1056 = vpack.c.b16 %v992, %v991
      %v1057 = vpack.c.b16 %v994, %v993
      %v1058 = vpack.c.b16 %v996, %v995
      %v1059 = vpack.c.b16 %v998, %v997
      %v1060 = vpack.c.b16 %v1000, %v999
      %v1061 = vpack.c.b16 %v1002, %v1001
      %v1062 = vpack.c.b16 %v1004, %v1003
      %v1063 = vpack.c.b16 %v1006, %v1005
      %v1064 = vpack.c.b16 %v1008, %v1007
      %v1065 = vpack.c.b16 %v1010, %v1009
      %v1066 = vpack.c.b16 %v1012, %v1011
      %v1067 = vpack.c.b16 %v1014, %v1013
      %v1068 = vpack.c.b16 %v1016, %v1015
      %v1069 = vpack.c.b16 %v1018, %v1017
      %v1070 = vpack.c.b16 %v1020, %v1019
      %v1071 = vpack.c.b16 %v1022, %v1021
      %v1072 = vpack.c.b16 %v1024, %v1023
      %1121 = vmatpush.bf16.msra.mxu0 %v1032
      %1122 = vmatpush.bf16.msra.mxu0 %v1031
      %1123 = vmatpush.bf16.msra.mxu0 %v1030
      %1124 = vmatpush.bf16.msra.mxu0 %v1029
      %1125 = vmatpush.bf16.msra.mxu0 %v1028
      %1126 = vmatpush.bf16.msra.mxu0 %v1027
      %1127 = vmatpush.bf16.msra.mxu0 %v1026
      %1128 = vmatpush.bf16.msra.mxu0 %v1025
      %1129 = vmatmul.bf16.gmra.mxu0 %v821
      %v1130 = vpop.f32.mrf.mxu0
      %v1131 = vadd.f32 %v814, %v1130
      %v1132 = vpop.f32.mrf.mxu0
      %1133 = vdwg.mxu0
      %1134 = vmatpush.bf16.msra.mxu0 %v1040
      %1135 = vmatpush.bf16.msra.mxu0 %v1039
      %1136 = vmatpush.bf16.msra.mxu0 %v1038
      %1137 = vmatpush.bf16.msra.mxu0 %v1037
      %1138 = vmatpush.bf16.msra.mxu0 %v1036
      %1139 = vmatpush.bf16.msra.mxu0 %v1035
      %1140 = vmatpush.bf16.msra.mxu0 %v1034
      %1141 = vmatpush.bf16.msra.mxu0 %v1033
      %1142 = vmatmul.bf16.gmra.mxu0 %v822
      %v1143 = vpop.f32.mrf.mxu0
      %v1144 = vadd.f32 %v1131, %v1143
      %v1145 = vpop.f32.mrf.mxu0
      %1146 = vdwg.mxu0
      %1147 = vmatpush.bf16.msra.mxu0 %v1048
      %1148 = vmatpush.bf16.msra.mxu0 %v1047
      %1149 = vmatpush.bf16.msra.mxu0 %v1046
      %1150 = vmatpush.bf16.msra.mxu0 %v1045
      %1151 = vmatpush.bf16.msra.mxu0 %v1044
      %1152 = vmatpush.bf16.msra.mxu0 %v1043
      %1153 = vmatpush.bf16.msra.mxu0 %v1042
      %1154 = vmatpush.bf16.msra.mxu0 %v1041
      %1155 = vmatmul.bf16.gmra.mxu0 %v823
      %v1156 = vpop.f32.mrf.mxu0
      %v1157 = vadd.f32 %v1144, %v1156
      %v1158 = vpop.f32.mrf.mxu0
      %1159 = vdwg.mxu0
      %1160 = vmatpush.bf16.msra.mxu0 %v1056
      %1161 = vmatpush.bf16.msra.mxu0 %v1055
      %1162 = vmatpush.bf16.msra.mxu0 %v1054
      %1163 = vmatpush.bf16.msra.mxu0 %v1053
      %1164 = vmatpush.bf16.msra.mxu0 %v1052
      %1165 = vmatpush.bf16.msra.mxu0 %v1051
      %1166 = vmatpush.bf16.msra.mxu0 %v1050
      %1167 = vmatpush.bf16.msra.mxu0 %v1049
      %1168 = vmatmul.bf16.gmra.mxu0 %v824
      %v1169 = vpop.f32.mrf.mxu0
      %v1170 = vadd.f32 %v1157, %v1169
      %v1171 = vpop.f32.mrf.mxu0
      %1172 = vdwg.mxu0
      %1173 = vmatpush.bf16.msra.mxu0 %v1064
      %1174 = vmatpush.bf16.msra.mxu0 %v1063
      %1175 = vmatpush.bf16.msra.mxu0 %v1062
      %1176 = vmatpush.bf16.msra.mxu0 %v1061
      %1177 = vmatpush.bf16.msra.mxu0 %v1060
      %1178 = vmatpush.bf16.msra.mxu0 %v1059
      %1179 = vmatpush.bf16.msra.mxu0 %v1058
      %1180 = vmatpush.bf16.msra.mxu0 %v1057
      %1181 = vmatmul.bf16.gmra.mxu0 %v825
      %v1182 = vpop.f32.mrf.mxu0
      %v1183 = vadd.f32 %v1170, %v1182
      %v1184 = vpop.f32.mrf.mxu0
      %1185 = vdwg.mxu0
      %1186 = vmatpush.bf16.msra.mxu0 %v1072
      %1187 = vmatpush.bf16.msra.mxu0 %v1071
      %1188 = vmatpush.bf16.msra.mxu0 %v1070
      %1189 = vmatpush.bf16.msra.mxu0 %v1069
      %1190 = vmatpush.bf16.msra.mxu0 %v1068
      %1191 = vmatpush.bf16.msra.mxu0 %v1067
      %1192 = vmatpush.bf16.msra.mxu0 %v1066
      %1193 = vmatpush.bf16.msra.mxu0 %v1065
      %1194 = vmatmul.bf16.gmra.mxu0 %v826
      %v1195 = vpop.f32.mrf.mxu0
      %v1196 = vadd.f32 %v1183, %v1195
      %v1197 = vpop.f32.mrf.mxu0
      %1198 = vdwg.mxu0
      %v1200 = vrot.slane %v1196, 7
      %vm1202 = vcmask 1040384
      %v1203 = vsel %vm1202, %v710, %v1200
      %v1204 = vadd.f32 %v1203, %v711
      %v1205 = vadd.f32 %v1204, %v711
      %v1206 = vld [vmem:[%s5] sm:$0x1]
      %v1207 = vld [vmem:[%s6] sm:$0x1]
      %vm1208 = vcmask 258048
      %v1209 = vsel %vm1208, %v1205, 0.0
      %1210 = vadd.xlane.f32.xlu0 %v1209
      %v1211 = vpop.xlane.xlu0 %1210
      %v1212 = vrcp.pop 32.0
      %v1213 = vmul.f32 32.0, %v1212
      %v1214 = vsub.f32 1.0, %v1213
      %v1215 = vmul.f32 %v1212, %v1214
      %v1216 = vadd.f32 %v1212, %v1215
      %vm1217 = vweird.f32 %v1212
      %v1218 = vsel %vm1217, %v1212, %v1216
      %v1219 = vmul.f32 %v1211, %v1218
      %v1220 = vsub.f32 %v1205, %v1219
      %v1221 = vmul.f32 %v1220, %v1220
      %v1222 = vsel %vm1208, %v1221, 0.0
      %1223 = vadd.xlane.f32.xlu0 %v1222
      %v1224 = vpop.xlane.xlu0 %1223
      %v1225 = vmul.f32 %v1224, %v1218
      %v1226 = vadd.f32 %v1225, 1e-06
      %v1227 = vrsqrt.pop %v1226
      %v1228 = vmul.f32 %v1227, %v1226
      %v1229 = vmul.f32 %v1228, %v1227
      %v1230 = vmul.f32 0.5, %v1229
      %v1231 = vsub.f32 1.5, %v1230
      %v1232 = vmul.f32 %v1227, %v1231
      %vm1233 = vweird.f32 %v1226
      %vm1234 = vweird.f32 %v1227
      %vm1235 = vmor %vm1233, %vm1234
      %v1236 = vsel %vm1235, %v1227, %v1232
      %v1237 = vmul.f32 %v1220, %v1236
      %v1239 = vperm.slane %v1206, 0
      %v1241 = vmul.f32 %v1237, %v1239
      %v1243 = vperm.slane %v1207, 0
      %v1245 = vadd.f32 %v1241, %v1243
      %v1246 = vpack.c.bf16 %v1245, %v1245
      %v1247 = vld [vmem:[%s7] sm:$0xf]
      %v1248 = vld [vmem:[%s7 + $0x4] sm:$0xf]
      %v1249 = vld [vmem:[%s7 + $0x8] sm:$0xf]
      %v1250 = vld [vmem:[%s7 + $0xc] sm:$0xf]
      %v1251 = vld [vmem:[%s7 + $0x10] sm:$0xf]
      %v1252 = vld [vmem:[%s7 + $0x14] sm:$0xf]
      %v1253 = vld [vmem:[%s7 + $0x18] sm:$0xf]
      %v1254 = vld [vmem:[%s7 + $0x1c] sm:$0xf]
      %v1255 = vld [vmem:[%s7 + $0x20] sm:$0xf]
      %v1256 = vld [vmem:[%s7 + $0x24] sm:$0xf]
      %v1257 = vld [vmem:[%s7 + $0x28] sm:$0xf]
      %v1258 = vld [vmem:[%s7 + $0x2c] sm:$0xf]
      %v1259 = vld [vmem:[%s7 + $0x30] sm:$0xf]
      %v1260 = vld [vmem:[%s7 + $0x34] sm:$0xf]
      %v1261 = vld [vmem:[%s7 + $0x38] sm:$0xf]
      %v1262 = vld [vmem:[%s7 + $0x3c] sm:$0xf]
      %v1263 = vld [vmem:[%s10] sm:$0x1]
      %v1264 = vld [vmem:[%s10 + $0x1] sm:$0x1]
      %v1265 = vld [vmem:[%s10 + $0x2] sm:$0x1]
      %v1266 = vld [vmem:[%s10 + $0x3] sm:$0x1]
      %v1271 = vperm.slane %v1263, 0
      %v1272 = vperm.slane %v1264, 0
      %v1273 = vperm.slane %v1265, 0
      %v1274 = vperm.slane %v1266, 0
      %v1283 = vunpack.c.l.b16 %v1247
      %v1284 = vunpack.c.l.b16 %v1248
      %v1285 = vunpack.c.l.b16 %v1249
      %v1286 = vunpack.c.l.b16 %v1250
      %v1287 = vpack.c.b16 %v1284, %v1283
      %v1288 = vpack.c.b16 %v1286, %v1285
      %vm1291 = vcmask 261120
      %v1293 = vsel %vm1291, %v1246, 0
      %1295 = vmatpush.bf16.msra.mxu0 0
      %1296 = vmatpush.bf16.msra.mxu0 0
      %1297 = vmatpush.bf16.msra.mxu0 0
      %1298 = vmatpush.bf16.msra.mxu0 0
      %1299 = vmatpush.bf16.msra.mxu0 0
      %1300 = vmatpush.bf16.msra.mxu0 0
      %1301 = vmatpush.bf16.msra.mxu0 %v1288
      %1302 = vmatpush.bf16.msra.mxu0 %v1287
      %1303 = vmatmul.bf16.gmra.mxu0 %v1293
      %v1304 = vpop.f32.mrf.mxu0
      %v1305 = vadd.f32 %v1271, %v1304
      %v1306 = vpop.f32.mrf.mxu0
      %1307 = vdwg.mxu0
      %v1312 = vunpack.c.l.b16 %v1251
      %v1313 = vunpack.c.l.b16 %v1252
      %v1314 = vunpack.c.l.b16 %v1253
      %v1315 = vunpack.c.l.b16 %v1254
      %v1316 = vpack.c.b16 %v1313, %v1312
      %v1317 = vpack.c.b16 %v1315, %v1314
      %1320 = vmatpush.bf16.msra.mxu0 0
      %1321 = vmatpush.bf16.msra.mxu0 0
      %1322 = vmatpush.bf16.msra.mxu0 0
      %1323 = vmatpush.bf16.msra.mxu0 0
      %1324 = vmatpush.bf16.msra.mxu0 0
      %1325 = vmatpush.bf16.msra.mxu0 0
      %1326 = vmatpush.bf16.msra.mxu0 %v1317
      %1327 = vmatpush.bf16.msra.mxu0 %v1316
      %1328 = vmatmul.bf16.gmra.mxu0 %v1293
      %v1329 = vpop.f32.mrf.mxu0
      %v1330 = vadd.f32 %v1272, %v1329
      %v1331 = vpop.f32.mrf.mxu0
      %1332 = vdwg.mxu0
      %v1337 = vunpack.c.l.b16 %v1255
      %v1338 = vunpack.c.l.b16 %v1256
      %v1339 = vunpack.c.l.b16 %v1257
      %v1340 = vunpack.c.l.b16 %v1258
      %v1341 = vpack.c.b16 %v1338, %v1337
      %v1342 = vpack.c.b16 %v1340, %v1339
      %1345 = vmatpush.bf16.msra.mxu0 0
      %1346 = vmatpush.bf16.msra.mxu0 0
      %1347 = vmatpush.bf16.msra.mxu0 0
      %1348 = vmatpush.bf16.msra.mxu0 0
      %1349 = vmatpush.bf16.msra.mxu0 0
      %1350 = vmatpush.bf16.msra.mxu0 0
      %1351 = vmatpush.bf16.msra.mxu0 %v1342
      %1352 = vmatpush.bf16.msra.mxu0 %v1341
      %1353 = vmatmul.bf16.gmra.mxu0 %v1293
      %v1354 = vpop.f32.mrf.mxu0
      %v1355 = vadd.f32 %v1273, %v1354
      %v1356 = vpop.f32.mrf.mxu0
      %1357 = vdwg.mxu0
      %v1362 = vunpack.c.l.b16 %v1259
      %v1363 = vunpack.c.l.b16 %v1260
      %v1364 = vunpack.c.l.b16 %v1261
      %v1365 = vunpack.c.l.b16 %v1262
      %v1366 = vpack.c.b16 %v1363, %v1362
      %v1367 = vpack.c.b16 %v1365, %v1364
      %1370 = vmatpush.bf16.msra.mxu0 0
      %1371 = vmatpush.bf16.msra.mxu0 0
      %1372 = vmatpush.bf16.msra.mxu0 0
      %1373 = vmatpush.bf16.msra.mxu0 0
      %1374 = vmatpush.bf16.msra.mxu0 0
      %1375 = vmatpush.bf16.msra.mxu0 0
      %1376 = vmatpush.bf16.msra.mxu0 %v1367
      %1377 = vmatpush.bf16.msra.mxu0 %v1366
      %1378 = vmatmul.bf16.gmra.mxu0 %v1293
      %v1379 = vpop.f32.mrf.mxu0
      %v1380 = vadd.f32 %v1274, %v1379
      %v1381 = vpop.f32.mrf.mxu0
      %1382 = vdwg.mxu0
      %v1383 = vld [vmem:[%s8] sm:$0xf]
      %v1384 = vld [vmem:[%s8 + $0x4] sm:$0xf]
      %v1385 = vld [vmem:[%s8 + $0x8] sm:$0xf]
      %v1386 = vld [vmem:[%s8 + $0xc] sm:$0xf]
      %v1387 = vld [vmem:[%s8 + $0x10] sm:$0xf]
      %v1388 = vld [vmem:[%s8 + $0x14] sm:$0xf]
      %v1389 = vld [vmem:[%s8 + $0x18] sm:$0xf]
      %v1390 = vld [vmem:[%s8 + $0x1c] sm:$0xf]
      %v1391 = vld [vmem:[%s8 + $0x20] sm:$0xf]
      %v1392 = vld [vmem:[%s8 + $0x24] sm:$0xf]
      %v1393 = vld [vmem:[%s8 + $0x28] sm:$0xf]
      %v1394 = vld [vmem:[%s8 + $0x2c] sm:$0xf]
      %v1395 = vld [vmem:[%s8 + $0x30] sm:$0xf]
      %v1396 = vld [vmem:[%s8 + $0x34] sm:$0xf]
      %v1397 = vld [vmem:[%s8 + $0x38] sm:$0xf]
      %v1398 = vld [vmem:[%s8 + $0x3c] sm:$0xf]
      %v1399 = vld [vmem:[%s11] sm:$0x1]
      %v1400 = vld [vmem:[%s11 + $0x1] sm:$0x1]
      %v1401 = vld [vmem:[%s11 + $0x2] sm:$0x1]
      %v1402 = vld [vmem:[%s11 + $0x3] sm:$0x1]
      %v1407 = vperm.slane %v1399, 0
      %v1408 = vperm.slane %v1400, 0
      %v1409 = vperm.slane %v1401, 0
      %v1410 = vperm.slane %v1402, 0
      %v1419 = vunpack.c.l.b16 %v1383
      %v1420 = vunpack.c.l.b16 %v1384
      %v1421 = vunpack.c.l.b16 %v1385
      %v1422 = vunpack.c.l.b16 %v1386
      %v1423 = vpack.c.b16 %v1420, %v1419
      %v1424 = vpack.c.b16 %v1422, %v1421
      %1427 = vmatpush.bf16.msra.mxu0 0
      %1428 = vmatpush.bf16.msra.mxu0 0
      %1429 = vmatpush.bf16.msra.mxu0 0
      %1430 = vmatpush.bf16.msra.mxu0 0
      %1431 = vmatpush.bf16.msra.mxu0 0
      %1432 = vmatpush.bf16.msra.mxu0 0
      %1433 = vmatpush.bf16.msra.mxu0 %v1424
      %1434 = vmatpush.bf16.msra.mxu0 %v1423
      %1435 = vmatmul.bf16.gmra.mxu0 %v1293
      %v1436 = vpop.f32.mrf.mxu0
      %v1437 = vadd.f32 %v1407, %v1436
      %v1438 = vpop.f32.mrf.mxu0
      %1439 = vdwg.mxu0
      %v1444 = vunpack.c.l.b16 %v1387
      %v1445 = vunpack.c.l.b16 %v1388
      %v1446 = vunpack.c.l.b16 %v1389
      %v1447 = vunpack.c.l.b16 %v1390
      %v1448 = vpack.c.b16 %v1445, %v1444
      %v1449 = vpack.c.b16 %v1447, %v1446
      %1452 = vmatpush.bf16.msra.mxu0 0
      %1453 = vmatpush.bf16.msra.mxu0 0
      %1454 = vmatpush.bf16.msra.mxu0 0
      %1455 = vmatpush.bf16.msra.mxu0 0
      %1456 = vmatpush.bf16.msra.mxu0 0
      %1457 = vmatpush.bf16.msra.mxu0 0
      %1458 = vmatpush.bf16.msra.mxu0 %v1449
      %1459 = vmatpush.bf16.msra.mxu0 %v1448
      %1460 = vmatmul.bf16.gmra.mxu0 %v1293
      %v1461 = vpop.f32.mrf.mxu0
      %v1462 = vadd.f32 %v1408, %v1461
      %v1463 = vpop.f32.mrf.mxu0
      %1464 = vdwg.mxu0
      %v1469 = vunpack.c.l.b16 %v1391
      %v1470 = vunpack.c.l.b16 %v1392
      %v1471 = vunpack.c.l.b16 %v1393
      %v1472 = vunpack.c.l.b16 %v1394
      %v1473 = vpack.c.b16 %v1470, %v1469
      %v1474 = vpack.c.b16 %v1472, %v1471
      %1477 = vmatpush.bf16.msra.mxu0 0
      %1478 = vmatpush.bf16.msra.mxu0 0
      %1479 = vmatpush.bf16.msra.mxu0 0
      %1480 = vmatpush.bf16.msra.mxu0 0
      %1481 = vmatpush.bf16.msra.mxu0 0
      %1482 = vmatpush.bf16.msra.mxu0 0
      %1483 = vmatpush.bf16.msra.mxu0 %v1474
      %1484 = vmatpush.bf16.msra.mxu0 %v1473
      %1485 = vmatmul.bf16.gmra.mxu0 %v1293
      %v1486 = vpop.f32.mrf.mxu0
      %v1487 = vadd.f32 %v1409, %v1486
      %v1488 = vpop.f32.mrf.mxu0
      %1489 = vdwg.mxu0
      %v1494 = vunpack.c.l.b16 %v1395
      %v1495 = vunpack.c.l.b16 %v1396
      %v1496 = vunpack.c.l.b16 %v1397
      %v1497 = vunpack.c.l.b16 %v1398
      %v1498 = vpack.c.b16 %v1495, %v1494
      %v1499 = vpack.c.b16 %v1497, %v1496
      %1502 = vmatpush.bf16.msra.mxu0 0
      %1503 = vmatpush.bf16.msra.mxu0 0
      %1504 = vmatpush.bf16.msra.mxu0 0
      %1505 = vmatpush.bf16.msra.mxu0 0
      %1506 = vmatpush.bf16.msra.mxu0 0
      %1507 = vmatpush.bf16.msra.mxu0 0
      %1508 = vmatpush.bf16.msra.mxu0 %v1499
      %1509 = vmatpush.bf16.msra.mxu0 %v1498
      %1510 = vmatmul.bf16.gmra.mxu0 %v1293
      %v1511 = vpop.f32.mrf.mxu0
      %v1512 = vadd.f32 %v1410, %v1511
      %v1513 = vpop.f32.mrf.mxu0
      %1514 = vdwg.mxu0
      %v1515 = vld [vmem:[%s9] sm:$0xf]
      %v1516 = vld [vmem:[%s9 + $0x4] sm:$0xf]
      %v1517 = vld [vmem:[%s9 + $0x8] sm:$0xf]
      %v1518 = vld [vmem:[%s9 + $0xc] sm:$0xf]
      %v1519 = vld [vmem:[%s9 + $0x10] sm:$0xf]
      %v1520 = vld [vmem:[%s9 + $0x14] sm:$0xf]
      %v1521 = vld [vmem:[%s9 + $0x18] sm:$0xf]
      %v1522 = vld [vmem:[%s9 + $0x1c] sm:$0xf]
      %v1523 = vld [vmem:[%s9 + $0x20] sm:$0xf]
      %v1524 = vld [vmem:[%s9 + $0x24] sm:$0xf]
      %v1525 = vld [vmem:[%s9 + $0x28] sm:$0xf]
      %v1526 = vld [vmem:[%s9 + $0x2c] sm:$0xf]
      %v1527 = vld [vmem:[%s9 + $0x30] sm:$0xf]
      %v1528 = vld [vmem:[%s9 + $0x34] sm:$0xf]
      %v1529 = vld [vmem:[%s9 + $0x38] sm:$0xf]
      %v1530 = vld [vmem:[%s9 + $0x3c] sm:$0xf]
      %v1531 = vld [vmem:[%s12] sm:$0x1]
      %v1532 = vld [vmem:[%s12 + $0x1] sm:$0x1]
      %v1533 = vld [vmem:[%s12 + $0x2] sm:$0x1]
      %v1534 = vld [vmem:[%s12 + $0x3] sm:$0x1]
      %v1539 = vperm.slane %v1531, 0
      %v1540 = vperm.slane %v1532, 0
      %v1541 = vperm.slane %v1533, 0
      %v1542 = vperm.slane %v1534, 0
      %v1551 = vunpack.c.l.b16 %v1515
      %v1552 = vunpack.c.l.b16 %v1516
      %v1553 = vunpack.c.l.b16 %v1517
      %v1554 = vunpack.c.l.b16 %v1518
      %v1555 = vpack.c.b16 %v1552, %v1551
      %v1556 = vpack.c.b16 %v1554, %v1553
      %1559 = vmatpush.bf16.msra.mxu0 0
      %1560 = vmatpush.bf16.msra.mxu0 0
      %1561 = vmatpush.bf16.msra.mxu0 0
      %1562 = vmatpush.bf16.msra.mxu0 0
      %1563 = vmatpush.bf16.msra.mxu0 0
      %1564 = vmatpush.bf16.msra.mxu0 0
      %1565 = vmatpush.bf16.msra.mxu0 %v1556
      %1566 = vmatpush.bf16.msra.mxu0 %v1555
      %1567 = vmatmul.bf16.gmra.mxu0 %v1293
      %v1568 = vpop.f32.mrf.mxu0
      %v1569 = vadd.f32 %v1539, %v1568
      %v1570 = vpop.f32.mrf.mxu0
      %1571 = vdwg.mxu0
      %v1576 = vunpack.c.l.b16 %v1519
      %v1577 = vunpack.c.l.b16 %v1520
      %v1578 = vunpack.c.l.b16 %v1521
      %v1579 = vunpack.c.l.b16 %v1522
      %v1580 = vpack.c.b16 %v1577, %v1576
      %v1581 = vpack.c.b16 %v1579, %v1578
      %1584 = vmatpush.bf16.msra.mxu0 0
      %1585 = vmatpush.bf16.msra.mxu0 0
      %1586 = vmatpush.bf16.msra.mxu0 0
      %1587 = vmatpush.bf16.msra.mxu0 0
      %1588 = vmatpush.bf16.msra.mxu0 0
      %1589 = vmatpush.bf16.msra.mxu0 0
      %1590 = vmatpush.bf16.msra.mxu0 %v1581
      %1591 = vmatpush.bf16.msra.mxu0 %v1580
      %1592 = vmatmul.bf16.gmra.mxu0 %v1293
      %v1593 = vpop.f32.mrf.mxu0
      %v1594 = vadd.f32 %v1540, %v1593
      %v1595 = vpop.f32.mrf.mxu0
      %1596 = vdwg.mxu0
      %v1601 = vunpack.c.l.b16 %v1523
      %v1602 = vunpack.c.l.b16 %v1524
      %v1603 = vunpack.c.l.b16 %v1525
      %v1604 = vunpack.c.l.b16 %v1526
      %v1605 = vpack.c.b16 %v1602, %v1601
      %v1606 = vpack.c.b16 %v1604, %v1603
      %1609 = vmatpush.bf16.msra.mxu0 0
      %1610 = vmatpush.bf16.msra.mxu0 0
      %1611 = vmatpush.bf16.msra.mxu0 0
      %1612 = vmatpush.bf16.msra.mxu0 0
      %1613 = vmatpush.bf16.msra.mxu0 0
      %1614 = vmatpush.bf16.msra.mxu0 0
      %1615 = vmatpush.bf16.msra.mxu0 %v1606
      %1616 = vmatpush.bf16.msra.mxu0 %v1605
      %1617 = vmatmul.bf16.gmra.mxu0 %v1293
      %v1618 = vpop.f32.mrf.mxu0
      %v1619 = vadd.f32 %v1541, %v1618
      %v1620 = vpop.f32.mrf.mxu0
      %1621 = vdwg.mxu0
      %v1626 = vunpack.c.l.b16 %v1527
      %v1627 = vunpack.c.l.b16 %v1528
      %v1628 = vunpack.c.l.b16 %v1529
      %v1629 = vunpack.c.l.b16 %v1530
      %v1630 = vpack.c.b16 %v1627, %v1626
      %v1631 = vpack.c.b16 %v1629, %v1628
      %1634 = vmatpush.bf16.msra.mxu0 0
      %1635 = vmatpush.bf16.msra.mxu0 0
      %1636 = vmatpush.bf16.msra.mxu0 0
      %1637 = vmatpush.bf16.msra.mxu0 0
      %1638 = vmatpush.bf16.msra.mxu0 0
      %1639 = vmatpush.bf16.msra.mxu0 0
      %1640 = vmatpush.bf16.msra.mxu0 %v1631
      %1641 = vmatpush.bf16.msra.mxu0 %v1630
      %1642 = vmatmul.bf16.gmra.mxu0 %v1293
      %v1643 = vpop.f32.mrf.mxu0
      %v1644 = vadd.f32 %v1542, %v1643
      %v1645 = vpop.f32.mrf.mxu0
      %1646 = vdwg.mxu0
      %v1647 = vpack.c.bf16 %v1305, %v1305
      %v1648 = vpack.c.bf16 %v1330, %v1330
      %v1649 = vpack.c.bf16 %v1355, %v1355
      %v1650 = vpack.c.bf16 %v1380, %v1380
      %v1651 = vpack.c.bf16 %v1437, %v1437
      %v1652 = vpack.c.bf16 %v1462, %v1462
      %v1653 = vpack.c.bf16 %v1487, %v1487
      %v1654 = vpack.c.bf16 %v1512, %v1512
      %vm1655 = vcmask 64512
      %v1657 = vsel %vm1655, %v1647, 0
      %v1660 = vsel %vm1655, %v1651, 0
      %1662 = vmatpush.bf16.xpose.msra.mxu0 0
      %1663 = vmatpush.bf16.xpose.msra.mxu0 0
      %1664 = vmatpush.bf16.xpose.msra.mxu0 0
      %1665 = vmatpush.bf16.xpose.msra.mxu0 0
      %1666 = vmatpush.bf16.xpose.msra.mxu0 0
      %1667 = vmatpush.bf16.xpose.msra.mxu0 0
      %1668 = vmatpush.bf16.xpose.msra.mxu0 0
      %1669 = vmatpush.bf16.xpose.msra.mxu0 %v1660
      %1670 = vmatmul.bf16.gmra.mxu0 %v1657
      %v1671 = vpop.f32.mrf.mxu0
      %v1672 = vadd.f32 0.0, %v1671
      %v1673 = vpop.f32.mrf.mxu0
      %1674 = vdwg.mxu0
      %v1676 = vsel %vm1655, %v1648, 0
      %v1679 = vsel %vm1655, %v1652, 0
      %1681 = vmatpush.bf16.xpose.msra.mxu0 0
      %1682 = vmatpush.bf16.xpose.msra.mxu0 0
      %1683 = vmatpush.bf16.xpose.msra.mxu0 0
      %1684 = vmatpush.bf16.xpose.msra.mxu0 0
      %1685 = vmatpush.bf16.xpose.msra.mxu0 0
      %1686 = vmatpush.bf16.xpose.msra.mxu0 0
      %1687 = vmatpush.bf16.xpose.msra.mxu0 0
      %1688 = vmatpush.bf16.xpose.msra.mxu0 %v1679
      %1689 = vmatmul.bf16.gmra.mxu0 %v1676
      %v1690 = vpop.f32.mrf.mxu0
      %v1691 = vadd.f32 0.0, %v1690
      %v1692 = vpop.f32.mrf.mxu0
      %1693 = vdwg.mxu0
      %v1695 = vsel %vm1655, %v1649, 0
      %v1698 = vsel %vm1655, %v1653, 0
      %1700 = vmatpush.bf16.xpose.msra.mxu0 0
      %1701 = vmatpush.bf16.xpose.msra.mxu0 0
      %1702 = vmatpush.bf16.xpose.msra.mxu0 0
      %1703 = vmatpush.bf16.xpose.msra.mxu0 0
      %1704 = vmatpush.bf16.xpose.msra.mxu0 0
      %1705 = vmatpush.bf16.xpose.msra.mxu0 0
      %1706 = vmatpush.bf16.xpose.msra.mxu0 0
      %1707 = vmatpush.bf16.xpose.msra.mxu0 %v1698
      %1708 = vmatmul.bf16.gmra.mxu0 %v1695
      %v1709 = vpop.f32.mrf.mxu0
      %v1710 = vadd.f32 0.0, %v1709
      %v1711 = vpop.f32.mrf.mxu0
      %1712 = vdwg.mxu0
      %v1714 = vsel %vm1655, %v1650, 0
      %v1717 = vsel %vm1655, %v1654, 0
      %1719 = vmatpush.bf16.xpose.msra.mxu0 0
      %1720 = vmatpush.bf16.xpose.msra.mxu0 0
      %1721 = vmatpush.bf16.xpose.msra.mxu0 0
      %1722 = vmatpush.bf16.xpose.msra.mxu0 0
      %1723 = vmatpush.bf16.xpose.msra.mxu0 0
      %1724 = vmatpush.bf16.xpose.msra.mxu0 0
      %1725 = vmatpush.bf16.xpose.msra.mxu0 0
      %1726 = vmatpush.bf16.xpose.msra.mxu0 %v1717
      %1727 = vmatmul.bf16.gmra.mxu0 %v1714
      %v1728 = vpop.f32.mrf.mxu0
      %v1729 = vadd.f32 0.0, %v1728
      %v1730 = vpop.f32.mrf.mxu0
      %1731 = vdwg.mxu0
      %vm1732 = vcmask 36864
      %v1733 = vsel %vm1732, %v1672, -inf
      %1734 = vmax.xlane.f32.xlu0 %v1733
      %v1735 = vpop.xlane.xlu0 %1734
      %v1736 = vsel %vm1732, %v1691, -inf
      %1737 = vmax.xlane.f32.xlu0 %v1736
      %v1738 = vpop.xlane.xlu0 %1737
      %v1739 = vsel %vm1732, %v1710, -inf
      %1740 = vmax.xlane.f32.xlu0 %v1739
      %v1741 = vpop.xlane.xlu0 %1740
      %v1742 = vsel %vm1732, %v1729, -inf
      %1743 = vmax.xlane.f32.xlu0 %v1742
      %v1744 = vpop.xlane.xlu0 %1743
      %v1745 = vsub.f32 %v1672, %v1735
      %v1746 = vsub.f32 %v1691, %v1738
      %v1747 = vsub.f32 %v1710, %v1741
      %v1748 = vsub.f32 %v1729, %v1744
      %v1749 = vmul.f32 %v1745, 1.442695
      %v1750 = vpow.pop %v1749
      %v1751 = vmul.f32 %v1746, 1.442695
      %v1752 = vpow.pop %v1751
      %v1753 = vmul.f32 %v1747, 1.442695
      %v1754 = vpow.pop %v1753
      %v1755 = vmul.f32 %v1748, 1.442695
      %v1756 = vpow.pop %v1755
      %v1757 = vsel %vm1732, %v1750, 0.0
      %1758 = vadd.xlane.f32.xlu0 %v1757
      %v1759 = vpop.xlane.xlu0 %1758
      %v1760 = vsel %vm1732, %v1752, 0.0
      %1761 = vadd.xlane.f32.xlu0 %v1760
      %v1762 = vpop.xlane.xlu0 %1761
      %v1763 = vsel %vm1732, %v1754, 0.0
      %1764 = vadd.xlane.f32.xlu0 %v1763
      %v1765 = vpop.xlane.xlu0 %1764
      %v1766 = vsel %vm1732, %v1756, 0.0
      %1767 = vadd.xlane.f32.xlu0 %v1766
      %v1768 = vpop.xlane.xlu0 %1767
      %v1769 = vrcp.pop %v1759
      %v1770 = vrcp.pop %v1762
      %v1771 = vrcp.pop %v1765
      %v1772 = vrcp.pop %v1768
      %v1773 = vmul.f32 %v1750, %v1769
      %v1774 = vmul.f32 %v1752, %v1770
      %v1775 = vmul.f32 %v1754, %v1771
      %v1776 = vmul.f32 %v1756, %v1772
      %v1777 = vpack.c.bf16 %v1773, %v1773
      %v1778 = vpack.c.bf16 %v1774, %v1774
      %v1779 = vpack.c.bf16 %v1775, %v1775
      %v1780 = vpack.c.bf16 %v1776, %v1776
      %v1781 = vpack.c.bf16 %v1569, %v1569
      %v1782 = vpack.c.bf16 %v1594, %v1594
      %v1783 = vpack.c.bf16 %v1619, %v1619
      %v1784 = vpack.c.bf16 %v1644, %v1644
      %vm1785 = vcmask 39936
      %v1787 = vsel %vm1785, %v1777, 0
      %vm1789 = vcmask 1041408
      %vm1790 = vcmask 1042432
      %v1791 = vsel %vm1789, 4294967295, 65535
      %v1792 = vsel %vm1790, %v1791, 0
      %v1794 = vand.u32 %v1781, %v1792
      %1796 = vmatpush.bf16.msra.mxu0 0
      %1797 = vmatpush.bf16.msra.mxu0 0
      %1798 = vmatpush.bf16.msra.mxu0 0
      %1799 = vmatpush.bf16.msra.mxu0 0
      %1800 = vmatpush.bf16.msra.mxu0 0
      %1801 = vmatpush.bf16.msra.mxu0 0
      %1802 = vmatpush.bf16.msra.mxu0 0
      %1803 = vmatpush.bf16.msra.mxu0 %v1794
      %1804 = vmatmul.bf16.gmra.mxu0 %v1787
      %v1805 = vpop.f32.mrf.mxu0
      %v1806 = vadd.f32 0.0, %v1805
      %v1807 = vpop.f32.mrf.mxu0
      %1808 = vdwg.mxu0
      %v1810 = vsel %vm1785, %v1778, 0
      %v1813 = vand.u32 %v1782, %v1792
      %1815 = vmatpush.bf16.msra.mxu0 0
      %1816 = vmatpush.bf16.msra.mxu0 0
      %1817 = vmatpush.bf16.msra.mxu0 0
      %1818 = vmatpush.bf16.msra.mxu0 0
      %1819 = vmatpush.bf16.msra.mxu0 0
      %1820 = vmatpush.bf16.msra.mxu0 0
      %1821 = vmatpush.bf16.msra.mxu0 0
      %1822 = vmatpush.bf16.msra.mxu0 %v1813
      %1823 = vmatmul.bf16.gmra.mxu0 %v1810
      %v1824 = vpop.f32.mrf.mxu0
      %v1825 = vadd.f32 0.0, %v1824
      %v1826 = vpop.f32.mrf.mxu0
      %1827 = vdwg.mxu0
      %v1829 = vsel %vm1785, %v1779, 0
      %v1832 = vand.u32 %v1783, %v1792
      %1834 = vmatpush.bf16.msra.mxu0 0
      %1835 = vmatpush.bf16.msra.mxu0 0
      %1836 = vmatpush.bf16.msra.mxu0 0
      %1837 = vmatpush.bf16.msra.mxu0 0
      %1838 = vmatpush.bf16.msra.mxu0 0
      %1839 = vmatpush.bf16.msra.mxu0 0
      %1840 = vmatpush.bf16.msra.mxu0 0
      %1841 = vmatpush.bf16.msra.mxu0 %v1832
      %1842 = vmatmul.bf16.gmra.mxu0 %v1829
      %v1843 = vpop.f32.mrf.mxu0
      %v1844 = vadd.f32 0.0, %v1843
      %v1845 = vpop.f32.mrf.mxu0
      %1846 = vdwg.mxu0
      %v1848 = vsel %vm1785, %v1780, 0
      %v1851 = vand.u32 %v1784, %v1792
      %1853 = vmatpush.bf16.msra.mxu0 0
      %1854 = vmatpush.bf16.msra.mxu0 0
      %1855 = vmatpush.bf16.msra.mxu0 0
      %1856 = vmatpush.bf16.msra.mxu0 0
      %1857 = vmatpush.bf16.msra.mxu0 0
      %1858 = vmatpush.bf16.msra.mxu0 0
      %1859 = vmatpush.bf16.msra.mxu0 0
      %1860 = vmatpush.bf16.msra.mxu0 %v1851
      %1861 = vmatmul.bf16.gmra.mxu0 %v1848
      %v1862 = vpop.f32.mrf.mxu0
      %v1863 = vadd.f32 0.0, %v1862
      %v1864 = vpop.f32.mrf.mxu0
      %1865 = vdwg.mxu0
      %v1866 = vpack.c.bf16 %v1806, %v1806
      %v1867 = vpack.c.bf16 %v1825, %v1825
      %v1868 = vpack.c.bf16 %v1844, %v1844
      %v1869 = vpack.c.bf16 %v1863, %v1863
      %v1870 = vld [vmem:[%s13] sm:$0xf]
      %v1871 = vld [vmem:[%s13 + $0x4] sm:$0xf]
      %v1872 = vld [vmem:[%s13 + $0x8] sm:$0xf]
      %v1873 = vld [vmem:[%s13 + $0xc] sm:$0xf]
      %v1875 = vsel %vm1655, %v1866, 0
      %vm1877 = vcmask 1043456
      %v1879 = vsel %vm1877, %v1870, 0
      %1881 = vmatpush.bf16.msra.mxu0 0
      %1882 = vmatpush.bf16.msra.mxu0 0
      %1883 = vmatpush.bf16.msra.mxu0 0
      %1884 = vmatpush.bf16.msra.mxu0 0
      %1885 = vmatpush.bf16.msra.mxu0 0
      %1886 = vmatpush.bf16.msra.mxu0 0
      %1887 = vmatpush.bf16.msra.mxu0 0
      %1888 = vmatpush.bf16.msra.mxu0 %v1879
      %1889 = vmatmul.bf16.gmra.mxu0 %v1875
      %v1890 = vpop.f32.mrf.mxu0
      %v1891 = vadd.f32 0.0, %v1890
      %v1892 = vpop.f32.mrf.mxu0
      %1893 = vdwg.mxu0
      %v1895 = vsel %vm1655, %v1867, 0
      %v1898 = vsel %vm1877, %v1871, 0
      %1900 = vmatpush.bf16.msra.mxu0 0
      %1901 = vmatpush.bf16.msra.mxu0 0
      %1902 = vmatpush.bf16.msra.mxu0 0
      %1903 = vmatpush.bf16.msra.mxu0 0
      %1904 = vmatpush.bf16.msra.mxu0 0
      %1905 = vmatpush.bf16.msra.mxu0 0
      %1906 = vmatpush.bf16.msra.mxu0 0
      %1907 = vmatpush.bf16.msra.mxu0 %v1898
      %1908 = vmatmul.bf16.gmra.mxu0 %v1895
      %v1909 = vpop.f32.mrf.mxu0
      %v1910 = vadd.f32 0.0, %v1909
      %v1911 = vpop.f32.mrf.mxu0
      %1912 = vdwg.mxu0
      %v1914 = vsel %vm1655, %v1868, 0
      %v1917 = vsel %vm1877, %v1872, 0
      %1919 = vmatpush.bf16.msra.mxu0 0
      %1920 = vmatpush.bf16.msra.mxu0 0
      %1921 = vmatpush.bf16.msra.mxu0 0
      %1922 = vmatpush.bf16.msra.mxu0 0
      %1923 = vmatpush.bf16.msra.mxu0 0
      %1924 = vmatpush.bf16.msra.mxu0 0
      %1925 = vmatpush.bf16.msra.mxu0 0
      %1926 = vmatpush.bf16.msra.mxu0 %v1917
      %1927 = vmatmul.bf16.gmra.mxu0 %v1914
      %v1928 = vpop.f32.mrf.mxu0
      %v1929 = vadd.f32 0.0, %v1928
      %v1930 = vpop.f32.mrf.mxu0
      %1931 = vdwg.mxu0
      %v1933 = vsel %vm1655, %v1869, 0
      %v1936 = vsel %vm1877, %v1873, 0
      %1938 = vmatpush.bf16.msra.mxu0 0
      %1939 = vmatpush.bf16.msra.mxu0 0
      %1940 = vmatpush.bf16.msra.mxu0 0
      %1941 = vmatpush.bf16.msra.mxu0 0
      %1942 = vmatpush.bf16.msra.mxu0 0
      %1943 = vmatpush.bf16.msra.mxu0 0
      %1944 = vmatpush.bf16.msra.mxu0 0
      %1945 = vmatpush.bf16.msra.mxu0 %v1936
      %1946 = vmatmul.bf16.gmra.mxu0 %v1933
      %v1947 = vpop.f32.mrf.mxu0
      %v1948 = vadd.f32 0.0, %v1947
      %v1949 = vpop.f32.mrf.mxu0
      %1950 = vdwg.mxu0
      %v1951 = vsel %vm1208, %v1891, 0.0
      %v1952 = vsel %vm1208, %v1910, 0.0
      %v1953 = vadd.f32 %v1951, %v1952
      %v1954 = vsel %vm1208, %v1929, 0.0
      %v1955 = vadd.f32 %v1953, %v1954
      %v1956 = vsel %vm1208, %v1948, 0.0
      %v1957 = vadd.f32 %v1955, %v1956
      %v1958 = vld [vmem:[%s14] sm:$0x1]
      %v1960 = vperm.slane %v1958, 0
      %v1962 = vadd.f32 %v1957, %v1960
      %v1963 = vadd.f32 %v1205, %v1962
      %v1964 = vld [vmem:[%s15] sm:$0x1]
      %v1965 = vld [vmem:[%s16] sm:$0x1]
      %v1966 = vsel %vm1208, %v1963, 0.0
      %1967 = vadd.xlane.f32.xlu0 %v1966
      %v1968 = vpop.xlane.xlu0 %1967
      %v1969 = vmul.f32 %v1968, %v1218
      %v1970 = vsub.f32 %v1963, %v1969
      %v1971 = vmul.f32 %v1970, %v1970
      %v1972 = vsel %vm1208, %v1971, 0.0
      %1973 = vadd.xlane.f32.xlu0 %v1972
      %v1974 = vpop.xlane.xlu0 %1973
      %v1975 = vmul.f32 %v1974, %v1218
      %v1976 = vadd.f32 %v1975, 1e-06
      %v1977 = vrsqrt.pop %v1976
      %v1978 = vmul.f32 %v1977, %v1976
      %v1979 = vmul.f32 %v1978, %v1977
      %v1980 = vmul.f32 0.5, %v1979
      %v1981 = vsub.f32 1.5, %v1980
      %v1982 = vmul.f32 %v1977, %v1981
      %vm1983 = vweird.f32 %v1976
      %vm1984 = vweird.f32 %v1977
      %vm1985 = vmor %vm1983, %vm1984
      %v1986 = vsel %vm1985, %v1977, %v1982
      %v1987 = vmul.f32 %v1970, %v1986
      %v1989 = vperm.slane %v1964, 0
      %v1991 = vmul.f32 %v1987, %v1989
      %v1993 = vperm.slane %v1965, 0
      %v1995 = vadd.f32 %v1991, %v1993
      %v1996 = vpack.c.bf16 %v1995, %v1995
      %v1997 = vld [vmem:[%s17] sm:$0xf]
      %v1998 = vld [vmem:[%s17 + $0x4] sm:$0xf]
      %v1999 = vld [vmem:[%s17 + $0x8] sm:$0xf]
      %v2000 = vld [vmem:[%s17 + $0xc] sm:$0xf]
      %v2001 = vld [vmem:[%s18] sm:$0x1]
      %v2003 = vperm.slane %v2001, 0
      %v2009 = vunpack.c.l.b16 %v1997
      %v2010 = vunpack.c.l.b16 %v1998
      %v2011 = vunpack.c.l.b16 %v1999
      %v2012 = vunpack.c.l.b16 %v2000
      %v2013 = vpack.c.b16 %v2010, %v2009
      %v2014 = vpack.c.b16 %v2012, %v2011
      %v2018 = vsel %vm1291, %v1996, 0
      %2020 = vmatpush.bf16.msra.mxu0 0
      %2021 = vmatpush.bf16.msra.mxu0 0
      %2022 = vmatpush.bf16.msra.mxu0 0
      %2023 = vmatpush.bf16.msra.mxu0 0
      %2024 = vmatpush.bf16.msra.mxu0 0
      %2025 = vmatpush.bf16.msra.mxu0 0
      %2026 = vmatpush.bf16.msra.mxu0 %v2014
      %2027 = vmatpush.bf16.msra.mxu0 %v2013
      %2028 = vmatmul.bf16.gmra.mxu0 %v2018
      %v2029 = vpop.f32.mrf.mxu0
      %v2030 = vadd.f32 %v2003, %v2029
      %v2031 = vpop.f32.mrf.mxu0
      %2032 = vdwg.mxu0
      %v2033 = vmul.f32 %v2030, 0.5
      %v2034 = vmul.f32 %v2030, 0.044715
      %v2035 = vmul.f32 %v2034, %v2030
      %v2036 = vmul.f32 %v2035, %v2030
      %v2037 = vadd.f32 %v2030, %v2036
      %v2038 = vmul.f32 %v2037, 0.7978846
      %v2039 = vtanh.pop %v2038
      %v2040 = vadd.f32 %v2039, 1.0
      %v2041 = vmul.f32 %v2033, %v2040
      %v2042 = vpack.c.bf16 %v2041, %v2041
      %v2043 = vld [vmem:[%s19] sm:$0xf]
      %v2044 = vld [vmem:[%s19 + $0x4] sm:$0xf]
      %v2045 = vld [vmem:[%s19 + $0x8] sm:$0xf]
      %v2046 = vld [vmem:[%s19 + $0xc] sm:$0xf]
      %v2047 = vld [vmem:[%s19 + $0x10] sm:$0xf]
      %v2048 = vld [vmem:[%s19 + $0x14] sm:$0xf]
      %v2049 = vld [vmem:[%s19 + $0x18] sm:$0xf]
      %v2050 = vld [vmem:[%s19 + $0x1c] sm:$0xf]
      %v2051 = vld [vmem:[%s20] sm:$0x1]
      %v2053 = vperm.slane %v2051, 0
      %v2063 = vunpack.c.l.b16 %v2043
      %v2064 = vunpack.c.l.b16 %v2044
      %v2065 = vunpack.c.l.b16 %v2045
      %v2066 = vunpack.c.l.b16 %v2046
      %v2067 = vunpack.c.l.b16 %v2047
      %v2068 = vunpack.c.l.b16 %v2048
      %v2069 = vunpack.c.l.b16 %v2049
      %v2070 = vunpack.c.l.b16 %v2050
      %v2071 = vpack.c.b16 %v2064, %v2063
      %v2072 = vpack.c.b16 %v2066, %v2065
      %v2073 = vpack.c.b16 %v2068, %v2067
      %v2074 = vpack.c.b16 %v2070, %v2069
      %vm2079 = vcmask 523264
      %v2081 = vsel %vm2079, %v2042, 0
      %2083 = vmatpush.bf16.msra.mxu0 0
      %2084 = vmatpush.bf16.msra.mxu0 0
      %2085 = vmatpush.bf16.msra.mxu0 0
      %2086 = vmatpush.bf16.msra.mxu0 0
      %2087 = vmatpush.bf16.msra.mxu0 %v2074
      %2088 = vmatpush.bf16.msra.mxu0 %v2073
      %2089 = vmatpush.bf16.msra.mxu0 %v2072
      %2090 = vmatpush.bf16.msra.mxu0 %v2071
      %2091 = vmatmul.bf16.gmra.mxu0 %v2081
      %v2092 = vpop.f32.mrf.mxu0
      %v2093 = vadd.f32 %v2053, %v2092
      %v2094 = vpop.f32.mrf.mxu0
      %2095 = vdwg.mxu0
      %v2096 = vadd.f32 %v1963, %v2093
      %s2097 = scalar_lea.vmem %s5, 1
      %v2098 = vld [vmem:[%s2097] sm:$0x1]
      %s2099 = scalar_lea.vmem %s6, 1
      %v2100 = vld [vmem:[%s2099] sm:$0x1]
      %v2101 = vsel %vm1208, %v2096, 0.0
      %2102 = vadd.xlane.f32.xlu0 %v2101
      %v2103 = vpop.xlane.xlu0 %2102
      %v2104 = vmul.f32 %v2103, %v1218
      %v2105 = vsub.f32 %v2096, %v2104
      %v2106 = vmul.f32 %v2105, %v2105
      %v2107 = vsel %vm1208, %v2106, 0.0
      %2108 = vadd.xlane.f32.xlu0 %v2107
      %v2109 = vpop.xlane.xlu0 %2108
      %v2110 = vmul.f32 %v2109, %v1218
      %v2111 = vadd.f32 %v2110, 1e-06
      %v2112 = vrsqrt.pop %v2111
      %v2113 = vmul.f32 %v2112, %v2111
      %v2114 = vmul.f32 %v2113, %v2112
      %v2115 = vmul.f32 0.5, %v2114
      %v2116 = vsub.f32 1.5, %v2115
      %v2117 = vmul.f32 %v2112, %v2116
      %vm2118 = vweird.f32 %v2111
      %vm2119 = vweird.f32 %v2112
      %vm2120 = vmor %vm2118, %vm2119
      %v2121 = vsel %vm2120, %v2112, %v2117
      %v2122 = vmul.f32 %v2105, %v2121
      %v2124 = vperm.slane %v2098, 0
      %v2126 = vmul.f32 %v2122, %v2124
      %v2128 = vperm.slane %v2100, 0
      %v2130 = vadd.f32 %v2126, %v2128
      %v2131 = vpack.c.bf16 %v2130, %v2130
      %s2132 = scalar_lea.vmem %s7, 64
      %v2133 = vld [vmem:[%s2132] sm:$0xf]
      %v2134 = vld [vmem:[%s2132 + $0x4] sm:$0xf]
      %v2135 = vld [vmem:[%s2132 + $0x8] sm:$0xf]
      %v2136 = vld [vmem:[%s2132 + $0xc] sm:$0xf]
      %v2137 = vld [vmem:[%s2132 + $0x10] sm:$0xf]
      %v2138 = vld [vmem:[%s2132 + $0x14] sm:$0xf]
      %v2139 = vld [vmem:[%s2132 + $0x18] sm:$0xf]
      %v2140 = vld [vmem:[%s2132 + $0x1c] sm:$0xf]
      %v2141 = vld [vmem:[%s2132 + $0x20] sm:$0xf]
      %v2142 = vld [vmem:[%s2132 + $0x24] sm:$0xf]
      %v2143 = vld [vmem:[%s2132 + $0x28] sm:$0xf]
      %v2144 = vld [vmem:[%s2132 + $0x2c] sm:$0xf]
      %v2145 = vld [vmem:[%s2132 + $0x30] sm:$0xf]
      %v2146 = vld [vmem:[%s2132 + $0x34] sm:$0xf]
      %v2147 = vld [vmem:[%s2132 + $0x38] sm:$0xf]
      %v2148 = vld [vmem:[%s2132 + $0x3c] sm:$0xf]
      %s2149 = scalar_lea.vmem %s10, 4
      %v2150 = vld [vmem:[%s2149] sm:$0x1]
      %v2151 = vld [vmem:[%s2149 + $0x1] sm:$0x1]
      %v2152 = vld [vmem:[%s2149 + $0x2] sm:$0x1]
      %v2153 = vld [vmem:[%s2149 + $0x3] sm:$0x1]
      %v2158 = vperm.slane %v2150, 0
      %v2159 = vperm.slane %v2151, 0
      %v2160 = vperm.slane %v2152, 0
      %v2161 = vperm.slane %v2153, 0
      %v2170 = vunpack.c.l.b16 %v2133
      %v2171 = vunpack.c.l.b16 %v2134
      %v2172 = vunpack.c.l.b16 %v2135
      %v2173 = vunpack.c.l.b16 %v2136
      %v2174 = vpack.c.b16 %v2171, %v2170
      %v2175 = vpack.c.b16 %v2173, %v2172
      %v2179 = vsel %vm1291, %v2131, 0
      %2181 = vmatpush.bf16.msra.mxu0 0
      %2182 = vmatpush.bf16.msra.mxu0 0
      %2183 = vmatpush.bf16.msra.mxu0 0
      %2184 = vmatpush.bf16.msra.mxu0 0
      %2185 = vmatpush.bf16.msra.mxu0 0
      %2186 = vmatpush.bf16.msra.mxu0 0
      %2187 = vmatpush.bf16.msra.mxu0 %v2175
      %2188 = vmatpush.bf16.msra.mxu0 %v2174
      %2189 = vmatmul.bf16.gmra.mxu0 %v2179
      %v2190 = vpop.f32.mrf.mxu0
      %v2191 = vadd.f32 %v2158, %v2190
      %v2192 = vpop.f32.mrf.mxu0
      %2193 = vdwg.mxu0
      %v2198 = vunpack.c.l.b16 %v2137
      %v2199 = vunpack.c.l.b16 %v2138
      %v2200 = vunpack.c.l.b16 %v2139
      %v2201 = vunpack.c.l.b16 %v2140
      %v2202 = vpack.c.b16 %v2199, %v2198
      %v2203 = vpack.c.b16 %v2201, %v2200
      %2206 = vmatpush.bf16.msra.mxu0 0
      %2207 = vmatpush.bf16.msra.mxu0 0
      %2208 = vmatpush.bf16.msra.mxu0 0
      %2209 = vmatpush.bf16.msra.mxu0 0
      %2210 = vmatpush.bf16.msra.mxu0 0
      %2211 = vmatpush.bf16.msra.mxu0 0
      %2212 = vmatpush.bf16.msra.mxu0 %v2203
      %2213 = vmatpush.bf16.msra.mxu0 %v2202
      %2214 = vmatmul.bf16.gmra.mxu0 %v2179
      %v2215 = vpop.f32.mrf.mxu0
      %v2216 = vadd.f32 %v2159, %v2215
      %v2217 = vpop.f32.mrf.mxu0
      %2218 = vdwg.mxu0
      %v2223 = vunpack.c.l.b16 %v2141
      %v2224 = vunpack.c.l.b16 %v2142
      %v2225 = vunpack.c.l.b16 %v2143
      %v2226 = vunpack.c.l.b16 %v2144
      %v2227 = vpack.c.b16 %v2224, %v2223
      %v2228 = vpack.c.b16 %v2226, %v2225
      %2231 = vmatpush.bf16.msra.mxu0 0
      %2232 = vmatpush.bf16.msra.mxu0 0
      %2233 = vmatpush.bf16.msra.mxu0 0
      %2234 = vmatpush.bf16.msra.mxu0 0
      %2235 = vmatpush.bf16.msra.mxu0 0
      %2236 = vmatpush.bf16.msra.mxu0 0
      %2237 = vmatpush.bf16.msra.mxu0 %v2228
      %2238 = vmatpush.bf16.msra.mxu0 %v2227
      %2239 = vmatmul.bf16.gmra.mxu0 %v2179
      %v2240 = vpop.f32.mrf.mxu0
      %v2241 = vadd.f32 %v2160, %v2240
      %v2242 = vpop.f32.mrf.mxu0
      %2243 = vdwg.mxu0
      %v2248 = vunpack.c.l.b16 %v2145
      %v2249 = vunpack.c.l.b16 %v2146
      %v2250 = vunpack.c.l.b16 %v2147
      %v2251 = vunpack.c.l.b16 %v2148
      %v2252 = vpack.c.b16 %v2249, %v2248
      %v2253 = vpack.c.b16 %v2251, %v2250
      %2256 = vmatpush.bf16.msra.mxu0 0
      %2257 = vmatpush.bf16.msra.mxu0 0
      %2258 = vmatpush.bf16.msra.mxu0 0
      %2259 = vmatpush.bf16.msra.mxu0 0
      %2260 = vmatpush.bf16.msra.mxu0 0
      %2261 = vmatpush.bf16.msra.mxu0 0
      %2262 = vmatpush.bf16.msra.mxu0 %v2253
      %2263 = vmatpush.bf16.msra.mxu0 %v2252
      %2264 = vmatmul.bf16.gmra.mxu0 %v2179
      %v2265 = vpop.f32.mrf.mxu0
      %v2266 = vadd.f32 %v2161, %v2265
      %v2267 = vpop.f32.mrf.mxu0
      %2268 = vdwg.mxu0
      %s2269 = scalar_lea.vmem %s8, 64
      %v2270 = vld [vmem:[%s2269] sm:$0xf]
      %v2271 = vld [vmem:[%s2269 + $0x4] sm:$0xf]
      %v2272 = vld [vmem:[%s2269 + $0x8] sm:$0xf]
      %v2273 = vld [vmem:[%s2269 + $0xc] sm:$0xf]
      %v2274 = vld [vmem:[%s2269 + $0x10] sm:$0xf]
      %v2275 = vld [vmem:[%s2269 + $0x14] sm:$0xf]
      %v2276 = vld [vmem:[%s2269 + $0x18] sm:$0xf]
      %v2277 = vld [vmem:[%s2269 + $0x1c] sm:$0xf]
      %v2278 = vld [vmem:[%s2269 + $0x20] sm:$0xf]
      %v2279 = vld [vmem:[%s2269 + $0x24] sm:$0xf]
      %v2280 = vld [vmem:[%s2269 + $0x28] sm:$0xf]
      %v2281 = vld [vmem:[%s2269 + $0x2c] sm:$0xf]
      %v2282 = vld [vmem:[%s2269 + $0x30] sm:$0xf]
      %v2283 = vld [vmem:[%s2269 + $0x34] sm:$0xf]
      %v2284 = vld [vmem:[%s2269 + $0x38] sm:$0xf]
      %v2285 = vld [vmem:[%s2269 + $0x3c] sm:$0xf]
      %s2286 = scalar_lea.vmem %s11, 4
      %v2287 = vld [vmem:[%s2286] sm:$0x1]
      %v2288 = vld [vmem:[%s2286 + $0x1] sm:$0x1]
      %v2289 = vld [vmem:[%s2286 + $0x2] sm:$0x1]
      %v2290 = vld [vmem:[%s2286 + $0x3] sm:$0x1]
      %v2295 = vperm.slane %v2287, 0
      %v2296 = vperm.slane %v2288, 0
      %v2297 = vperm.slane %v2289, 0
      %v2298 = vperm.slane %v2290, 0
      %v2307 = vunpack.c.l.b16 %v2270
      %v2308 = vunpack.c.l.b16 %v2271
      %v2309 = vunpack.c.l.b16 %v2272
      %v2310 = vunpack.c.l.b16 %v2273
      %v2311 = vpack.c.b16 %v2308, %v2307
      %v2312 = vpack.c.b16 %v2310, %v2309
      %2315 = vmatpush.bf16.msra.mxu0 0
      %2316 = vmatpush.bf16.msra.mxu0 0
      %2317 = vmatpush.bf16.msra.mxu0 0
      %2318 = vmatpush.bf16.msra.mxu0 0
      %2319 = vmatpush.bf16.msra.mxu0 0
      %2320 = vmatpush.bf16.msra.mxu0 0
      %2321 = vmatpush.bf16.msra.mxu0 %v2312
      %2322 = vmatpush.bf16.msra.mxu0 %v2311
      %2323 = vmatmul.bf16.gmra.mxu0 %v2179
      %v2324 = vpop.f32.mrf.mxu0
      %v2325 = vadd.f32 %v2295, %v2324
      %v2326 = vpop.f32.mrf.mxu0
      %2327 = vdwg.mxu0
      %v2332 = vunpack.c.l.b16 %v2274
      %v2333 = vunpack.c.l.b16 %v2275
      %v2334 = vunpack.c.l.b16 %v2276
      %v2335 = vunpack.c.l.b16 %v2277
      %v2336 = vpack.c.b16 %v2333, %v2332
      %v2337 = vpack.c.b16 %v2335, %v2334
      %2340 = vmatpush.bf16.msra.mxu0 0
      %2341 = vmatpush.bf16.msra.mxu0 0
      %2342 = vmatpush.bf16.msra.mxu0 0
      %2343 = vmatpush.bf16.msra.mxu0 0
      %2344 = vmatpush.bf16.msra.mxu0 0
      %2345 = vmatpush.bf16.msra.mxu0 0
      %2346 = vmatpush.bf16.msra.mxu0 %v2337
      %2347 = vmatpush.bf16.msra.mxu0 %v2336
      %2348 = vmatmul.bf16.gmra.mxu0 %v2179
      %v2349 = vpop.f32.mrf.mxu0
      %v2350 = vadd.f32 %v2296, %v2349
      %v2351 = vpop.f32.mrf.mxu0
      %2352 = vdwg.mxu0
      %v2357 = vunpack.c.l.b16 %v2278
      %v2358 = vunpack.c.l.b16 %v2279
      %v2359 = vunpack.c.l.b16 %v2280
      %v2360 = vunpack.c.l.b16 %v2281
      %v2361 = vpack.c.b16 %v2358, %v2357
      %v2362 = vpack.c.b16 %v2360, %v2359
      %2365 = vmatpush.bf16.msra.mxu0 0
      %2366 = vmatpush.bf16.msra.mxu0 0
      %2367 = vmatpush.bf16.msra.mxu0 0
      %2368 = vmatpush.bf16.msra.mxu0 0
      %2369 = vmatpush.bf16.msra.mxu0 0
      %2370 = vmatpush.bf16.msra.mxu0 0
      %2371 = vmatpush.bf16.msra.mxu0 %v2362
      %2372 = vmatpush.bf16.msra.mxu0 %v2361
      %2373 = vmatmul.bf16.gmra.mxu0 %v2179
      %v2374 = vpop.f32.mrf.mxu0
      %v2375 = vadd.f32 %v2297, %v2374
      %v2376 = vpop.f32.mrf.mxu0
      %2377 = vdwg.mxu0
      %v2382 = vunpack.c.l.b16 %v2282
      %v2383 = vunpack.c.l.b16 %v2283
      %v2384 = vunpack.c.l.b16 %v2284
      %v2385 = vunpack.c.l.b16 %v2285
      %v2386 = vpack.c.b16 %v2383, %v2382
      %v2387 = vpack.c.b16 %v2385, %v2384
      %2390 = vmatpush.bf16.msra.mxu0 0
      %2391 = vmatpush.bf16.msra.mxu0 0
      %2392 = vmatpush.bf16.msra.mxu0 0
      %2393 = vmatpush.bf16.msra.mxu0 0
      %2394 = vmatpush.bf16.msra.mxu0 0
      %2395 = vmatpush.bf16.msra.mxu0 0
      %2396 = vmatpush.bf16.msra.mxu0 %v2387
      %2397 = vmatpush.bf16.msra.mxu0 %v2386
      %2398 = vmatmul.bf16.gmra.mxu0 %v2179
      %v2399 = vpop.f32.mrf.mxu0
      %v2400 = vadd.f32 %v2298, %v2399
      %v2401 = vpop.f32.mrf.mxu0
      %2402 = vdwg.mxu0
      %s2403 = scalar_lea.vmem %s9, 64
      %v2404 = vld [vmem:[%s2403] sm:$0xf]
      %v2405 = vld [vmem:[%s2403 + $0x4] sm:$0xf]
      %v2406 = vld [vmem:[%s2403 + $0x8] sm:$0xf]
      %v2407 = vld [vmem:[%s2403 + $0xc] sm:$0xf]
      %v2408 = vld [vmem:[%s2403 + $0x10] sm:$0xf]
      %v2409 = vld [vmem:[%s2403 + $0x14] sm:$0xf]
      %v2410 = vld [vmem:[%s2403 + $0x18] sm:$0xf]
      %v2411 = vld [vmem:[%s2403 + $0x1c] sm:$0xf]
      %v2412 = vld [vmem:[%s2403 + $0x20] sm:$0xf]
      %v2413 = vld [vmem:[%s2403 + $0x24] sm:$0xf]
      %v2414 = vld [vmem:[%s2403 + $0x28] sm:$0xf]
      %v2415 = vld [vmem:[%s2403 + $0x2c] sm:$0xf]
      %v2416 = vld [vmem:[%s2403 + $0x30] sm:$0xf]
      %v2417 = vld [vmem:[%s2403 + $0x34] sm:$0xf]
      %v2418 = vld [vmem:[%s2403 + $0x38] sm:$0xf]
      %v2419 = vld [vmem:[%s2403 + $0x3c] sm:$0xf]
      %s2420 = scalar_lea.vmem %s12, 4
      %v2421 = vld [vmem:[%s2420] sm:$0x1]
      %v2422 = vld [vmem:[%s2420 + $0x1] sm:$0x1]
      %v2423 = vld [vmem:[%s2420 + $0x2] sm:$0x1]
      %v2424 = vld [vmem:[%s2420 + $0x3] sm:$0x1]
      %v2429 = vperm.slane %v2421, 0
      %v2430 = vperm.slane %v2422, 0
      %v2431 = vperm.slane %v2423, 0
      %v2432 = vperm.slane %v2424, 0
      %v2441 = vunpack.c.l.b16 %v2404
      %v2442 = vunpack.c.l.b16 %v2405
      %v2443 = vunpack.c.l.b16 %v2406
      %v2444 = vunpack.c.l.b16 %v2407
      %v2445 = vpack.c.b16 %v2442, %v2441
      %v2446 = vpack.c.b16 %v2444, %v2443
      %2449 = vmatpush.bf16.msra.mxu0 0
      %2450 = vmatpush.bf16.msra.mxu0 0
      %2451 = vmatpush.bf16.msra.mxu0 0
      %2452 = vmatpush.bf16.msra.mxu0 0
      %2453 = vmatpush.bf16.msra.mxu0 0
      %2454 = vmatpush.bf16.msra.mxu0 0
      %2455 = vmatpush.bf16.msra.mxu0 %v2446
      %2456 = vmatpush.bf16.msra.mxu0 %v2445
      %2457 = vmatmul.bf16.gmra.mxu0 %v2179
      %v2458 = vpop.f32.mrf.mxu0
      %v2459 = vadd.f32 %v2429, %v2458
      %v2460 = vpop.f32.mrf.mxu0
      %2461 = vdwg.mxu0
      %v2466 = vunpack.c.l.b16 %v2408
      %v2467 = vunpack.c.l.b16 %v2409
      %v2468 = vunpack.c.l.b16 %v2410
      %v2469 = vunpack.c.l.b16 %v2411
      %v2470 = vpack.c.b16 %v2467, %v2466
      %v2471 = vpack.c.b16 %v2469, %v2468
      %2474 = vmatpush.bf16.msra.mxu0 0
      %2475 = vmatpush.bf16.msra.mxu0 0
      %2476 = vmatpush.bf16.msra.mxu0 0
      %2477 = vmatpush.bf16.msra.mxu0 0
      %2478 = vmatpush.bf16.msra.mxu0 0
      %2479 = vmatpush.bf16.msra.mxu0 0
      %2480 = vmatpush.bf16.msra.mxu0 %v2471
      %2481 = vmatpush.bf16.msra.mxu0 %v2470
      %2482 = vmatmul.bf16.gmra.mxu0 %v2179
      %v2483 = vpop.f32.mrf.mxu0
      %v2484 = vadd.f32 %v2430, %v2483
      %v2485 = vpop.f32.mrf.mxu0
      %2486 = vdwg.mxu0
      %v2491 = vunpack.c.l.b16 %v2412
      %v2492 = vunpack.c.l.b16 %v2413
      %v2493 = vunpack.c.l.b16 %v2414
      %v2494 = vunpack.c.l.b16 %v2415
      %v2495 = vpack.c.b16 %v2492, %v2491
      %v2496 = vpack.c.b16 %v2494, %v2493
      %2499 = vmatpush.bf16.msra.mxu0 0
      %2500 = vmatpush.bf16.msra.mxu0 0
      %2501 = vmatpush.bf16.msra.mxu0 0
      %2502 = vmatpush.bf16.msra.mxu0 0
      %2503 = vmatpush.bf16.msra.mxu0 0
      %2504 = vmatpush.bf16.msra.mxu0 0
      %2505 = vmatpush.bf16.msra.mxu0 %v2496
      %2506 = vmatpush.bf16.msra.mxu0 %v2495
      %2507 = vmatmul.bf16.gmra.mxu0 %v2179
      %v2508 = vpop.f32.mrf.mxu0
      %v2509 = vadd.f32 %v2431, %v2508
      %v2510 = vpop.f32.mrf.mxu0
      %2511 = vdwg.mxu0
      %v2516 = vunpack.c.l.b16 %v2416
      %v2517 = vunpack.c.l.b16 %v2417
      %v2518 = vunpack.c.l.b16 %v2418
      %v2519 = vunpack.c.l.b16 %v2419
      %v2520 = vpack.c.b16 %v2517, %v2516
      %v2521 = vpack.c.b16 %v2519, %v2518
      %2524 = vmatpush.bf16.msra.mxu0 0
      %2525 = vmatpush.bf16.msra.mxu0 0
      %2526 = vmatpush.bf16.msra.mxu0 0
      %2527 = vmatpush.bf16.msra.mxu0 0
      %2528 = vmatpush.bf16.msra.mxu0 0
      %2529 = vmatpush.bf16.msra.mxu0 0
      %2530 = vmatpush.bf16.msra.mxu0 %v2521
      %2531 = vmatpush.bf16.msra.mxu0 %v2520
      %2532 = vmatmul.bf16.gmra.mxu0 %v2179
      %v2533 = vpop.f32.mrf.mxu0
      %v2534 = vadd.f32 %v2432, %v2533
      %v2535 = vpop.f32.mrf.mxu0
      %2536 = vdwg.mxu0
      %v2537 = vpack.c.bf16 %v2191, %v2191
      %v2538 = vpack.c.bf16 %v2216, %v2216
      %v2539 = vpack.c.bf16 %v2241, %v2241
      %v2540 = vpack.c.bf16 %v2266, %v2266
      %v2541 = vpack.c.bf16 %v2325, %v2325
      %v2542 = vpack.c.bf16 %v2350, %v2350
      %v2543 = vpack.c.bf16 %v2375, %v2375
      %v2544 = vpack.c.bf16 %v2400, %v2400
      %v2546 = vsel %vm1655, %v2537, 0
      %v2549 = vsel %vm1655, %v2541, 0
      %2551 = vmatpush.bf16.xpose.msra.mxu0 0
      %2552 = vmatpush.bf16.xpose.msra.mxu0 0
      %2553 = vmatpush.bf16.xpose.msra.mxu0 0
      %2554 = vmatpush.bf16.xpose.msra.mxu0 0
      %2555 = vmatpush.bf16.xpose.msra.mxu0 0
      %2556 = vmatpush.bf16.xpose.msra.mxu0 0
      %2557 = vmatpush.bf16.xpose.msra.mxu0 0
      %2558 = vmatpush.bf16.xpose.msra.mxu0 %v2549
      %2559 = vmatmul.bf16.gmra.mxu0 %v2546
      %v2560 = vpop.f32.mrf.mxu0
      %v2561 = vadd.f32 0.0, %v2560
      %v2562 = vpop.f32.mrf.mxu0
      %2563 = vdwg.mxu0
      %v2565 = vsel %vm1655, %v2538, 0
      %v2568 = vsel %vm1655, %v2542, 0
      %2570 = vmatpush.bf16.xpose.msra.mxu0 0
      %2571 = vmatpush.bf16.xpose.msra.mxu0 0
      %2572 = vmatpush.bf16.xpose.msra.mxu0 0
      %2573 = vmatpush.bf16.xpose.msra.mxu0 0
      %2574 = vmatpush.bf16.xpose.msra.mxu0 0
      %2575 = vmatpush.bf16.xpose.msra.mxu0 0
      %2576 = vmatpush.bf16.xpose.msra.mxu0 0
      %2577 = vmatpush.bf16.xpose.msra.mxu0 %v2568
      %2578 = vmatmul.bf16.gmra.mxu0 %v2565
      %v2579 = vpop.f32.mrf.mxu0
      %v2580 = vadd.f32 0.0, %v2579
      %v2581 = vpop.f32.mrf.mxu0
      %2582 = vdwg.mxu0
      %v2584 = vsel %vm1655, %v2539, 0
      %v2587 = vsel %vm1655, %v2543, 0
      %2589 = vmatpush.bf16.xpose.msra.mxu0 0
      %2590 = vmatpush.bf16.xpose.msra.mxu0 0
      %2591 = vmatpush.bf16.xpose.msra.mxu0 0
      %2592 = vmatpush.bf16.xpose.msra.mxu0 0
      %2593 = vmatpush.bf16.xpose.msra.mxu0 0
      %2594 = vmatpush.bf16.xpose.msra.mxu0 0
      %2595 = vmatpush.bf16.xpose.msra.mxu0 0
      %2596 = vmatpush.bf16.xpose.msra.mxu0 %v2587
      %2597 = vmatmul.bf16.gmra.mxu0 %v2584
      %v2598 = vpop.f32.mrf.mxu0
      %v2599 = vadd.f32 0.0, %v2598
      %v2600 = vpop.f32.mrf.mxu0
      %2601 = vdwg.mxu0
      %v2603 = vsel %vm1655, %v2540, 0
      %v2606 = vsel %vm1655, %v2544, 0
      %2608 = vmatpush.bf16.xpose.msra.mxu0 0
      %2609 = vmatpush.bf16.xpose.msra.mxu0 0
      %2610 = vmatpush.bf16.xpose.msra.mxu0 0
      %2611 = vmatpush.bf16.xpose.msra.mxu0 0
      %2612 = vmatpush.bf16.xpose.msra.mxu0 0
      %2613 = vmatpush.bf16.xpose.msra.mxu0 0
      %2614 = vmatpush.bf16.xpose.msra.mxu0 0
      %2615 = vmatpush.bf16.xpose.msra.mxu0 %v2606
      %2616 = vmatmul.bf16.gmra.mxu0 %v2603
      %v2617 = vpop.f32.mrf.mxu0
      %v2618 = vadd.f32 0.0, %v2617
      %v2619 = vpop.f32.mrf.mxu0
      %2620 = vdwg.mxu0
      %v2621 = vsel %vm1732, %v2561, -inf
      %2622 = vmax.xlane.f32.xlu0 %v2621
      %v2623 = vpop.xlane.xlu0 %2622
      %v2624 = vsel %vm1732, %v2580, -inf
      %2625 = vmax.xlane.f32.xlu0 %v2624
      %v2626 = vpop.xlane.xlu0 %2625
      %v2627 = vsel %vm1732, %v2599, -inf
      %2628 = vmax.xlane.f32.xlu0 %v2627
      %v2629 = vpop.xlane.xlu0 %2628
      %v2630 = vsel %vm1732, %v2618, -inf
      %2631 = vmax.xlane.f32.xlu0 %v2630
      %v2632 = vpop.xlane.xlu0 %2631
      %v2633 = vsub.f32 %v2561, %v2623
      %v2634 = vsub.f32 %v2580, %v2626
      %v2635 = vsub.f32 %v2599, %v2629
      %v2636 = vsub.f32 %v2618, %v2632
      %v2637 = vmul.f32 %v2633, 1.442695
      %v2638 = vpow.pop %v2637
      %v2639 = vmul.f32 %v2634, 1.442695
      %v2640 = vpow.pop %v2639
      %v2641 = vmul.f32 %v2635, 1.442695
      %v2642 = vpow.pop %v2641
      %v2643 = vmul.f32 %v2636, 1.442695
      %v2644 = vpow.pop %v2643
      %v2645 = vsel %vm1732, %v2638, 0.0
      %2646 = vadd.xlane.f32.xlu0 %v2645
      %v2647 = vpop.xlane.xlu0 %2646
      %v2648 = vsel %vm1732, %v2640, 0.0
      %2649 = vadd.xlane.f32.xlu0 %v2648
      %v2650 = vpop.xlane.xlu0 %2649
      %v2651 = vsel %vm1732, %v2642, 0.0
      %2652 = vadd.xlane.f32.xlu0 %v2651
      %v2653 = vpop.xlane.xlu0 %2652
      %v2654 = vsel %vm1732, %v2644, 0.0
      %2655 = vadd.xlane.f32.xlu0 %v2654
      %v2656 = vpop.xlane.xlu0 %2655
      %v2657 = vrcp.pop %v2647
      %v2658 = vrcp.pop %v2650
      %v2659 = vrcp.pop %v2653
      %v2660 = vrcp.pop %v2656
      %v2661 = vmul.f32 %v2638, %v2657
      %v2662 = vmul.f32 %v2640, %v2658
      %v2663 = vmul.f32 %v2642, %v2659
      %v2664 = vmul.f32 %v2644, %v2660
      %v2665 = vpack.c.bf16 %v2661, %v2661
      %v2666 = vpack.c.bf16 %v2662, %v2662
      %v2667 = vpack.c.bf16 %v2663, %v2663
      %v2668 = vpack.c.bf16 %v2664, %v2664
      %v2669 = vpack.c.bf16 %v2459, %v2459
      %v2670 = vpack.c.bf16 %v2484, %v2484
      %v2671 = vpack.c.bf16 %v2509, %v2509
      %v2672 = vpack.c.bf16 %v2534, %v2534
      %v2674 = vsel %vm1785, %v2665, 0
      %v2677 = vand.u32 %v2669, %v1792
      %2679 = vmatpush.bf16.msra.mxu0 0
      %2680 = vmatpush.bf16.msra.mxu0 0
      %2681 = vmatpush.bf16.msra.mxu0 0
      %2682 = vmatpush.bf16.msra.mxu0 0
      %2683 = vmatpush.bf16.msra.mxu0 0
      %2684 = vmatpush.bf16.msra.mxu0 0
      %2685 = vmatpush.bf16.msra.mxu0 0
      %2686 = vmatpush.bf16.msra.mxu0 %v2677
      %2687 = vmatmul.bf16.gmra.mxu0 %v2674
      %v2688 = vpop.f32.mrf.mxu0
      %v2689 = vadd.f32 0.0, %v2688
      %v2690 = vpop.f32.mrf.mxu0
      %2691 = vdwg.mxu0
      %v2693 = vsel %vm1785, %v2666, 0
      %v2696 = vand.u32 %v2670, %v1792
      %2698 = vmatpush.bf16.msra.mxu0 0
      %2699 = vmatpush.bf16.msra.mxu0 0
      %2700 = vmatpush.bf16.msra.mxu0 0
      %2701 = vmatpush.bf16.msra.mxu0 0
      %2702 = vmatpush.bf16.msra.mxu0 0
      %2703 = vmatpush.bf16.msra.mxu0 0
      %2704 = vmatpush.bf16.msra.mxu0 0
      %2705 = vmatpush.bf16.msra.mxu0 %v2696
      %2706 = vmatmul.bf16.gmra.mxu0 %v2693
      %v2707 = vpop.f32.mrf.mxu0
      %v2708 = vadd.f32 0.0, %v2707
      %v2709 = vpop.f32.mrf.mxu0
      %2710 = vdwg.mxu0
      %v2712 = vsel %vm1785, %v2667, 0
      %v2715 = vand.u32 %v2671, %v1792
      %2717 = vmatpush.bf16.msra.mxu0 0
      %2718 = vmatpush.bf16.msra.mxu0 0
      %2719 = vmatpush.bf16.msra.mxu0 0
      %2720 = vmatpush.bf16.msra.mxu0 0
      %2721 = vmatpush.bf16.msra.mxu0 0
      %2722 = vmatpush.bf16.msra.mxu0 0
      %2723 = vmatpush.bf16.msra.mxu0 0
      %2724 = vmatpush.bf16.msra.mxu0 %v2715
      %2725 = vmatmul.bf16.gmra.mxu0 %v2712
      %v2726 = vpop.f32.mrf.mxu0
      %v2727 = vadd.f32 0.0, %v2726
      %v2728 = vpop.f32.mrf.mxu0
      %2729 = vdwg.mxu0
      %v2731 = vsel %vm1785, %v2668, 0
      %v2734 = vand.u32 %v2672, %v1792
      %2736 = vmatpush.bf16.msra.mxu0 0
      %2737 = vmatpush.bf16.msra.mxu0 0
      %2738 = vmatpush.bf16.msra.mxu0 0
      %2739 = vmatpush.bf16.msra.mxu0 0
      %2740 = vmatpush.bf16.msra.mxu0 0
      %2741 = vmatpush.bf16.msra.mxu0 0
      %2742 = vmatpush.bf16.msra.mxu0 0
      %2743 = vmatpush.bf16.msra.mxu0 %v2734
      %2744 = vmatmul.bf16.gmra.mxu0 %v2731
      %v2745 = vpop.f32.mrf.mxu0
      %v2746 = vadd.f32 0.0, %v2745
      %v2747 = vpop.f32.mrf.mxu0
      %2748 = vdwg.mxu0
      %v2749 = vpack.c.bf16 %v2689, %v2689
      %v2750 = vpack.c.bf16 %v2708, %v2708
      %v2751 = vpack.c.bf16 %v2727, %v2727
      %v2752 = vpack.c.bf16 %v2746, %v2746
      %s2753 = scalar_lea.vmem %s13, 16
      %v2754 = vld [vmem:[%s2753] sm:$0xf]
      %v2755 = vld [vmem:[%s2753 + $0x4] sm:$0xf]
      %v2756 = vld [vmem:[%s2753 + $0x8] sm:$0xf]
      %v2757 = vld [vmem:[%s2753 + $0xc] sm:$0xf]
      %v2759 = vsel %vm1655, %v2749, 0
      %v2762 = vsel %vm1877, %v2754, 0
      %2764 = vmatpush.bf16.msra.mxu0 0
      %2765 = vmatpush.bf16.msra.mxu0 0
      %2766 = vmatpush.bf16.msra.mxu0 0
      %2767 = vmatpush.bf16.msra.mxu0 0
      %2768 = vmatpush.bf16.msra.mxu0 0
      %2769 = vmatpush.bf16.msra.mxu0 0
      %2770 = vmatpush.bf16.msra.mxu0 0
      %2771 = vmatpush.bf16.msra.mxu0 %v2762
      %2772 = vmatmul.bf16.gmra.mxu0 %v2759
      %v2773 = vpop.f32.mrf.mxu0
      %v2774 = vadd.f32 0.0, %v2773
      %v2775 = vpop.f32.mrf.mxu0
      %2776 = vdwg.mxu0
      %v2778 = vsel %vm1655, %v2750, 0
      %v2781 = vsel %vm1877, %v2755, 0
      %2783 = vmatpush.bf16.msra.mxu0 0
      %2784 = vmatpush.bf16.msra.mxu0 0
      %2785 = vmatpush.bf16.msra.mxu0 0
      %2786 = vmatpush.bf16.msra.mxu0 0
      %2787 = vmatpush.bf16.msra.mxu0 0
      %2788 = vmatpush.bf16.msra.mxu0 0
      %2789 = vmatpush.bf16.msra.mxu0 0
      %2790 = vmatpush.bf16.msra.mxu0 %v2781
      %2791 = vmatmul.bf16.gmra.mxu0 %v2778
      %v2792 = vpop.f32.mrf.mxu0
      %v2793 = vadd.f32 0.0, %v2792
      %v2794 = vpop.f32.mrf.mxu0
      %2795 = vdwg.mxu0
      %v2797 = vsel %vm1655, %v2751, 0
      %v2800 = vsel %vm1877, %v2756, 0
      %2802 = vmatpush.bf16.msra.mxu0 0
      %2803 = vmatpush.bf16.msra.mxu0 0
      %2804 = vmatpush.bf16.msra.mxu0 0
      %2805 = vmatpush.bf16.msra.mxu0 0
      %2806 = vmatpush.bf16.msra.mxu0 0
      %2807 = vmatpush.bf16.msra.mxu0 0
      %2808 = vmatpush.bf16.msra.mxu0 0
      %2809 = vmatpush.bf16.msra.mxu0 %v2800
      %2810 = vmatmul.bf16.gmra.mxu0 %v2797
      %v2811 = vpop.f32.mrf.mxu0
      %v2812 = vadd.f32 0.0, %v2811
      %v2813 = vpop.f32.mrf.mxu0
      %2814 = vdwg.mxu0
      %v2816 = vsel %vm1655, %v2752, 0
      %v2819 = vsel %vm1877, %v2757, 0
      %2821 = vmatpush.bf16.msra.mxu0 0
      %2822 = vmatpush.bf16.msra.mxu0 0
      %2823 = vmatpush.bf16.msra.mxu0 0
      %2824 = vmatpush.bf16.msra.mxu0 0
      %2825 = vmatpush.bf16.msra.mxu0 0
      %2826 = vmatpush.bf16.msra.mxu0 0
      %2827 = vmatpush.bf16.msra.mxu0 0
      %2828 = vmatpush.bf16.msra.mxu0 %v2819
      %2829 = vmatmul.bf16.gmra.mxu0 %v2816
      %v2830 = vpop.f32.mrf.mxu0
      %v2831 = vadd.f32 0.0, %v2830
      %v2832 = vpop.f32.mrf.mxu0
      %2833 = vdwg.mxu0
      %v2834 = vsel %vm1208, %v2774, 0.0
      %v2835 = vsel %vm1208, %v2793, 0.0
      %v2836 = vadd.f32 %v2834, %v2835
      %v2837 = vsel %vm1208, %v2812, 0.0
      %v2838 = vadd.f32 %v2836, %v2837
      %v2839 = vsel %vm1208, %v2831, 0.0
      %v2840 = vadd.f32 %v2838, %v2839
      %s2841 = scalar_lea.vmem %s14, 1
      %v2842 = vld [vmem:[%s2841] sm:$0x1]
      %v2844 = vperm.slane %v2842, 0
      %v2846 = vadd.f32 %v2840, %v2844
      %v2847 = vadd.f32 %v2096, %v2846
      %s2848 = scalar_lea.vmem %s15, 1
      %v2849 = vld [vmem:[%s2848] sm:$0x1]
      %s2850 = scalar_lea.vmem %s16, 1
      %v2851 = vld [vmem:[%s2850] sm:$0x1]
      %v2852 = vsel %vm1208, %v2847, 0.0
      %2853 = vadd.xlane.f32.xlu0 %v2852
      %v2854 = vpop.xlane.xlu0 %2853
      %v2855 = vmul.f32 %v2854, %v1218
      %v2856 = vsub.f32 %v2847, %v2855
      %v2857 = vmul.f32 %v2856, %v2856
      %v2858 = vsel %vm1208, %v2857, 0.0
      %2859 = vadd.xlane.f32.xlu0 %v2858
      %v2860 = vpop.xlane.xlu0 %2859
      %v2861 = vmul.f32 %v2860, %v1218
      %v2862 = vadd.f32 %v2861, 1e-06
      %v2863 = vrsqrt.pop %v2862
      %v2864 = vmul.f32 %v2863, %v2862
      %v2865 = vmul.f32 %v2864, %v2863
      %v2866 = vmul.f32 0.5, %v2865
      %v2867 = vsub.f32 1.5, %v2866
      %v2868 = vmul.f32 %v2863, %v2867
      %vm2869 = vweird.f32 %v2862
      %vm2870 = vweird.f32 %v2863
      %vm2871 = vmor %vm2869, %vm2870
      %v2872 = vsel %vm2871, %v2863, %v2868
      %v2873 = vmul.f32 %v2856, %v2872
      %v2875 = vperm.slane %v2849, 0
      %v2877 = vmul.f32 %v2873, %v2875
      %v2879 = vperm.slane %v2851, 0
      %v2881 = vadd.f32 %v2877, %v2879
      %v2882 = vpack.c.bf16 %v2881, %v2881
      %s2883 = scalar_lea.vmem %s17, 16
      %v2884 = vld [vmem:[%s2883] sm:$0xf]
      %v2885 = vld [vmem:[%s2883 + $0x4] sm:$0xf]
      %v2886 = vld [vmem:[%s2883 + $0x8] sm:$0xf]
      %v2887 = vld [vmem:[%s2883 + $0xc] sm:$0xf]
      %s2888 = scalar_lea.vmem %s18, 1
      %v2889 = vld [vmem:[%s2888] sm:$0x1]
      %v2891 = vperm.slane %v2889, 0
      %v2897 = vunpack.c.l.b16 %v2884
      %v2898 = vunpack.c.l.b16 %v2885
      %v2899 = vunpack.c.l.b16 %v2886
      %v2900 = vunpack.c.l.b16 %v2887
      %v2901 = vpack.c.b16 %v2898, %v2897
      %v2902 = vpack.c.b16 %v2900, %v2899
      %v2906 = vsel %vm1291, %v2882, 0
      %2908 = vmatpush.bf16.msra.mxu0 0
      %2909 = vmatpush.bf16.msra.mxu0 0
      %2910 = vmatpush.bf16.msra.mxu0 0
      %2911 = vmatpush.bf16.msra.mxu0 0
      %2912 = vmatpush.bf16.msra.mxu0 0
      %2913 = vmatpush.bf16.msra.mxu0 0
      %2914 = vmatpush.bf16.msra.mxu0 %v2902
      %2915 = vmatpush.bf16.msra.mxu0 %v2901
      %2916 = vmatmul.bf16.gmra.mxu0 %v2906
      %v2917 = vpop.f32.mrf.mxu0
      %v2918 = vadd.f32 %v2891, %v2917
      %v2919 = vpop.f32.mrf.mxu0
      %2920 = vdwg.mxu0
      %v2921 = vmul.f32 %v2918, 0.5
      %v2922 = vmul.f32 %v2918, 0.044715
      %v2923 = vmul.f32 %v2922, %v2918
      %v2924 = vmul.f32 %v2923, %v2918
      %v2925 = vadd.f32 %v2918, %v2924
      %v2926 = vmul.f32 %v2925, 0.7978846
      %v2927 = vtanh.pop %v2926
      %v2928 = vadd.f32 %v2927, 1.0
      %v2929 = vmul.f32 %v2921, %v2928
      %v2930 = vpack.c.bf16 %v2929, %v2929
      %s2931 = scalar_lea.vmem %s19, 32
      %v2932 = vld [vmem:[%s2931] sm:$0xf]
      %v2933 = vld [vmem:[%s2931 + $0x4] sm:$0xf]
      %v2934 = vld [vmem:[%s2931 + $0x8] sm:$0xf]
      %v2935 = vld [vmem:[%s2931 + $0xc] sm:$0xf]
      %v2936 = vld [vmem:[%s2931 + $0x10] sm:$0xf]
      %v2937 = vld [vmem:[%s2931 + $0x14] sm:$0xf]
      %v2938 = vld [vmem:[%s2931 + $0x18] sm:$0xf]
      %v2939 = vld [vmem:[%s2931 + $0x1c] sm:$0xf]
      %s2940 = scalar_lea.vmem %s20, 1
      %v2941 = vld [vmem:[%s2940] sm:$0x1]
      %v2943 = vperm.slane %v2941, 0
      %v2953 = vunpack.c.l.b16 %v2932
      %v2954 = vunpack.c.l.b16 %v2933
      %v2955 = vunpack.c.l.b16 %v2934
      %v2956 = vunpack.c.l.b16 %v2935
      %v2957 = vunpack.c.l.b16 %v2936
      %v2958 = vunpack.c.l.b16 %v2937
      %v2959 = vunpack.c.l.b16 %v2938
      %v2960 = vunpack.c.l.b16 %v2939
      %v2961 = vpack.c.b16 %v2954, %v2953
      %v2962 = vpack.c.b16 %v2956, %v2955
      %v2963 = vpack.c.b16 %v2958, %v2957
      %v2964 = vpack.c.b16 %v2960, %v2959
      %v2970 = vsel %vm2079, %v2930, 0
      %2972 = vmatpush.bf16.msra.mxu0 0
      %2973 = vmatpush.bf16.msra.mxu0 0
      %2974 = vmatpush.bf16.msra.mxu0 0
      %2975 = vmatpush.bf16.msra.mxu0 0
      %2976 = vmatpush.bf16.msra.mxu0 %v2964
      %2977 = vmatpush.bf16.msra.mxu0 %v2963
      %2978 = vmatpush.bf16.msra.mxu0 %v2962
      %2979 = vmatpush.bf16.msra.mxu0 %v2961
      %2980 = vmatmul.bf16.gmra.mxu0 %v2970
      %v2981 = vpop.f32.mrf.mxu0
      %v2982 = vadd.f32 %v2943, %v2981
      %v2983 = vpop.f32.mrf.mxu0
      %2984 = vdwg.mxu0
      %v2985 = vadd.f32 %v2847, %v2982
      %v2986 = vsel %vm1208, %v2985, 0.0
      %2987 = vadd.xlane.f32.xlu0 %v2986
      %v2988 = vpop.xlane.xlu0 %2987
      %v2989 = vmul.f32 %v2988, %v1218
      %v2990 = vsub.f32 %v2985, %v2989
      %v2991 = vmul.f32 %v2990, %v2990
      %v2992 = vsel %vm1208, %v2991, 0.0
      %2993 = vadd.xlane.f32.xlu0 %v2992
      %v2994 = vpop.xlane.xlu0 %2993
      %v2995 = vmul.f32 %v2994, %v1218
      %v2996 = vadd.f32 %v2995, 1e-06
      %v2997 = vrsqrt.pop %v2996
      %v2998 = vmul.f32 %v2997, %v2996
      %v2999 = vmul.f32 %v2998, %v2997
      %v3000 = vmul.f32 0.5, %v2999
      %v3001 = vsub.f32 1.5, %v3000
      %v3002 = vmul.f32 %v2997, %v3001
      %vm3003 = vweird.f32 %v2996
      %vm3004 = vweird.f32 %v2997
      %vm3005 = vmor %vm3003, %vm3004
      %v3006 = vsel %vm3005, %v2997, %v3002
      %v3007 = vmul.f32 %v2990, %v3006
      %v3009 = vperm.slane %v809, 0
      %v3011 = vmul.f32 %v3007, %v3009
      %v3013 = vperm.slane %v810, 0
      %v3015 = vadd.f32 %v3011, %v3013
      %v3016 = vsel %vm1208, %v3015, 0.0
      %3017 = vadd.xlane.f32.xlu0 %v3016
      %v3018 = vpop.xlane.xlu0 %3017
      %v3019 = vmul.f32 %v3018, %v1218
      %v3020 = vsub.f32 %v3015, %v3019
      %v3021 = vmul.f32 %v3020, %v3020
      %v3022 = vsel %vm1208, %v3021, 0.0
      %3023 = vadd.xlane.f32.xlu0 %v3022
      %v3024 = vpop.xlane.xlu0 %3023
      %v3025 = vmul.f32 %v3024, %v1218
      %v3026 = vadd.f32 %v3025, 1e-06
      %v3027 = vrsqrt.pop %v3026
      %v3028 = vmul.f32 %v3027, %v3026
      %v3029 = vmul.f32 %v3028, %v3027
      %v3030 = vmul.f32 0.5, %v3029
      %v3031 = vsub.f32 1.5, %v3030
      %v3032 = vmul.f32 %v3027, %v3031
      %vm3033 = vweird.f32 %v3026
      %vm3034 = vweird.f32 %v3027
      %vm3035 = vmor %vm3033, %vm3034
      %v3036 = vsel %vm3035, %v3027, %v3032
      %v3037 = vmul.f32 %v3020, %v3036
      %v3038 = vmul.f32 %v3037, %v3009
      %v3039 = vadd.f32 %v3038, %v3013
      %3040 = vst.msk [vmem:[%s708] sm:$0x1f] %vm1208, %v3039
      %p3041 = scmp.lt.s32.totalorder %s34, 1
      %s3042 = scalar_select %p3041, %s34, 1
      %s3043 = smul.addr %s3042, 8
      %s3044 = scalar_lea.vmem %s23, %s3043
      // Predicated region
      $region113: #{tpu_custom_call.1} parent=111 // pred_check
        %p3045 = pneg %p540
      $region114: #{tpu_custom_call.1} parent=111 // pred_check_branch
        %3047 = sbr.rel (%p3045) target = $region116
      $region115: #{tpu_custom_call.1} parent=111 // pred_region
        _
      $region116: #{tpu_custom_call.1} parent=111 // pred_fallthru
        _
    $region112: #{tpu_custom_call.1} parent=5 // pred_fallthru
      _
    %p3048 = scmp.le.s32.totalorder 2, %s29
    // Predicated region
    $region117: #{tpu_custom_call.1} parent=5 // pred_check
      %p3049 = pneg %p3048
    $region118: #{tpu_custom_call.1} parent=5 // pred_check_branch
      %3051 = sbr.rel (%p3049) target = $region120
    $region119: #{tpu_custom_call.1} parent=5 // pred_region
      %s3052 = ssub.s32 %s29, 2
      // Predicated region
      $region121: #{tpu_custom_call.1} parent=119 // pred_check
        %p3053 = pneg %p546
      $region122: #{tpu_custom_call.1} parent=119 // pred_check_branch
        %3055 = sbr.rel (%p3053) target = $region124
      $region123: #{tpu_custom_call.1} parent=119 // pred_region
        %p3056 = scmp.lt.s32.totalorder %s35, 1
        %s3057 = scalar_select %p3056, %s35, 1
        %s3058 = smul.addr %s3057, 8
        %s3059 = scalar_lea.vmem %s23, %s3058
      $region124: #{tpu_custom_call.1} parent=119 // pred_fallthru
        _
    $region120: #{tpu_custom_call.1} parent=5 // pred_fallthru
      _
  $region6: #{tpu_custom_call.1} parent=0 // loop_footer
    %s33 = sadd.s32 1, %s29
  $region7: #{tpu_custom_call.1} parent=0 // loop_footer_branch
    %28 = sbr.rel target = $region3
  $region8: #{tpu_custom_call.1} parent=0 // loop_exit
    _

</llo_original>
